<compile_context>
chip_gen: v7x
topology: tpu7x:2x2x1
jax: 0.10.0
libtpu: 0.0.40
codegen_flags: <defaults>
</compile_context>

<pallas_src>
import functools
import math

import jax
import jax.numpy as jnp
from jax import lax
from jax.experimental import pallas as pl
from jax.experimental.pallas import tpu as pltpu


def _round_up(x, m):
    return ((x + m - 1) // m) * m


def _layer_norm(x, gamma, beta, eps=1e-5):
    mu = jnp.mean(x, axis=-1, keepdims=True)
    var = jnp.mean((x - mu) ** 2, axis=-1, keepdims=True)
    return (x - mu) * lax.rsqrt(var + eps) * gamma + beta


def _fused_kernel(x_ref, enc_w_ref, enc_b_ref, out_w_ref, out_b_ref,
                  wqkv_ref, wo_ref, erel_ref, w1_ref, w2_ref, vec_ref,
                  o_ref, h_ref,
                  *, nhead, nlayers, n_steps, seq_len, d_model, hidden,
                  resident_weights):
    t = pl.program_id(0)          # layer step (outer, sequential)
    b = pl.program_id(1)          # batch element (inner)
    L, D, H = seq_len, d_model, hidden
    dk = D // nhead
    scale = 1.0 / math.sqrt(dk)

    # Which per-layer weight slice to use.  With resident weights the whole
    # (nlayers, ...) stack sits in VMEM and is indexed dynamically; when
    # streaming, the BlockSpec index_map already picked layer (t % nlayers).
    lidx = (t % nlayers) if resident_weights else 0

    # ---- ff_encoder (Linear + ReLU), fused into the first layer step --------
    @pl.when(t == 0)
    def _():
        x = x_ref[0].astype(jnp.bfloat16)                          # (L, F)
        h = jnp.dot(x, enc_w_ref[...], preferred_element_type=jnp.float32)
        h_ref[b] = jnp.maximum(h + enc_b_ref[...], 0.0)

    # ---- one DecoderLayer (relative-position self-attn + FF, post-LN) -------
    x_res = h_ref[b]                                               # (L, D) f32
    x_bf = x_res.astype(jnp.bfloat16)

    vecs = vec_ref[lidx]                                           # (8, PW) f32
    bqkv = vecs[0:1, :3 * D]
    bo = vecs[1:2, :D]
    b1 = vecs[2:3, :H]
    b2 = vecs[3:4, :D]
    g1 = vecs[4:5, :D]
    be1 = vecs[5:6, :D]
    g2 = vecs[6:7, :D]
    be2 = vecs[7:8, :D]

    # Fused, lane-dense Q/K/V projection: (L, D) @ (D, 3D).
    qkv = jnp.dot(x_bf, wqkv_ref[lidx],
                  preferred_element_type=jnp.float32) + bqkv       # (L, 3D)
    q2 = qkv[:, 0:D] * scale      # fold 1/sqrt(dk) into Q (cheaper than (h,L,L))
    k2 = qkv[:, D:2 * D]
    v2 = qkv[:, 2 * D:3 * D]

    q_bf = q2.astype(jnp.bfloat16)
    k_bf = k2.astype(jnp.bfloat16)
    v_bf = v2.astype(jnp.bfloat16)
    # Split heads with static lane slices + stack (no reshape / transpose).
    qh = jnp.stack([q_bf[:, h * dk:(h + 1) * dk] for h in range(nhead)], axis=0)
    kh = jnp.stack([k_bf[:, h * dk:(h + 1) * dk] for h in range(nhead)], axis=0)
    vh = jnp.stack([v_bf[:, h * dk:(h + 1) * dk] for h in range(nhead)], axis=0)

    scores = jnp.einsum('hqd,hkd->hqk', qh, kh,
                        preferred_element_type=jnp.float32)        # (nh, L, L)

    # Relative logits: rel[h, i, r] = q[h, i] . E_rel[h, r], r = (j - i) + L - 1.
    # E_rel is stored with 2L rows (row 2L-1 is a never-read pad) so the lane
    # dim of rel is 2L (lane-dense when L is a multiple of 64).
    rel = jnp.einsum('hqd,hrd->hqr', qh, erel_ref[lidx],
                     preferred_element_type=jnp.float32)           # (nh, L, 2L)
    # Music-Transformer skew via ONE strided rotate per head (XLU):
    #   rolled[i, c] = rel[i, (c - i) mod 2L]   (per-row right-rotate by row idx)
    # so rolled[i, j + L - 1] = rel[i, j - i + L - 1] = Srel[i, j]; no wraparound
    # is read because 0 <= j - i + L - 1 <= 2L - 2 for 0 <= i, j < L.
    srel = jnp.stack(
        [pltpu.roll(rel[h], 0, 1, stride=1, stride_axis=0)[:, L - 1:2 * L - 1]
         for h in range(nhead)], axis=0)                           # (nh, L, L)

    logits = scores + srel                                         # scale already in Q
    logits = logits - jnp.max(logits, axis=-1, keepdims=True)
    e = jnp.exp(logits)
    attn = e * pl.reciprocal(jnp.sum(e, axis=-1, keepdims=True), approx=True)

    oh = jnp.einsum('hqk,hkd->hqd', attn.astype(jnp.bfloat16), vh,
                    preferred_element_type=jnp.float32)            # (nh, L, dk)
    # Merge heads back onto the lane dim and do ONE (L, D) @ (D, D) projection.
    ctx = jnp.concatenate([oh[h] for h in range(nhead)], axis=1)   # (L, D) f32
    attn_out = jnp.dot(ctx.astype(jnp.bfloat16), wo_ref[lidx],
                       preferred_element_type=jnp.float32) + bo

    x1 = _layer_norm(x_res + attn_out, g1, be1)

    ff = jnp.dot(x1.astype(jnp.bfloat16), w1_ref[lidx],
                 preferred_element_type=jnp.float32) + b1
    ff = jnp.maximum(ff, 0.0)
    ff = jnp.dot(ff.astype(jnp.bfloat16), w2_ref[lidx],
                 preferred_element_type=jnp.float32) + b2

    x2 = _layer_norm(x1 + ff, g2, be2)
    h_ref[b] = x2                                                  # carry to next step

    # ---- fc_out (lane-dense: dim_out padded to 128), fused into last step ---
    @pl.when(t == n_steps - 1)
    def _():
        y = jnp.dot(x2.astype(jnp.bfloat16), out_w_ref[...],
                    preferred_element_type=jnp.float32) + out_b_ref[...]
        o_ref[0] = y.astype(o_ref.dtype)


def music_transformer_forward(x, params, *, nhead, nlayers, depth_recurrence,
                              seq_len, d_model, hidden, dim_out, num_feats,
                              resident_weights=True,
                              vmem_limit_bytes=48 * 1024 * 1024):
    # resident_weights=True keeps all nlayers weight stacks in VMEM across the
    # depth-recurrence passes (good for v5e/v6e, raise vmem_limit to ~96 MiB for
    # large models).  Use resident_weights=False (streamed, double-buffered) on
    # v7x (64 MiB VMEM) or when the weights do not fit.
    B = x.shape[0]
    L, D, H, F = seq_len, d_model, hidden, num_feats
    dk = D // nhead
    DOP = params["out_w"].shape[1]           # dim_out padded to a 128 multiple
    PW = params["vecs"].shape[2]
    n_steps = depth_recurrence * nlayers

    def cspec(shape):                         # constants, fetched once
        nd = len(shape)
        return pl.BlockSpec(shape, lambda t, b, _nd=nd: (0,) * _nd)

    def wspec(per_layer_shape):               # per-layer weights
        nd = len(per_layer_shape)
        if resident_weights:
            return pl.BlockSpec((nlayers,) + per_layer_shape,
                                lambda t, b, _nd=nd: (0,) * (_nd + 1))
        return pl.BlockSpec((1,) + per_layer_shape,
                            lambda t, b, _nd=nd: (t % nlayers,) + (0,) * _nd)

    in_specs = [
        pl.BlockSpec((1, L, F), lambda t, b: (b, 0, 0)),           # x
        cspec((F, D)), cspec((1, D)),                              # enc_w, enc_b
        cspec((D, DOP)), cspec((1, DOP)),                          # out_w, out_b (padded)
        wspec((D, 3 * D)),                                         # fused QKV weight
        wspec((D, D)),                                             # wo
        wspec((nhead, 2 * L, dk)),                                 # E_rel (padded to 2L rows)
        wspec((D, H)),                                             # w1
        wspec((H, D)),                                             # w2
        wspec((8, PW)),                                            # packed biases + LN params
    ]

    # The output block stays parked on batch 0 until the final layer step, so
    # each batch's block is written back to HBM exactly once, after fc_out.
    out_spec = pl.BlockSpec(
        (1, L, DOP),
        lambda t, b: (jnp.where(t == n_steps - 1, b, 0), 0, 0))

    kernel = functools.partial(
        _fused_kernel, nhead=nhead, nlayers=nlayers, n_steps=n_steps,
        seq_len=L, d_model=D, hidden=H, resident_weights=resident_weights)

    out = pl.pallas_call(
        kernel,
        out_shape=jax.ShapeDtypeStruct((B, L, DOP), jnp.float32),
        grid_spec=pltpu.PrefetchScalarGridSpec(
            num_scalar_prefetch=0,
            grid=(n_steps, B),      # t outer, b inner: weights DMA'd once per step
            in_specs=in_specs,
            out_specs=out_spec,
            scratch_shapes=[pltpu.VMEM((B, L, D), jnp.float32)]),  # resident activations
        compiler_params=pltpu.CompilerParams(
            # TODO(synk): on v7x (2 TensorCores) shard the batch axis across
            # cores (core_map / parallel batch axis) when B >= 2; kept
            # "arbitrary" here for portability since the activation carry is
            # sequential in t.
            dimension_semantics=("arbitrary", "arbitrary"),
            vmem_limit_bytes=vmem_limit_bytes),
    )(x, params["enc_w"], params["enc_b"], params["out_w"], params["out_b"],
      params["wqkv"], params["wo"], params["erel"], params["w1"], params["w2"],
      params["vecs"])
    return out[..., :dim_out]


# ----------------------------------------------------------------------------
# Parameter construction (deterministic, PyTorch-default-like uniform init).
# ----------------------------------------------------------------------------
def _uniform(key, shape, fan_in):
    bound = 1.0 / math.sqrt(fan_in)
    return jax.random.uniform(key, shape, jnp.float32, -bound, bound)


def init_params(key, *, num_feats, d_model, hidden, nlayers, nhead, dim_out, seq_len):
    D, H, F, L = d_model, hidden, num_feats, seq_len
    dk = D // nhead
    DOP = _round_up(dim_out, 128)             # lane-dense fc_out
    PW = max(3 * D, H)                        # packed per-layer vector slab width
    keys = iter(jax.random.split(key, 4 + nlayers * 9))

    enc_w = _uniform(next(keys), (F, D), F)
    enc_b = _uniform(next(keys), (1, D), F)
    ow = _uniform(next(keys), (D, dim_out), D)
    ob = _uniform(next(keys), (1, dim_out), D)
    out_w = jnp.zeros((D, DOP), jnp.float32).at[:, :dim_out].set(ow)
    out_b = jnp.zeros((1, DOP), jnp.float32).at[:, :dim_out].set(ob)

    wqkv, wo, erel, w1, w2, vecs = ([] for _ in range(6))
    for _ in range(nlayers):
        wqkv.append(_uniform(next(keys), (D, 3 * D), D))           # fused Q|K|V
        wo.append(_uniform(next(keys), (D, D), D))
        er = _uniform(next(keys), (nhead, 2 * L, dk), dk)
        er = er.at[:, 2 * L - 1, :].set(0.0)                       # pad row (never read)
        erel.append(er)
        w1.append(_uniform(next(keys), (D, H), D))
        w2.append(_uniform(next(keys), (H, D), H))
        bqkv = _uniform(next(keys), (3 * D,), D)
        bo = _uniform(next(keys), (D,), D)
        b1 = _uniform(next(keys), (H,), D)
        b2 = _uniform(next(keys), (D,), H)
        vec = jnp.zeros((8, PW), jnp.float32)
        vec = (vec.at[0, :3 * D].set(bqkv)
                  .at[1, :D].set(bo)
                  .at[2, :H].set(b1)
                  .at[3, :D].set(b2)
                  .at[4, :D].set(1.0)        # LN1 gamma
                  .at[6, :D].set(1.0))       # LN2 gamma (betas stay 0)
        vecs.append(vec)

    return dict(
        enc_w=enc_w.astype(jnp.bfloat16), enc_b=enc_b,
        out_w=out_w.astype(jnp.bfloat16), out_b=out_b,
        wqkv=jnp.stack(wqkv).astype(jnp.bfloat16),
        wo=jnp.stack(wo).astype(jnp.bfloat16),
        erel=jnp.stack(erel).astype(jnp.bfloat16),
        w1=jnp.stack(w1).astype(jnp.bfloat16),
        w2=jnp.stack(w2).astype(jnp.bfloat16),
        vecs=jnp.stack(vecs),
    )


if __name__ == "__main__":
    # Module defaults: d_model=128, hidden=200, nlayers=3, nhead=2, dim_out=1,
    # depth_recurrence=3.  seq_len=128 keeps the attention tiles lane-aligned
    # while remaining a small, fast demo.
    B, L = 2, 128
    NUM_FEATS = 16
    D_MODEL = 128
    HIDDEN = 200
    NLAYERS = 3
    NHEAD = 2
    DIM_OUT = 1
    DEPTH_RECURRENCE = 3

    key = jax.random.PRNGKey(0)
    kx, kp = jax.random.split(key)
    x = jax.random.normal(kx, (B, L, NUM_FEATS), jnp.float32)

    params = init_params(
        kp, num_feats=NUM_FEATS, d_model=D_MODEL, hidden=HIDDEN,
        nlayers=NLAYERS, nhead=NHEAD, dim_out=DIM_OUT, seq_len=L)

    out = music_transformer_forward(
        x, params, nhead=NHEAD, nlayers=NLAYERS,
        depth_recurrence=DEPTH_RECURRENCE, seq_len=L, d_model=D_MODEL,
        hidden=HIDDEN, dim_out=DIM_OUT, num_feats=NUM_FEATS)
    out = jax.block_until_ready(out)
    assert out.shape == (B, L, DIM_OUT), out.shape
    print("KERNEL_OK")
</pallas_src>

<mosaic_0001>
module attributes {stable_mosaic.version = 11 : i64} {
  func.func @_fused_kernel(%arg0: i32, %arg1: i32, %arg2: memref<1x128x16xf32, #tpu.memory_space<vmem>>, %arg3: memref<16x128xbf16, #tpu.memory_space<vmem>>, %arg4: memref<1x128xf32, #tpu.memory_space<vmem>>, %arg5: memref<128x128xbf16, #tpu.memory_space<vmem>>, %arg6: memref<1x128xf32, #tpu.memory_space<vmem>>, %arg7: memref<3x128x384xbf16, #tpu.memory_space<vmem>>, %arg8: memref<3x128x128xbf16, #tpu.memory_space<vmem>>, %arg9: memref<3x2x256x64xbf16, #tpu.memory_space<vmem>>, %arg10: memref<3x128x200xbf16, #tpu.memory_space<vmem>>, %arg11: memref<3x200x128xbf16, #tpu.memory_space<vmem>>, %arg12: memref<3x8x384xf32, #tpu.memory_space<vmem>>, %arg13: memref<1x128x128xf32, #tpu.memory_space<vmem>>, %arg14: memref<2x128x128xf32, #tpu.memory_space<vmem>>) attributes {dimension_semantics = [#tpu.dimension_semantics<arbitrary>, #tpu.dimension_semantics<arbitrary>], iteration_bounds = array<i64: 9, 2>, scalar_prefetch = 0 : i64, scratch_operands = 1 : i64, tpu.core_type = #tpu.core_type<tc>, window_params = [{transform_indices = @transform_0, window_bounds = array<i64: 1, 128, 16>}, {pipeline_mode = #tpu.pipeline_mode<synchronous>, transform_indices = @transform_1, window_bounds = array<i64: 16, 128>}, {pipeline_mode = #tpu.pipeline_mode<synchronous>, transform_indices = @transform_2, window_bounds = array<i64: 1, 128>}, {pipeline_mode = #tpu.pipeline_mode<synchronous>, transform_indices = @transform_3, window_bounds = array<i64: 128, 128>}, {pipeline_mode = #tpu.pipeline_mode<synchronous>, transform_indices = @transform_4, window_bounds = array<i64: 1, 128>}, {pipeline_mode = #tpu.pipeline_mode<synchronous>, transform_indices = @transform_5, window_bounds = array<i64: 3, 128, 384>}, {pipeline_mode = #tpu.pipeline_mode<synchronous>, transform_indices = @transform_6, window_bounds = array<i64: 3, 128, 128>}, {pipeline_mode = #tpu.pipeline_mode<synchronous>, transform_indices = @transform_7, window_bounds = array<i64: 3, 2, 256, 64>}, {pipeline_mode = #tpu.pipeline_mode<synchronous>, transform_indices = @transform_8, window_bounds = array<i64: 3, 128, 200>}, {pipeline_mode = #tpu.pipeline_mode<synchronous>, transform_indices = @transform_9, window_bounds = array<i64: 3, 200, 128>}, {pipeline_mode = #tpu.pipeline_mode<synchronous>, transform_indices = @transform_10, window_bounds = array<i64: 3, 8, 384>}, {transform_indices = @transform_11, window_bounds = array<i64: 1, 128, 128>}]} {
    %c3_i32 = arith.constant 3 : i32
    %c0_i32 = arith.constant 0 : i32
    %0 = arith.cmpi eq, %c3_i32, %c0_i32 : i32
    %c1_i32 = arith.constant 1 : i32
    %1 = arith.select %0, %c1_i32, %c3_i32 : i32
    %2 = arith.remsi %arg0, %1 : i32
    %c0_i32_0 = arith.constant 0 : i32
    %3 = arith.cmpi ne, %2, %c0_i32_0 : i32
    %c0_i32_1 = arith.constant 0 : i32
    %4 = arith.cmpi slt, %2, %c0_i32_1 : i32
    %c0_i32_2 = arith.constant 0 : i32
    %5 = arith.cmpi slt, %1, %c0_i32_2 : i32
    %6 = arith.xori %4, %5 : i1
    %7 = arith.andi %6, %3 : i1
    %8 = arith.addi %2, %1 : i32
    %9 = arith.select %7, %8, %2 : i32
    %c0_i32_3 = arith.constant 0 : i32
    %10 = arith.cmpi eq, %arg0, %c0_i32_3 : i32
    %11 = arith.extui %10 : i1 to i32
    %c0_i32_4 = arith.constant 0 : i32
    %12 = arith.cmpi ne, %11, %c0_i32_4 : i32
    scf.if %12 {
      %c0_44 = arith.constant 0 : index
      %c0_45 = arith.constant 0 : index
      %c0_46 = arith.constant 0 : index
      %167 = vector.load %arg2[%c0_44, %c0_45, %c0_46] : memref<1x128x16xf32, #tpu.memory_space<vmem>>, vector<1x128x16xf32>
      %168 = vector.shape_cast %167 : vector<1x128x16xf32> to vector<128x16xf32>
      %169 = arith.truncf %168 : vector<128x16xf32> to vector<128x16xbf16>
      %c0_47 = arith.constant 0 : index
      %c0_48 = arith.constant 0 : index
      %170 = vector.load %arg3[%c0_47, %c0_48] : memref<16x128xbf16, #tpu.memory_space<vmem>>, vector<16x128xbf16>
      %cst_49 = arith.constant dense<0.000000e+00> : vector<128x128xf32>
      %171 = tpu.matmul %169, %170, %cst_49 {dimension_numbers = #tpu.dot_dimension_numbers<[1], [0], [0], [1], [0, 0, 1, 1], [], []>} : vector<128x16xbf16>, vector<16x128xbf16>, vector<128x128xf32> -> vector<128x128xf32>
      %c0_50 = arith.constant 0 : index
      %c0_51 = arith.constant 0 : index
      %172 = vector.load %arg4[%c0_50, %c0_51] : memref<1x128xf32, #tpu.memory_space<vmem>>, vector<1x128xf32>
      %173 = vector.broadcast %172 : vector<1x128xf32> to vector<128x128xf32>
      %174 = arith.addf %171, %173 : vector<128x128xf32>
      %cst_52 = arith.constant 0.000000e+00 : f32
      %175 = vector.broadcast %cst_52 : f32 to vector<128x128xf32>
      %176 = arith.maximumf %174, %175 : vector<128x128xf32>
      %177 = arith.index_cast %arg1 : i32 to index
      %c0_53 = arith.constant 0 : index
      %c0_54 = arith.constant 0 : index
      %178 = vector.load %arg14[%177, %c0_53, %c0_54] : memref<2x128x128xf32, #tpu.memory_space<vmem>>, vector<1x128x128xf32>
      %179 = vector.shape_cast %178 : vector<1x128x128xf32> to vector<128x128xf32>
      %180 = vector.shape_cast %176 : vector<128x128xf32> to vector<1x128x128xf32>
      tpu.vector_store %arg14[%177, %c0_53, %c0_54], %180 {strides = array<i32>} : memref<2x128x128xf32, #tpu.memory_space<vmem>>, vector<1x128x128xf32>,
    } else {
    }
    %13 = arith.index_cast %arg1 : i32 to index
    %c0 = arith.constant 0 : index
    %c0_5 = arith.constant 0 : index
    %14 = vector.load %arg14[%13, %c0, %c0_5] : memref<2x128x128xf32, #tpu.memory_space<vmem>>, vector<1x128x128xf32>
    %15 = vector.shape_cast %14 : vector<1x128x128xf32> to vector<128x128xf32>
    %16 = arith.truncf %15 : vector<128x128xf32> to vector<128x128xbf16>
    %17 = arith.index_cast %9 : i32 to index
    %c0_6 = arith.constant 0 : index
    %c0_7 = arith.constant 0 : index
    %18 = vector.load %arg12[%17, %c0_6, %c0_7] : memref<3x8x384xf32, #tpu.memory_space<vmem>>, vector<1x8x384xf32>
    %19 = vector.shape_cast %18 : vector<1x8x384xf32> to vector<8x384xf32>
    %20 = vector.extract_strided_slice %19 {offsets = [0, 0], sizes = [1, 384], strides = [1, 1]} : vector<8x384xf32> to vector<1x384xf32>
    %21 = vector.extract_strided_slice %19 {offsets = [1, 0], sizes = [1, 128], strides = [1, 1]} : vector<8x384xf32> to vector<1x128xf32>
    %22 = vector.extract_strided_slice %19 {offsets = [2, 0], sizes = [1, 200], strides = [1, 1]} : vector<8x384xf32> to vector<1x200xf32>
    %23 = vector.extract_strided_slice %19 {offsets = [3, 0], sizes = [1, 128], strides = [1, 1]} : vector<8x384xf32> to vector<1x128xf32>
    %24 = vector.extract_strided_slice %19 {offsets = [4, 0], sizes = [1, 128], strides = [1, 1]} : vector<8x384xf32> to vector<1x128xf32>
    %25 = vector.extract_strided_slice %19 {offsets = [5, 0], sizes = [1, 128], strides = [1, 1]} : vector<8x384xf32> to vector<1x128xf32>
    %26 = vector.extract_strided_slice %19 {offsets = [6, 0], sizes = [1, 128], strides = [1, 1]} : vector<8x384xf32> to vector<1x128xf32>
    %27 = vector.extract_strided_slice %19 {offsets = [7, 0], sizes = [1, 128], strides = [1, 1]} : vector<8x384xf32> to vector<1x128xf32>
    %28 = arith.index_cast %9 : i32 to index
    %c0_8 = arith.constant 0 : index
    %c0_9 = arith.constant 0 : index
    %29 = vector.load %arg7[%28, %c0_8, %c0_9] : memref<3x128x384xbf16, #tpu.memory_space<vmem>>, vector<1x128x384xbf16>
    %30 = vector.shape_cast %29 : vector<1x128x384xbf16> to vector<128x384xbf16>
    %cst = arith.constant dense<0.000000e+00> : vector<128x384xf32>
    %31 = tpu.matmul %16, %30, %cst {dimension_numbers = #tpu.dot_dimension_numbers<[1], [0], [0], [1], [0, 0, 1, 1], [], []>} : vector<128x128xbf16>, vector<128x384xbf16>, vector<128x384xf32> -> vector<128x384xf32>
    %32 = vector.broadcast %20 : vector<1x384xf32> to vector<128x384xf32>
    %33 = arith.addf %31, %32 : vector<128x384xf32>
    %34 = vector.extract_strided_slice %33 {offsets = [0, 0], sizes = [128, 128], strides = [1, 1]} : vector<128x384xf32> to vector<128x128xf32>
    %cst_10 = arith.constant 1.250000e-01 : f32
    %35 = vector.broadcast %cst_10 : f32 to vector<128x128xf32>
    %36 = arith.mulf %34, %35 : vector<128x128xf32>
    %37 = vector.extract_strided_slice %33 {offsets = [0, 128], sizes = [128, 128], strides = [1, 1]} : vector<128x384xf32> to vector<128x128xf32>
    %38 = vector.extract_strided_slice %33 {offsets = [0, 256], sizes = [128, 128], strides = [1, 1]} : vector<128x384xf32> to vector<128x128xf32>
    %39 = arith.truncf %36 : vector<128x128xf32> to vector<128x128xbf16>
    %40 = arith.truncf %37 : vector<128x128xf32> to vector<128x128xbf16>
    %41 = arith.truncf %38 : vector<128x128xf32> to vector<128x128xbf16>
    %42 = vector.extract_strided_slice %39 {offsets = [0, 0], sizes = [128, 64], strides = [1, 1]} : vector<128x128xbf16> to vector<128x64xbf16>
    %43 = vector.extract_strided_slice %39 {offsets = [0, 64], sizes = [128, 64], strides = [1, 1]} : vector<128x128xbf16> to vector<128x64xbf16>
    %44 = vector.shape_cast %42 : vector<128x64xbf16> to vector<1x128x64xbf16>
    %45 = vector.shape_cast %43 : vector<128x64xbf16> to vector<1x128x64xbf16>
    %46 = tpu.concatenate %44, %45 in 0 : vector<1x128x64xbf16>, vector<1x128x64xbf16> -> vector<2x128x64xbf16>
    %47 = vector.extract_strided_slice %40 {offsets = [0, 0], sizes = [128, 64], strides = [1, 1]} : vector<128x128xbf16> to vector<128x64xbf16>
    %48 = vector.extract_strided_slice %40 {offsets = [0, 64], sizes = [128, 64], strides = [1, 1]} : vector<128x128xbf16> to vector<128x64xbf16>
    %49 = vector.shape_cast %47 : vector<128x64xbf16> to vector<1x128x64xbf16>
    %50 = vector.shape_cast %48 : vector<128x64xbf16> to vector<1x128x64xbf16>
    %51 = tpu.concatenate %49, %50 in 0 : vector<1x128x64xbf16>, vector<1x128x64xbf16> -> vector<2x128x64xbf16>
    %52 = vector.extract_strided_slice %41 {offsets = [0, 0], sizes = [128, 64], strides = [1, 1]} : vector<128x128xbf16> to vector<128x64xbf16>
    %53 = vector.extract_strided_slice %41 {offsets = [0, 64], sizes = [128, 64], strides = [1, 1]} : vector<128x128xbf16> to vector<128x64xbf16>
    %54 = vector.shape_cast %52 : vector<128x64xbf16> to vector<1x128x64xbf16>
    %55 = vector.shape_cast %53 : vector<128x64xbf16> to vector<1x128x64xbf16>
    %56 = tpu.concatenate %54, %55 in 0 : vector<1x128x64xbf16>, vector<1x128x64xbf16> -> vector<2x128x64xbf16>
    "tpu.trace_start"() <{level = 10 : i32, message = "hqd,hkd->hqk"}> : () -> ()
    %cst_11 = arith.constant dense<0.000000e+00> : vector<2x128x128xf32>
    %57 = tpu.matmul %46, %51, %cst_11 {dimension_numbers = #tpu.dot_dimension_numbers<[2], [2], [1], [1], [0, 0, 0, 1, 1, 1], [0], [0]>} : vector<2x128x64xbf16>, vector<2x128x64xbf16>, vector<2x128x128xf32> -> vector<2x128x128xf32>
    "tpu.trace_stop"() : () -> ()
    %58 = arith.index_cast %9 : i32 to index
    %c0_12 = arith.constant 0 : index
    %c0_13 = arith.constant 0 : index
    %c0_14 = arith.constant 0 : index
    %59 = vector.load %arg9[%58, %c0_12, %c0_13, %c0_14] : memref<3x2x256x64xbf16, #tpu.memory_space<vmem>>, vector<1x2x256x64xbf16>
    %60 = vector.shape_cast %59 : vector<1x2x256x64xbf16> to vector<2x256x64xbf16>
    "tpu.trace_start"() <{level = 10 : i32, message = "hqd,hrd->hqr"}> : () -> ()
    %cst_15 = arith.constant dense<0.000000e+00> : vector<2x128x256xf32>
    %61 = tpu.matmul %46, %60, %cst_15 {dimension_numbers = #tpu.dot_dimension_numbers<[2], [2], [1], [1], [0, 0, 0, 1, 1, 1], [0], [0]>} : vector<2x128x64xbf16>, vector<2x256x64xbf16>, vector<2x128x256xf32> -> vector<2x128x256xf32>
    "tpu.trace_stop"() : () -> ()
    %62 = vector.extract_strided_slice %61 {offsets = [0, 0, 0], sizes = [1, 128, 256], strides = [1, 1, 1]} : vector<2x128x256xf32> to vector<1x128x256xf32>
    %63 = vector.shape_cast %62 : vector<1x128x256xf32> to vector<128x256xf32>
    %c0_i32_16 = arith.constant 0 : i32
    %64 = tpu.dynamic_rotate %63 by %c0_i32_16 dim 1 {stride = 1 : si32, stride_dimension = 0 : si32} : vector<128x256xf32>, i32 -> vector<128x256xf32>
    %65 = vector.extract_strided_slice %64 {offsets = [0, 127], sizes = [128, 128], strides = [1, 1]} : vector<128x256xf32> to vector<128x128xf32>
    %66 = vector.extract_strided_slice %61 {offsets = [1, 0, 0], sizes = [1, 128, 256], strides = [1, 1, 1]} : vector<2x128x256xf32> to vector<1x128x256xf32>
    %67 = vector.shape_cast %66 : vector<1x128x256xf32> to vector<128x256xf32>
    %c0_i32_17 = arith.constant 0 : i32
    %68 = tpu.dynamic_rotate %67 by %c0_i32_17 dim 1 {stride = 1 : si32, stride_dimension = 0 : si32} : vector<128x256xf32>, i32 -> vector<128x256xf32>
    %69 = vector.extract_strided_slice %68 {offsets = [0, 127], sizes = [128, 128], strides = [1, 1]} : vector<128x256xf32> to vector<128x128xf32>
    %70 = vector.shape_cast %65 : vector<128x128xf32> to vector<1x128x128xf32>
    %71 = vector.shape_cast %69 : vector<128x128xf32> to vector<1x128x128xf32>
    %72 = tpu.concatenate %70, %71 in 0 : vector<1x128x128xf32>, vector<1x128x128xf32> -> vector<2x128x128xf32>
    %73 = arith.addf %57, %72 : vector<2x128x128xf32>
    %cst_18 = arith.constant dense<0xFF800000> : vector<2x128xf32>
    %74 = vector.multi_reduction <maximumf>, %73, %cst_18 [2] : vector<2x128x128xf32> to vector<2x128xf32>
    %75 = vector.shape_cast %74 : vector<2x128xf32> to vector<2x128x1xf32>
    %76 = vector.broadcast %75 : vector<2x128x1xf32> to vector<2x128x128xf32>
    %77 = arith.subf %73, %76 : vector<2x128x128xf32>
    %78 = math.exp %77 : vector<2x128x128xf32>
    %cst_19 = arith.constant dense<0.000000e+00> : vector<2x128xf32>
    %79 = vector.multi_reduction <add>, %78, %cst_19 [2] : vector<2x128x128xf32> to vector<2x128xf32>
    %80 = vector.shape_cast %79 : vector<2x128xf32> to vector<2x128x1xf32>
    %81 = tpu.reciprocal %80 {approx = true} : vector<2x128x1xf32> -> vector<2x128x1xf32>
    %82 = vector.broadcast %81 : vector<2x128x1xf32> to vector<2x128x128xf32>
    %83 = arith.mulf %78, %82 : vector<2x128x128xf32>
    %84 = arith.truncf %83 : vector<2x128x128xf32> to vector<2x128x128xbf16>
    "tpu.trace_start"() <{level = 10 : i32, message = "hqk,hkd->hqd"}> : () -> ()
    %cst_20 = arith.constant dense<0.000000e+00> : vector<2x128x64xf32>
    %85 = tpu.matmul %84, %56, %cst_20 {dimension_numbers = #tpu.dot_dimension_numbers<[2], [1], [1], [2], [0, 0, 0, 1, 1, 2], [0], [0]>} : vector<2x128x128xbf16>, vector<2x128x64xbf16>, vector<2x128x64xf32> -> vector<2x128x64xf32>
    "tpu.trace_stop"() : () -> ()
    %86 = vector.extract_strided_slice %85 {offsets = [0, 0, 0], sizes = [1, 128, 64], strides = [1, 1, 1]} : vector<2x128x64xf32> to vector<1x128x64xf32>
    %87 = vector.shape_cast %86 : vector<1x128x64xf32> to vector<128x64xf32>
    %88 = vector.extract_strided_slice %85 {offsets = [1, 0, 0], sizes = [1, 128, 64], strides = [1, 1, 1]} : vector<2x128x64xf32> to vector<1x128x64xf32>
    %89 = vector.shape_cast %88 : vector<1x128x64xf32> to vector<128x64xf32>
    %90 = tpu.concatenate %87, %89 in 1 : vector<128x64xf32>, vector<128x64xf32> -> vector<128x128xf32>
    %91 = arith.truncf %90 : vector<128x128xf32> to vector<128x128xbf16>
    %92 = arith.index_cast %9 : i32 to index
    %c0_21 = arith.constant 0 : index
    %c0_22 = arith.constant 0 : index
    %93 = vector.load %arg8[%92, %c0_21, %c0_22] : memref<3x128x128xbf16, #tpu.memory_space<vmem>>, vector<1x128x128xbf16>
    %94 = vector.shape_cast %93 : vector<1x128x128xbf16> to vector<128x128xbf16>
    %cst_23 = arith.constant dense<0.000000e+00> : vector<128x128xf32>
    %95 = tpu.matmul %91, %94, %cst_23 {dimension_numbers = #tpu.dot_dimension_numbers<[1], [0], [0], [1], [0, 0, 1, 1], [], []>} : vector<128x128xbf16>, vector<128x128xbf16>, vector<128x128xf32> -> vector<128x128xf32>
    %96 = vector.broadcast %21 : vector<1x128xf32> to vector<128x128xf32>
    %97 = arith.addf %95, %96 : vector<128x128xf32>
    %98 = arith.addf %15, %97 : vector<128x128xf32>
    %cst_24 = arith.constant dense<0.000000e+00> : vector<128xf32>
    %99 = vector.multi_reduction <add>, %98, %cst_24 [1] : vector<128x128xf32> to vector<128xf32>
    %100 = vector.shape_cast %99 : vector<128xf32> to vector<128x1xf32>
    %cst_25 = arith.constant 1.280000e+02 : f32
    %101 = vector.broadcast %cst_25 : f32 to vector<128x1xf32>
    %102 = arith.divf %100, %101 : vector<128x1xf32>
    %103 = vector.broadcast %102 : vector<128x1xf32> to vector<128x128xf32>
    %104 = arith.subf %98, %103 : vector<128x128xf32>
    %105 = arith.mulf %104, %104 : vector<128x128xf32>
    %cst_26 = arith.constant dense<0.000000e+00> : vector<128xf32>
    %106 = vector.multi_reduction <add>, %105, %cst_26 [1] : vector<128x128xf32> to vector<128xf32>
    %107 = vector.shape_cast %106 : vector<128xf32> to vector<128x1xf32>
    %cst_27 = arith.constant 1.280000e+02 : f32
    %108 = vector.broadcast %cst_27 : f32 to vector<128x1xf32>
    %109 = arith.divf %107, %108 : vector<128x1xf32>
    %110 = vector.broadcast %102 : vector<128x1xf32> to vector<128x128xf32>
    %111 = arith.subf %98, %110 : vector<128x128xf32>
    %cst_28 = arith.constant 9.99999974E-6 : f32
    %112 = vector.broadcast %cst_28 : f32 to vector<128x1xf32>
    %113 = arith.addf %109, %112 : vector<128x1xf32>
    %114 = math.rsqrt %113 : vector<128x1xf32>
    %115 = vector.broadcast %114 : vector<128x1xf32> to vector<128x128xf32>
    %116 = arith.mulf %111, %115 : vector<128x128xf32>
    %117 = vector.broadcast %24 : vector<1x128xf32> to vector<128x128xf32>
    %118 = arith.mulf %116, %117 : vector<128x128xf32>
    %119 = vector.broadcast %25 : vector<1x128xf32> to vector<128x128xf32>
    %120 = arith.addf %118, %119 : vector<128x128xf32>
    %121 = arith.truncf %120 : vector<128x128xf32> to vector<128x128xbf16>
    %122 = arith.index_cast %9 : i32 to index
    %c0_29 = arith.constant 0 : index
    %c0_30 = arith.constant 0 : index
    %123 = vector.load %arg10[%122, %c0_29, %c0_30] : memref<3x128x200xbf16, #tpu.memory_space<vmem>>, vector<1x128x200xbf16>
    %124 = vector.shape_cast %123 : vector<1x128x200xbf16> to vector<128x200xbf16>
    %cst_31 = arith.constant dense<0.000000e+00> : vector<128x200xf32>
    %125 = tpu.matmul %121, %124, %cst_31 {dimension_numbers = #tpu.dot_dimension_numbers<[1], [0], [0], [1], [0, 0, 1, 1], [], []>} : vector<128x128xbf16>, vector<128x200xbf16>, vector<128x200xf32> -> vector<128x200xf32>
    %126 = vector.broadcast %22 : vector<1x200xf32> to vector<128x200xf32>
    %127 = arith.addf %125, %126 : vector<128x200xf32>
    %cst_32 = arith.constant 0.000000e+00 : f32
    %128 = vector.broadcast %cst_32 : f32 to vector<128x200xf32>
    %129 = arith.maximumf %127, %128 : vector<128x200xf32>
    %130 = arith.truncf %129 : vector<128x200xf32> to vector<128x200xbf16>
    %131 = arith.index_cast %9 : i32 to index
    %c0_33 = arith.constant 0 : index
    %c0_34 = arith.constant 0 : index
    %132 = vector.load %arg11[%131, %c0_33, %c0_34] : memref<3x200x128xbf16, #tpu.memory_space<vmem>>, vector<1x200x128xbf16>
    %133 = vector.shape_cast %132 : vector<1x200x128xbf16> to vector<200x128xbf16>
    %cst_35 = arith.constant dense<0.000000e+00> : vector<128x128xf32>
    %134 = tpu.matmul %130, %133, %cst_35 {dimension_numbers = #tpu.dot_dimension_numbers<[1], [0], [0], [1], [0, 0, 1, 1], [], []>} : vector<128x200xbf16>, vector<200x128xbf16>, vector<128x128xf32> -> vector<128x128xf32>
    %135 = vector.broadcast %23 : vector<1x128xf32> to vector<128x128xf32>
    %136 = arith.addf %134, %135 : vector<128x128xf32>
    %137 = arith.addf %120, %136 : vector<128x128xf32>
    %cst_36 = arith.constant dense<0.000000e+00> : vector<128xf32>
    %138 = vector.multi_reduction <add>, %137, %cst_36 [1] : vector<128x128xf32> to vector<128xf32>
    %139 = vector.shape_cast %138 : vector<128xf32> to vector<128x1xf32>
    %cst_37 = arith.constant 1.280000e+02 : f32
    %140 = vector.broadcast %cst_37 : f32 to vector<128x1xf32>
    %141 = arith.divf %139, %140 : vector<128x1xf32>
    %142 = vector.broadcast %141 : vector<128x1xf32> to vector<128x128xf32>
    %143 = arith.subf %137, %142 : vector<128x128xf32>
    %144 = arith.mulf %143, %143 : vector<128x128xf32>
    %cst_38 = arith.constant dense<0.000000e+00> : vector<128xf32>
    %145 = vector.multi_reduction <add>, %144, %cst_38 [1] : vector<128x128xf32> to vector<128xf32>
    %146 = vector.shape_cast %145 : vector<128xf32> to vector<128x1xf32>
    %cst_39 = arith.constant 1.280000e+02 : f32
    %147 = vector.broadcast %cst_39 : f32 to vector<128x1xf32>
    %148 = arith.divf %146, %147 : vector<128x1xf32>
    %149 = vector.broadcast %141 : vector<128x1xf32> to vector<128x128xf32>
    %150 = arith.subf %137, %149 : vector<128x128xf32>
    %cst_40 = arith.constant 9.99999974E-6 : f32
    %151 = vector.broadcast %cst_40 : f32 to vector<128x1xf32>
    %152 = arith.addf %148, %151 : vector<128x1xf32>
    %153 = math.rsqrt %152 : vector<128x1xf32>
    %154 = vector.broadcast %153 : vector<128x1xf32> to vector<128x128xf32>
    %155 = arith.mulf %150, %154 : vector<128x128xf32>
    %156 = vector.broadcast %26 : vector<1x128xf32> to vector<128x128xf32>
    %157 = arith.mulf %155, %156 : vector<128x128xf32>
    %158 = vector.broadcast %27 : vector<1x128xf32> to vector<128x128xf32>
    %159 = arith.addf %157, %158 : vector<128x128xf32>
    %160 = arith.index_cast %arg1 : i32 to index
    %c0_41 = arith.constant 0 : index
    %c0_42 = arith.constant 0 : index
    %161 = vector.load %arg14[%160, %c0_41, %c0_42] : memref<2x128x128xf32, #tpu.memory_space<vmem>>, vector<1x128x128xf32>
    %162 = vector.shape_cast %161 : vector<1x128x128xf32> to vector<128x128xf32>
    %163 = vector.shape_cast %159 : vector<128x128xf32> to vector<1x128x128xf32>
    tpu.vector_store %arg14[%160, %c0_41, %c0_42], %163 {strides = array<i32>} : memref<2x128x128xf32, #tpu.memory_space<vmem>>, vector<1x128x128xf32>,
    %c8_i32 = arith.constant 8 : i32
    %164 = arith.cmpi eq, %arg0, %c8_i32 : i32
    %165 = arith.extui %164 : i1 to i32
    %c0_i32_43 = arith.constant 0 : i32
    %166 = arith.cmpi ne, %165, %c0_i32_43 : i32
    scf.if %166 {
      %167 = arith.truncf %159 : vector<128x128xf32> to vector<128x128xbf16>
      %c0_44 = arith.constant 0 : index
      %c0_45 = arith.constant 0 : index
      %168 = vector.load %arg5[%c0_44, %c0_45] : memref<128x128xbf16, #tpu.memory_space<vmem>>, vector<128x128xbf16>
      %cst_46 = arith.constant dense<0.000000e+00> : vector<128x128xf32>
      %169 = tpu.matmul %167, %168, %cst_46 {dimension_numbers = #tpu.dot_dimension_numbers<[1], [0], [0], [1], [0, 0, 1, 1], [], []>} : vector<128x128xbf16>, vector<128x128xbf16>, vector<128x128xf32> -> vector<128x128xf32>
      %c0_47 = arith.constant 0 : index
      %c0_48 = arith.constant 0 : index
      %170 = vector.load %arg6[%c0_47, %c0_48] : memref<1x128xf32, #tpu.memory_space<vmem>>, vector<1x128xf32>
      %171 = vector.broadcast %170 : vector<1x128xf32> to vector<128x128xf32>
      %172 = arith.addf %169, %171 : vector<128x128xf32>
      %c0_49 = arith.constant 0 : index
      %c0_50 = arith.constant 0 : index
      %c0_51 = arith.constant 0 : index
      %173 = vector.load %arg13[%c0_49, %c0_50, %c0_51] : memref<1x128x128xf32, #tpu.memory_space<vmem>>, vector<1x128x128xf32>
      %174 = vector.shape_cast %173 : vector<1x128x128xf32> to vector<128x128xf32>
      %175 = vector.shape_cast %172 : vector<128x128xf32> to vector<1x128x128xf32>
      tpu.vector_store %arg13[%c0_49, %c0_50, %c0_51], %175 {strides = array<i32>} : memref<1x128x128xf32, #tpu.memory_space<vmem>>, vector<1x128x128xf32>,
    } else {
    }
    return
  }
  func.func @transform_0(%arg0: i32, %arg1: i32) -> (i32, i32, i32) {
    %c0_i32 = arith.constant 0 : i32
    %c0_i32_0 = arith.constant 0 : i32
    %c0_i32_1 = arith.constant 0 : i32
    return %arg1, %c0_i32, %c0_i32_0 : i32, i32, i32
  }
  func.func @transform_1(%arg0: i32, %arg1: i32) -> (i32, i32) {
    %c0_i32 = arith.constant 0 : i32
    %c0_i32_0 = arith.constant 0 : i32
    %c0_i32_1 = arith.constant 0 : i32
    return %c0_i32, %c0_i32_0 : i32, i32
  }
  func.func @transform_2(%arg0: i32, %arg1: i32) -> (i32, i32) {
    %c0_i32 = arith.constant 0 : i32
    %c0_i32_0 = arith.constant 0 : i32
    %c0_i32_1 = arith.constant 0 : i32
    return %c0_i32, %c0_i32_0 : i32, i32
  }
  func.func @transform_3(%arg0: i32, %arg1: i32) -> (i32, i32) {
    %c0_i32 = arith.constant 0 : i32
    %c0_i32_0 = arith.constant 0 : i32
    %c0_i32_1 = arith.constant 0 : i32
    return %c0_i32, %c0_i32_0 : i32, i32
  }
  func.func @transform_4(%arg0: i32, %arg1: i32) -> (i32, i32) {
    %c0_i32 = arith.constant 0 : i32
    %c0_i32_0 = arith.constant 0 : i32
    %c0_i32_1 = arith.constant 0 : i32
    return %c0_i32, %c0_i32_0 : i32, i32
  }
  func.func @transform_5(%arg0: i32, %arg1: i32) -> (i32, i32, i32) {
    %c0_i32 = arith.constant 0 : i32
    %c0_i32_0 = arith.constant 0 : i32
    %c0_i32_1 = arith.constant 0 : i32
    %c0_i32_2 = arith.constant 0 : i32
    return %c0_i32, %c0_i32_0, %c0_i32_1 : i32, i32, i32
  }
  func.func @transform_6(%arg0: i32, %arg1: i32) -> (i32, i32, i32) {
    %c0_i32 = arith.constant 0 : i32
    %c0_i32_0 = arith.constant 0 : i32
    %c0_i32_1 = arith.constant 0 : i32
    %c0_i32_2 = arith.constant 0 : i32
    return %c0_i32, %c0_i32_0, %c0_i32_1 : i32, i32, i32
  }
  func.func @transform_7(%arg0: i32, %arg1: i32) -> (i32, i32, i32, i32) {
    %c0_i32 = arith.constant 0 : i32
    %c0_i32_0 = arith.constant 0 : i32
    %c0_i32_1 = arith.constant 0 : i32
    %c0_i32_2 = arith.constant 0 : i32
    %c0_i32_3 = arith.constant 0 : i32
    return %c0_i32, %c0_i32_0, %c0_i32_1, %c0_i32_2 : i32, i32, i32, i32
  }
  func.func @transform_8(%arg0: i32, %arg1: i32) -> (i32, i32, i32) {
    %c0_i32 = arith.constant 0 : i32
    %c0_i32_0 = arith.constant 0 : i32
    %c0_i32_1 = arith.constant 0 : i32
    %c0_i32_2 = arith.constant 0 : i32
    return %c0_i32, %c0_i32_0, %c0_i32_1 : i32, i32, i32
  }
  func.func @transform_9(%arg0: i32, %arg1: i32) -> (i32, i32, i32) {
    %c0_i32 = arith.constant 0 : i32
    %c0_i32_0 = arith.constant 0 : i32
    %c0_i32_1 = arith.constant 0 : i32
    %c0_i32_2 = arith.constant 0 : i32
    return %c0_i32, %c0_i32_0, %c0_i32_1 : i32, i32, i32
  }
  func.func @transform_10(%arg0: i32, %arg1: i32) -> (i32, i32, i32) {
    %c0_i32 = arith.constant 0 : i32
    %c0_i32_0 = arith.constant 0 : i32
    %c0_i32_1 = arith.constant 0 : i32
    %c0_i32_2 = arith.constant 0 : i32
    return %c0_i32, %c0_i32_0, %c0_i32_1 : i32, i32, i32
  }
  func.func @transform_11(%arg0: i32, %arg1: i32) -> (i32, i32, i32) {
    %c8_i32 = arith.constant 8 : i32
    %0 = arith.cmpi eq, %arg0, %c8_i32 : i32
    %c0_i32 = arith.constant 0 : i32
    %1 = arith.select %0, %arg1, %c0_i32 : i32
    %c0_i32_0 = arith.constant 0 : i32
    %c0_i32_1 = arith.constant 0 : i32
    %c0_i32_2 = arith.constant 0 : i32
    return %1, %c0_i32_0, %c0_i32_1 : i32, i32, i32
  }
}

</mosaic_0001>

<llo_original>
// kernel: tpu_custom_call.1
$region0: #{tpu_custom_call.1}
  #allocation0 [shape = 'u32[]', space=smem, size = 0x4, offset = 0x4, fixed_abs, tag = 'smem constant byte address 0x4 - core index']
  #allocation1 [shape = 'u32[144,128]{1,0:T(1,128)}', space=vmem, size = 0x12000, scoped, tag = 'internal scratch']
  #allocation2 [shape = 'f32[2,128,128]{2,1,0:T(8,128)}', space=vmem, size = 0x20000, scoped, tag = 'scratch operand']
  %s0 = inlined_call_operand.vmem [shape: f32[2,128,16], index: 0, kind: input, shape index: {}]
  %s1 = inlined_call_operand.vmem [shape: bf16[16,128], index: 1, kind: input, shape index: {}]
  %s2 = inlined_call_operand.vmem [shape: f32[1,128], index: 2, kind: input, shape index: {}]
  %s3 = inlined_call_operand.vmem [shape: bf16[128,128], index: 3, kind: input, shape index: {}]
  %s4 = inlined_call_operand.vmem [shape: f32[1,128], index: 4, kind: input, shape index: {}]
  %s5 = inlined_call_operand.vmem [shape: bf16[3,128,384], index: 5, kind: input, shape index: {}]
  %s6 = inlined_call_operand.vmem [shape: bf16[3,128,128], index: 6, kind: input, shape index: {}]
  %s7 = inlined_call_operand.vmem [shape: bf16[3,2,256,64], index: 7, kind: input, shape index: {}]
  %s8 = inlined_call_operand.vmem [shape: bf16[3,128,200], index: 8, kind: input, shape index: {}]
  %s9 = inlined_call_operand.vmem [shape: bf16[3,200,128], index: 9, kind: input, shape index: {}]
  %s10 = inlined_call_operand.vmem [shape: f32[3,8,384], index: 10, kind: input, shape index: {}]
  %s11 = inlined_call_operand.hbm [shape: f32[2,128,128], index: 11, kind: output, shape index: {}]
  %s12 = sld [smem:[#allocation0]]
  $region85: #{tpu_custom_call.1} parent=0
    _
  %s14 = ssub.s32 1, %s12
  %s15 = scalar_select 0, %s14, %s12
  $region1: #{tpu_custom_call.1} parent=0
    #allocation3 [shape = 'u8[131072]{0}', space=vmem, size = 0x20000, scoped, tag = 'output window, operand 0']
    #allocation4 [shape = 's32[2]{0}', space=sflag, size = 0x8, scoped, tag = 'scoped memory for tpu_custom_call.1']
    %16 = vsyncpa [#allocation4], 0
    %s17 = scalar_lea.sflag [#allocation4], 1
    %18 = vsyncpa %s17, 0
    loop: start=0, step=1, limit=20
    $region2: #{tpu_custom_call.1} parent=1 // loop_pre_header
      _
    $region3: #{tpu_custom_call.1} parent=1 // loop_header
      %s20 = sphi 0, %s24
      %p21 = scmp.ge.s32.totalorder %s20, 20
      %s27 = sphi 0, %s39
      %s28 = sphi 0, %s35
      %s29 = sphi 0, %s27
      %s30 = sphi 0, %s28
      %s31 = sphi 0, %s29
      %s32 = sphi 0, %s30
      %s42 = sphi 0, %s44
      %s45 = sphi 0, %s42
      %s46 = sphi 0, %s45
      %s62 = sphi 0, %s46
      %s66 = sphi 0, %s66
      %s68 = sphi 0, %s66
      %s69 = sphi 0, %s68
      %s83 = sphi 0, %s69
      %s87 = sphi 0, %s87
      %s89 = sphi 0, %s87
      %s90 = sphi 0, %s89
      %s104 = sphi 0, %s90
      %s108 = sphi 0, %s108
      %s110 = sphi 0, %s108
      %s111 = sphi 0, %s110
      %s125 = sphi 0, %s111
      %s129 = sphi 0, %s129
      %s131 = sphi 0, %s129
      %s132 = sphi 0, %s131
      %s146 = sphi 0, %s132
      %s150 = sphi 0, %s150
      %s152 = sphi 0, %s150
      %s153 = sphi 0, %s152
      %s167 = sphi 0, %s153
      %s171 = sphi 0, %s171
      %s173 = sphi 0, %s171
      %s174 = sphi 0, %s173
      %s188 = sphi 0, %s174
      %s192 = sphi 0, %s192
      %s194 = sphi 0, %s192
      %s195 = sphi 0, %s194
      %s209 = sphi 0, %s195
      %s213 = sphi 0, %s213
      %s215 = sphi 0, %s213
      %s216 = sphi 0, %s215
      %s230 = sphi 0, %s216
      %s234 = sphi 0, %s234
      %s236 = sphi 0, %s234
      %s237 = sphi 0, %s236
      %s251 = sphi 0, %s237
      %s255 = sphi 0, %s255
      %s257 = sphi 0, %s255
      %s258 = sphi 0, %s257
      %s272 = sphi 0, %s258
      %s282 = sphi 0, %s284
      %s285 = sphi 0, %s282
      %s286 = sphi 0, %s285
      %s302 = sphi 0, %s286
    $region4: #{tpu_custom_call.1} parent=1 // loop_header_branch
      %23 = sbr.rel (%p21) target = $region8
    $region5: #{tpu_custom_call.1} parent=1 // loop_body
      %s25 = ssub.s32 %s20, 1
      %s26 = ssub.s32 %s20, 2
      %s33 = sadd.s32 1, %s28
      %p34 = scmp.ge.s32.totalorder %s33, 2
      %s35 = scalar_select %p34, 0, %s33
      %s36 = sadd.s32 1, %s27
      %s37 = scalar_select %p34, %s36, %s27
      %p38 = scmp.ge.s32.totalorder %s37, 9
      %s39 = scalar_select %p38, 0, %s37
      %s40 = ssub.s32 %s28, %s35
      %p41 = scmp.eq.s32.totalorder %s40, 0
      %s43 = sadd.s32 %s42, 1
      %s44 = scalar_select %p41, %s42, %s43
      %p47 = pneg %p41
      %p48 = scmp.eq.s32.totalorder %s20, 17
      %p49 = por %p47, %p48
      %p50 = scmp.ne.s32.totalorder %s42, %s45
      %p51 = scmp.eq.s32.totalorder %s20, 0
      %p52 = por %p50, %p51
      %p53 = scmp.ne.s32.totalorder %s42, %s45
      %p54 = scmp.eq.s32.totalorder %s25, 17
      %p55 = por %p53, %p54
      %p56 = scmp.ne.s32.totalorder %s45, %s46
      %p57 = scmp.eq.s32.totalorder %s25, 0
      %p58 = por %p56, %p57
      %p59 = scmp.ne.s32.totalorder %s45, %s46
      %p60 = scmp.eq.s32.totalorder %s26, 17
      %p61 = por %p59, %p60
      %p63 = scmp.ne.s32.totalorder %s46, %s62
      %p64 = scmp.eq.s32.totalorder %s26, 0
      %p65 = por %p63, %p64
      %s67 = sadd.s32 %s66, 1
      %p70 = scmp.eq.s32.totalorder %s20, 17
      %p71 = scmp.ne.s32.totalorder %s66, %s68
      %p72 = scmp.eq.s32.totalorder %s20, 0
      %p73 = por %p71, %p72
      %p74 = scmp.ne.s32.totalorder %s66, %s68
      %p75 = scmp.eq.s32.totalorder %s25, 17
      %p76 = por %p74, %p75
      %p77 = scmp.ne.s32.totalorder %s68, %s69
      %p78 = scmp.eq.s32.totalorder %s25, 0
      %p79 = por %p77, %p78
      %p80 = scmp.ne.s32.totalorder %s68, %s69
      %p81 = scmp.eq.s32.totalorder %s26, 17
      %p82 = por %p80, %p81
      %p84 = scmp.ne.s32.totalorder %s69, %s83
      %p85 = scmp.eq.s32.totalorder %s26, 0
      %p86 = por %p84, %p85
      %s88 = sadd.s32 %s87, 1
      %p91 = scmp.eq.s32.totalorder %s20, 17
      %p92 = scmp.ne.s32.totalorder %s87, %s89
      %p93 = scmp.eq.s32.totalorder %s20, 0
      %p94 = por %p92, %p93
      %p95 = scmp.ne.s32.totalorder %s87, %s89
      %p96 = scmp.eq.s32.totalorder %s25, 17
      %p97 = por %p95, %p96
      %p98 = scmp.ne.s32.totalorder %s89, %s90
      %p99 = scmp.eq.s32.totalorder %s25, 0
      %p100 = por %p98, %p99
      %p101 = scmp.ne.s32.totalorder %s89, %s90
      %p102 = scmp.eq.s32.totalorder %s26, 17
      %p103 = por %p101, %p102
      %p105 = scmp.ne.s32.totalorder %s90, %s104
      %p106 = scmp.eq.s32.totalorder %s26, 0
      %p107 = por %p105, %p106
      %s109 = sadd.s32 %s108, 1
      %p112 = scmp.eq.s32.totalorder %s20, 17
      %p113 = scmp.ne.s32.totalorder %s108, %s110
      %p114 = scmp.eq.s32.totalorder %s20, 0
      %p115 = por %p113, %p114
      %p116 = scmp.ne.s32.totalorder %s108, %s110
      %p117 = scmp.eq.s32.totalorder %s25, 17
      %p118 = por %p116, %p117
      %p119 = scmp.ne.s32.totalorder %s110, %s111
      %p120 = scmp.eq.s32.totalorder %s25, 0
      %p121 = por %p119, %p120
      %p122 = scmp.ne.s32.totalorder %s110, %s111
      %p123 = scmp.eq.s32.totalorder %s26, 17
      %p124 = por %p122, %p123
      %p126 = scmp.ne.s32.totalorder %s111, %s125
      %p127 = scmp.eq.s32.totalorder %s26, 0
      %p128 = por %p126, %p127
      %s130 = sadd.s32 %s129, 1
      %p133 = scmp.eq.s32.totalorder %s20, 17
      %p134 = scmp.ne.s32.totalorder %s129, %s131
      %p135 = scmp.eq.s32.totalorder %s20, 0
      %p136 = por %p134, %p135
      %p137 = scmp.ne.s32.totalorder %s129, %s131
      %p138 = scmp.eq.s32.totalorder %s25, 17
      %p139 = por %p137, %p138
      %p140 = scmp.ne.s32.totalorder %s131, %s132
      %p141 = scmp.eq.s32.totalorder %s25, 0
      %p142 = por %p140, %p141
      %p143 = scmp.ne.s32.totalorder %s131, %s132
      %p144 = scmp.eq.s32.totalorder %s26, 17
      %p145 = por %p143, %p144
      %p147 = scmp.ne.s32.totalorder %s132, %s146
      %p148 = scmp.eq.s32.totalorder %s26, 0
      %p149 = por %p147, %p148
      %s151 = sadd.s32 %s150, 1
      %p154 = scmp.eq.s32.totalorder %s20, 17
      %p155 = scmp.ne.s32.totalorder %s150, %s152
      %p156 = scmp.eq.s32.totalorder %s20, 0
      %p157 = por %p155, %p156
      %p158 = scmp.ne.s32.totalorder %s150, %s152
      %p159 = scmp.eq.s32.totalorder %s25, 17
      %p160 = por %p158, %p159
      %p161 = scmp.ne.s32.totalorder %s152, %s153
      %p162 = scmp.eq.s32.totalorder %s25, 0
      %p163 = por %p161, %p162
      %p164 = scmp.ne.s32.totalorder %s152, %s153
      %p165 = scmp.eq.s32.totalorder %s26, 17
      %p166 = por %p164, %p165
      %p168 = scmp.ne.s32.totalorder %s153, %s167
      %p169 = scmp.eq.s32.totalorder %s26, 0
      %p170 = por %p168, %p169
      %s172 = sadd.s32 %s171, 1
      %p175 = scmp.eq.s32.totalorder %s20, 17
      %p176 = scmp.ne.s32.totalorder %s171, %s173
      %p177 = scmp.eq.s32.totalorder %s20, 0
      %p178 = por %p176, %p177
      %p179 = scmp.ne.s32.totalorder %s171, %s173
      %p180 = scmp.eq.s32.totalorder %s25, 17
      %p181 = por %p179, %p180
      %p182 = scmp.ne.s32.totalorder %s173, %s174
      %p183 = scmp.eq.s32.totalorder %s25, 0
      %p184 = por %p182, %p183
      %p185 = scmp.ne.s32.totalorder %s173, %s174
      %p186 = scmp.eq.s32.totalorder %s26, 17
      %p187 = por %p185, %p186
      %p189 = scmp.ne.s32.totalorder %s174, %s188
      %p190 = scmp.eq.s32.totalorder %s26, 0
      %p191 = por %p189, %p190
      %s193 = sadd.s32 %s192, 1
      %p196 = scmp.eq.s32.totalorder %s20, 17
      %p197 = scmp.ne.s32.totalorder %s192, %s194
      %p198 = scmp.eq.s32.totalorder %s20, 0
      %p199 = por %p197, %p198
      %p200 = scmp.ne.s32.totalorder %s192, %s194
      %p201 = scmp.eq.s32.totalorder %s25, 17
      %p202 = por %p200, %p201
      %p203 = scmp.ne.s32.totalorder %s194, %s195
      %p204 = scmp.eq.s32.totalorder %s25, 0
      %p205 = por %p203, %p204
      %p206 = scmp.ne.s32.totalorder %s194, %s195
      %p207 = scmp.eq.s32.totalorder %s26, 17
      %p208 = por %p206, %p207
      %p210 = scmp.ne.s32.totalorder %s195, %s209
      %p211 = scmp.eq.s32.totalorder %s26, 0
      %p212 = por %p210, %p211
      %s214 = sadd.s32 %s213, 1
      %p217 = scmp.eq.s32.totalorder %s20, 17
      %p218 = scmp.ne.s32.totalorder %s213, %s215
      %p219 = scmp.eq.s32.totalorder %s20, 0
      %p220 = por %p218, %p219
      %p221 = scmp.ne.s32.totalorder %s213, %s215
      %p222 = scmp.eq.s32.totalorder %s25, 17
      %p223 = por %p221, %p222
      %p224 = scmp.ne.s32.totalorder %s215, %s216
      %p225 = scmp.eq.s32.totalorder %s25, 0
      %p226 = por %p224, %p225
      %p227 = scmp.ne.s32.totalorder %s215, %s216
      %p228 = scmp.eq.s32.totalorder %s26, 17
      %p229 = por %p227, %p228
      %p231 = scmp.ne.s32.totalorder %s216, %s230
      %p232 = scmp.eq.s32.totalorder %s26, 0
      %p233 = por %p231, %p232
      %s235 = sadd.s32 %s234, 1
      %p238 = scmp.eq.s32.totalorder %s20, 17
      %p239 = scmp.ne.s32.totalorder %s234, %s236
      %p240 = scmp.eq.s32.totalorder %s20, 0
      %p241 = por %p239, %p240
      %p242 = scmp.ne.s32.totalorder %s234, %s236
      %p243 = scmp.eq.s32.totalorder %s25, 17
      %p244 = por %p242, %p243
      %p245 = scmp.ne.s32.totalorder %s236, %s237
      %p246 = scmp.eq.s32.totalorder %s25, 0
      %p247 = por %p245, %p246
      %p248 = scmp.ne.s32.totalorder %s236, %s237
      %p249 = scmp.eq.s32.totalorder %s26, 17
      %p250 = por %p248, %p249
      %p252 = scmp.ne.s32.totalorder %s237, %s251
      %p253 = scmp.eq.s32.totalorder %s26, 0
      %p254 = por %p252, %p253
      %s256 = sadd.s32 %s255, 1
      %p259 = scmp.eq.s32.totalorder %s20, 17
      %p260 = scmp.ne.s32.totalorder %s255, %s257
      %p261 = scmp.eq.s32.totalorder %s20, 0
      %p262 = por %p260, %p261
      %p263 = scmp.ne.s32.totalorder %s255, %s257
      %p264 = scmp.eq.s32.totalorder %s25, 17
      %p265 = por %p263, %p264
      %p266 = scmp.ne.s32.totalorder %s257, %s258
      %p267 = scmp.eq.s32.totalorder %s25, 0
      %p268 = por %p266, %p267
      %p269 = scmp.ne.s32.totalorder %s257, %s258
      %p270 = scmp.eq.s32.totalorder %s26, 17
      %p271 = por %p269, %p270
      %p273 = scmp.ne.s32.totalorder %s258, %s272
      %p274 = scmp.eq.s32.totalorder %s26, 0
      %p275 = por %p273, %p274
      %p276 = scmp.eq.s32.totalorder %s27, 8
      %s277 = scalar_select %p276, %s28, 0
      %p278 = scmp.eq.s32.totalorder %s39, 8
      %s279 = scalar_select %p278, %s35, 0
      %s280 = ssub.s32 %s277, %s279
      %p281 = scmp.eq.s32.totalorder %s280, 0
      %s283 = sadd.s32 %s282, 1
      %s284 = scalar_select %p281, %s282, %s283
      %p287 = pneg %p281
      %p288 = scmp.eq.s32.totalorder %s20, 17
      %p289 = por %p287, %p288
      %p290 = scmp.ne.s32.totalorder %s282, %s285
      %p291 = scmp.eq.s32.totalorder %s20, 0
      %p292 = por %p290, %p291
      %p293 = scmp.ne.s32.totalorder %s282, %s285
      %p294 = scmp.eq.s32.totalorder %s25, 17
      %p295 = por %p293, %p294
      %p296 = scmp.ne.s32.totalorder %s285, %s286
      %p297 = scmp.eq.s32.totalorder %s25, 0
      %p298 = por %p296, %p297
      %p299 = scmp.ne.s32.totalorder %s285, %s286
      %p300 = scmp.eq.s32.totalorder %s26, 17
      %p301 = por %p299, %p300
      %p303 = scmp.ne.s32.totalorder %s286, %s302
      %p304 = scmp.eq.s32.totalorder %s26, 0
      %p305 = por %p303, %p304
      %p306 = scmp.le.s32.totalorder 1, %s20
      %p307 = scmp.lt.s32.totalorder %s20, 19
      %p308 = pnand %p306, %p307
      %p309 = pneg %p308
      // Predicated region
      $region9: #{tpu_custom_call.1} parent=5 // pred_check
        _
      $region10: #{tpu_custom_call.1} parent=5 // pred_check_branch
        %311 = sbr.rel (%p308) target = $region12
      $region11: #{tpu_custom_call.1} parent=5 // pred_region
        %s312 = ssub.s32 %s20, 1
        // Predicated region
        $region13: #{tpu_custom_call.1} parent=11 // pred_check
          %p313 = pneg %p79
        $region14: #{tpu_custom_call.1} parent=11 // pred_check_branch
          %315 = sbr.rel (%p313) target = $region16
        $region15: #{tpu_custom_call.1} parent=11 // pred_region
          _
        $region16: #{tpu_custom_call.1} parent=11 // pred_fallthru
          _
        // Predicated region
        $region17: #{tpu_custom_call.1} parent=11 // pred_check
          %p316 = pneg %p100
        $region18: #{tpu_custom_call.1} parent=11 // pred_check_branch
          %318 = sbr.rel (%p316) target = $region20
        $region19: #{tpu_custom_call.1} parent=11 // pred_region
          _
        $region20: #{tpu_custom_call.1} parent=11 // pred_fallthru
          _
        // Predicated region
        $region21: #{tpu_custom_call.1} parent=11 // pred_check
          %p319 = pneg %p121
        $region22: #{tpu_custom_call.1} parent=11 // pred_check_branch
          %321 = sbr.rel (%p319) target = $region24
        $region23: #{tpu_custom_call.1} parent=11 // pred_region
          _
        $region24: #{tpu_custom_call.1} parent=11 // pred_fallthru
          _
        // Predicated region
        $region25: #{tpu_custom_call.1} parent=11 // pred_check
          %p322 = pneg %p142
        $region26: #{tpu_custom_call.1} parent=11 // pred_check_branch
          %324 = sbr.rel (%p322) target = $region28
        $region27: #{tpu_custom_call.1} parent=11 // pred_region
          _
        $region28: #{tpu_custom_call.1} parent=11 // pred_fallthru
          _
        // Predicated region
        $region29: #{tpu_custom_call.1} parent=11 // pred_check
          %p325 = pneg %p163
        $region30: #{tpu_custom_call.1} parent=11 // pred_check_branch
          %327 = sbr.rel (%p325) target = $region32
        $region31: #{tpu_custom_call.1} parent=11 // pred_region
          _
        $region32: #{tpu_custom_call.1} parent=11 // pred_fallthru
          _
        // Predicated region
        $region33: #{tpu_custom_call.1} parent=11 // pred_check
          %p328 = pneg %p184
        $region34: #{tpu_custom_call.1} parent=11 // pred_check_branch
          %330 = sbr.rel (%p328) target = $region36
        $region35: #{tpu_custom_call.1} parent=11 // pred_region
          _
        $region36: #{tpu_custom_call.1} parent=11 // pred_fallthru
          _
        // Predicated region
        $region37: #{tpu_custom_call.1} parent=11 // pred_check
          %p331 = pneg %p205
        $region38: #{tpu_custom_call.1} parent=11 // pred_check_branch
          %333 = sbr.rel (%p331) target = $region40
        $region39: #{tpu_custom_call.1} parent=11 // pred_region
          _
        $region40: #{tpu_custom_call.1} parent=11 // pred_fallthru
          _
        // Predicated region
        $region41: #{tpu_custom_call.1} parent=11 // pred_check
          %p334 = pneg %p226
        $region42: #{tpu_custom_call.1} parent=11 // pred_check_branch
          %336 = sbr.rel (%p334) target = $region44
        $region43: #{tpu_custom_call.1} parent=11 // pred_region
          _
        $region44: #{tpu_custom_call.1} parent=11 // pred_fallthru
          _
        // Predicated region
        $region45: #{tpu_custom_call.1} parent=11 // pred_check
          %p337 = pneg %p247
        $region46: #{tpu_custom_call.1} parent=11 // pred_check_branch
          %339 = sbr.rel (%p337) target = $region48
        $region47: #{tpu_custom_call.1} parent=11 // pred_region
          _
        $region48: #{tpu_custom_call.1} parent=11 // pred_fallthru
          _
        // Predicated region
        $region49: #{tpu_custom_call.1} parent=11 // pred_check
          %p340 = pneg %p268
        $region50: #{tpu_custom_call.1} parent=11 // pred_check_branch
          %342 = sbr.rel (%p340) target = $region52
        $region51: #{tpu_custom_call.1} parent=11 // pred_region
          _
        $region52: #{tpu_custom_call.1} parent=11 // pred_fallthru
          _
      $region12: #{tpu_custom_call.1} parent=5 // pred_fallthru
        _
      %p343 = scmp.lt.s32.totalorder %s20, 18
      // Predicated region
      $region53: #{tpu_custom_call.1} parent=5 // pred_check
        %p344 = pneg %p343
      $region54: #{tpu_custom_call.1} parent=5 // pred_check_branch
        %346 = sbr.rel (%p344) target = $region56
      $region55: #{tpu_custom_call.1} parent=5 // pred_region
        // Predicated region
        $region57: #{tpu_custom_call.1} parent=55 // pred_check
          %p347 = pneg %p52
        $region58: #{tpu_custom_call.1} parent=55 // pred_check_branch
          %349 = sbr.rel (%p347) target = $region60
        $region59: #{tpu_custom_call.1} parent=55 // pred_region
          %p350 = scmp.lt.s32.totalorder %s28, 1
          %s351 = scalar_select %p350, %s28, 1
          %s352 = smul.addr %s351, 16
          %s353 = smul.addr %s352, 8
          %s354 = scalar_lea.vmem %s0, %s353
        $region60: #{tpu_custom_call.1} parent=55 // pred_fallthru
          _
      $region56: #{tpu_custom_call.1} parent=5 // pred_fallthru
        _
      %p355 = scmp.le.s32.totalorder 1, %s20
      %p356 = scmp.lt.s32.totalorder %s20, 19
      %p357 = pnand %p355, %p356
      %p358 = pneg %p357
      // Predicated region
      $region61: #{tpu_custom_call.1} parent=5 // pred_check
        _
      $region62: #{tpu_custom_call.1} parent=5 // pred_check_branch
        %360 = sbr.rel (%p357) target = $region64
      $region63: #{tpu_custom_call.1} parent=5 // pred_region
        %s361 = ssub.s32 %s20, 1
        %p362 = scmp.lt.s32.totalorder %s30, 1
        %s363 = scalar_select %p362, %s30, 1
        %s364 = smul.addr %s363, 16
        %s365 = smul.addr %s364, 8
        %s366 = scalar_lea.vmem %s0, %s365
        %p367 = pneg %p58
        %p368 = pneg %p55
        %p369 = pneg %p79
        %p370 = pneg %p76
        %p371 = pneg %p100
        %p372 = pneg %p97
        %p373 = pneg %p121
        %p374 = pneg %p118
        %p375 = pneg %p142
        %p376 = pneg %p139
        %p377 = pneg %p163
        %p378 = pneg %p160
        %p379 = pneg %p184
        %p380 = pneg %p181
        %p381 = pneg %p205
        %p382 = pneg %p202
        %p383 = pneg %p226
        %p384 = pneg %p223
        %p385 = pneg %p247
        %p386 = pneg %p244
        %p387 = pneg %p268
        %p388 = pneg %p265
        %p389 = pneg %p298
        %p390 = pneg %p295
        %s391 = sand.u32 %s285, 1
        %s392 = scalar_lea.sflag [#allocation4], %s391
        %s393 = sand.u32 %s285, 1
        %s394 = smul.addr %s393, 128
        %s395 = scalar_lea.vmem [#allocation3], %s394
        %p396 = scmp.lt.s32.totalorder %s30, 1
        %s397 = scalar_select %p396, %s30, 1
        %s398 = smul.addr %s397, 16
        %s399 = smul.addr %s398, 8
        %s400 = scalar_lea.vmem %s0, %s399
        %p401 = scmp.eq.s32.totalorder %s29, 8
        %s402 = scalar_select %p401, %s30, 0
        %p404 = scmp.lt.s32.totalorder %s29, 0
        %s405 = ssub.s32 0, %s29
        %s406 = scalar_select %p404, %s405, %s29
        %s407 = sdiv.u32.pop %s406, 3
        %s408 = srem.u32.pop %s406, 3
        %s409 = ssub.s32 0, %s408
        %s410 = scalar_select %p404, %s409, %s408
        %p411 = scmp.ne.s32.totalorder %s410, 0
        %p412 = scmp.lt.s32.totalorder %s410, 0
        %p413 = pnand %p412, %p411
        %p414 = pneg %p413
        %s415 = sadd.s32 %s410, 3
        %s416 = scalar_select %p414, %s415, %s410
        %p417 = scmp.eq.s32.totalorder %s29, 0
        // Predicated region
        $region65: #{tpu_custom_call.1} parent=63 // pred_check
          %p418 = pneg %p417
        $region66: #{tpu_custom_call.1} parent=63 // pred_check_branch
          %420 = sbr.rel (%p418) target = $region68
        $region67: #{tpu_custom_call.1} parent=63 // pred_region
          %v421 = vld [vmem:[%s400] sm:$0xff]
          %v422 = vld [vmem:[%s400 + $0x8] sm:$0xff]
          %v423 = vld [vmem:[%s400 + $0x10] sm:$0xff]
          %v424 = vld [vmem:[%s400 + $0x18] sm:$0xff]
          %v425 = vld [vmem:[%s400 + $0x20] sm:$0xff]
          %v426 = vld [vmem:[%s400 + $0x28] sm:$0xff]
          %v427 = vld [vmem:[%s400 + $0x30] sm:$0xff]
          %v428 = vld [vmem:[%s400 + $0x38] sm:$0xff]
          %v429 = vld [vmem:[%s400 + $0x40] sm:$0xff]
          %v430 = vld [vmem:[%s400 + $0x48] sm:$0xff]
          %v431 = vld [vmem:[%s400 + $0x50] sm:$0xff]
          %v432 = vld [vmem:[%s400 + $0x58] sm:$0xff]
          %v433 = vld [vmem:[%s400 + $0x60] sm:$0xff]
          %v434 = vld [vmem:[%s400 + $0x68] sm:$0xff]
          %v435 = vld [vmem:[%s400 + $0x70] sm:$0xff]
          %v436 = vld [vmem:[%s400 + $0x78] sm:$0xff]
          %v437 = vpack.c.bf16 %v422, %v421
          %v438 = vpack.c.bf16 %v424, %v423
          %v439 = vpack.c.bf16 %v426, %v425
          %v440 = vpack.c.bf16 %v428, %v427
          %v441 = vpack.c.bf16 %v430, %v429
          %v442 = vpack.c.bf16 %v432, %v431
          %v443 = vpack.c.bf16 %v434, %v433
          %v444 = vpack.c.bf16 %v436, %v435
          %v445 = vld [vmem:[%s1] sm:$0xf]
          %v446 = vld [vmem:[%s1 + $0x4] sm:$0xf]
          %v447 = vld [vmem:[%s2] sm:$0x1]
          %v449 = vlaneseq
          %v450 = vshrl.u32 %v449, 7
          %v451 = vsub.s32 0, %v450
          %v452 = vrot.slane %v447, %v451
          %v456 = vunpack.c.l.b16 %v445
          %v457 = vunpack.c.l.b16 %v446
          %v458 = vpack.c.b16 %v457, %v456
          %vm460 = vcmask 130048
          %v462 = vsel %vm460, %v437, 0
          %v465 = vsel %vm460, %v438, 0
          %v468 = vsel %vm460, %v439, 0
          %v471 = vsel %vm460, %v440, 0
          %v474 = vsel %vm460, %v441, 0
          %v477 = vsel %vm460, %v442, 0
          %v480 = vsel %vm460, %v443, 0
          %v483 = vsel %vm460, %v444, 0
          %485 = vmatprep.subr.bf16.mxu0 0
          %486 = vmatpush1.bf16.msra.mxu0 %v458
          %487 = vmatprep.subr.bf16.mxu0 0
          %488 = vmatpush1.bf16.msra.mxu0 0
          %489 = vmatprep.subr.bf16.mxu0 0
          %490 = vmatpush1.bf16.msra.mxu0 0
          %491 = vmatprep.subr.bf16.mxu0 0
          %492 = vmatpush1.bf16.msra.mxu0 0
          %493 = vmatprep.subr.bf16.mxu0 0
          %494 = vmatpush1.bf16.msra.mxu0 0
          %495 = vmatprep.subr.bf16.mxu0 0
          %496 = vmatpush1.bf16.msra.mxu0 0
          %497 = vmatprep.subr.bf16.mxu0 0
          %498 = vmatpush1.bf16.msra.mxu0 0
          %499 = vmatprep.subr.bf16.mxu0 0
          %500 = vmatpush1.bf16.msra.mxu0 0
          %501 = vmatprep.subr.bf16.mxu0 0
          %502 = vmatpush1.bf16.msra.mxu0 0
          %503 = vmatprep.subr.bf16.mxu0 0
          %504 = vmatpush1.bf16.msra.mxu0 0
          %505 = vmatprep.subr.bf16.mxu0 0
          %506 = vmatpush1.bf16.msra.mxu0 0
          %507 = vmatprep.subr.bf16.mxu0 0
          %508 = vmatpush1.bf16.msra.mxu0 0
          %509 = vmatprep.subr.bf16.mxu0 0
          %510 = vmatpush1.bf16.msra.mxu0 0
          %511 = vmatprep.subr.bf16.mxu0 0
          %512 = vmatpush1.bf16.msra.mxu0 0
          %513 = vmatprep.subr.bf16.mxu0 0
          %514 = vmatpush1.bf16.msra.mxu0 0
          %515 = vmatprep.subr.bf16.mxu0 0
          %516 = vmatpush1.bf16.msra.mxu0 0
          %517 = vmatprep.mubr.bf16.mxu0 0
          %518 = vmatmul.mubr.bf16.gmra.mrb[0].mxu0 %v462
          %v519 = vpop.f32.mrb[0].mxu0
          %v520 = vadd.f32 %v452, %v519
          %v521 = vpop.f32.mrb[0].mxu0
          %v522 = vpop.f32.mrb[0].mxu0
          %v523 = vadd.f32 %v452, %v522
          %v524 = vpop.f32.mrb[0].mxu0
          %525 = vmatprep.mubr.bf16.mxu0 0
          %526 = vmatmul.mubr.bf16.gmra.mrb[0].mxu0 %v465
          %v527 = vpop.f32.mrb[0].mxu0
          %v528 = vadd.f32 %v452, %v527
          %v529 = vpop.f32.mrb[0].mxu0
          %v530 = vpop.f32.mrb[0].mxu0
          %v531 = vadd.f32 %v452, %v530
          %v532 = vpop.f32.mrb[0].mxu0
          %533 = vmatprep.mubr.bf16.mxu0 0
          %534 = vmatmul.mubr.bf16.gmra.mrb[0].mxu0 %v468
          %v535 = vpop.f32.mrb[0].mxu0
          %v536 = vadd.f32 %v452, %v535
          %v537 = vpop.f32.mrb[0].mxu0
          %v538 = vpop.f32.mrb[0].mxu0
          %v539 = vadd.f32 %v452, %v538
          %v540 = vpop.f32.mrb[0].mxu0
          %541 = vmatprep.mubr.bf16.mxu0 0
          %542 = vmatmul.mubr.bf16.gmra.mrb[0].mxu0 %v471
          %v543 = vpop.f32.mrb[0].mxu0
          %v544 = vadd.f32 %v452, %v543
          %v545 = vpop.f32.mrb[0].mxu0
          %v546 = vpop.f32.mrb[0].mxu0
          %v547 = vadd.f32 %v452, %v546
          %v548 = vpop.f32.mrb[0].mxu0
          %549 = vmatprep.mubr.bf16.mxu0 0
          %550 = vmatmul.mubr.bf16.gmra.mrb[0].mxu0 %v474
          %v551 = vpop.f32.mrb[0].mxu0
          %v552 = vadd.f32 %v452, %v551
          %v553 = vpop.f32.mrb[0].mxu0
          %v554 = vpop.f32.mrb[0].mxu0
          %v555 = vadd.f32 %v452, %v554
          %v556 = vpop.f32.mrb[0].mxu0
          %557 = vmatprep.mubr.bf16.mxu0 0
          %558 = vmatmul.mubr.bf16.gmra.mrb[0].mxu0 %v477
          %v559 = vpop.f32.mrb[0].mxu0
          %v560 = vadd.f32 %v452, %v559
          %v561 = vpop.f32.mrb[0].mxu0
          %v562 = vpop.f32.mrb[0].mxu0
          %v563 = vadd.f32 %v452, %v562
          %v564 = vpop.f32.mrb[0].mxu0
          %565 = vmatprep.mubr.bf16.mxu0 0
          %566 = vmatmul.mubr.bf16.gmra.mrb[0].mxu0 %v480
          %v567 = vpop.f32.mrb[0].mxu0
          %v568 = vadd.f32 %v452, %v567
          %v569 = vpop.f32.mrb[0].mxu0
          %v570 = vpop.f32.mrb[0].mxu0
          %v571 = vadd.f32 %v452, %v570
          %v572 = vpop.f32.mrb[0].mxu0
          %573 = vmatprep.mubr.bf16.mxu0 0
          %574 = vmatmul.mubr.bf16.gmra.mrb[0].mxu0 %v483
          %v575 = vpop.f32.mrb[0].mxu0
          %v576 = vadd.f32 %v452, %v575
          %v577 = vpop.f32.mrb[0].mxu0
          %v578 = vpop.f32.mrb[0].mxu0
          %v579 = vadd.f32 %v452, %v578
          %v580 = vpop.f32.mrb[0].mxu0
          %581 = vdwg.mxu0
          %v582 = vmax.f32 %v520, 0.0
          %v583 = vmax.f32 %v523, 0.0
          %v584 = vmax.f32 %v528, 0.0
          %v585 = vmax.f32 %v531, 0.0
          %v586 = vmax.f32 %v536, 0.0
          %v587 = vmax.f32 %v539, 0.0
          %v588 = vmax.f32 %v544, 0.0
          %v589 = vmax.f32 %v547, 0.0
          %v590 = vmax.f32 %v552, 0.0
          %v591 = vmax.f32 %v555, 0.0
          %v592 = vmax.f32 %v560, 0.0
          %v593 = vmax.f32 %v563, 0.0
          %v594 = vmax.f32 %v568, 0.0
          %v595 = vmax.f32 %v571, 0.0
          %v596 = vmax.f32 %v576, 0.0
          %v597 = vmax.f32 %v579, 0.0
          %s598 = smul.u32 %s30, 128
          %s599 = scalar_lea.vmem [#allocation2], %s598
          %600 = vst [vmem:[%s599] sm:$0xff] %v582
          %601 = vst [vmem:[%s599 + $0x8] sm:$0xff] %v583
          %602 = vst [vmem:[%s599 + $0x10] sm:$0xff] %v584
          %603 = vst [vmem:[%s599 + $0x18] sm:$0xff] %v585
          %604 = vst [vmem:[%s599 + $0x20] sm:$0xff] %v586
          %605 = vst [vmem:[%s599 + $0x28] sm:$0xff] %v587
          %606 = vst [vmem:[%s599 + $0x30] sm:$0xff] %v588
          %607 = vst [vmem:[%s599 + $0x38] sm:$0xff] %v589
          %608 = vst [vmem:[%s599 + $0x40] sm:$0xff] %v590
          %609 = vst [vmem:[%s599 + $0x48] sm:$0xff] %v591
          %610 = vst [vmem:[%s599 + $0x50] sm:$0xff] %v592
          %611 = vst [vmem:[%s599 + $0x58] sm:$0xff] %v593
          %612 = vst [vmem:[%s599 + $0x60] sm:$0xff] %v594
          %613 = vst [vmem:[%s599 + $0x68] sm:$0xff] %v595
          %614 = vst [vmem:[%s599 + $0x70] sm:$0xff] %v596
          %615 = vst [vmem:[%s599 + $0x78] sm:$0xff] %v597
        $region68: #{tpu_custom_call.1} parent=63 // pred_fallthru
          _
        %s616 = smul.u32 %s30, 128
        %s617 = scalar_lea.vmem [#allocation2], %s616
        %v618 = vld [vmem:[%s617] sm:$0xff]
        %v619 = vld [vmem:[%s617 + $0x8] sm:$0xff]
        %v620 = vld [vmem:[%s617 + $0x10] sm:$0xff]
        %v621 = vld [vmem:[%s617 + $0x18] sm:$0xff]
        %v622 = vld [vmem:[%s617 + $0x20] sm:$0xff]
        %v623 = vld [vmem:[%s617 + $0x28] sm:$0xff]
        %v624 = vld [vmem:[%s617 + $0x30] sm:$0xff]
        %v625 = vld [vmem:[%s617 + $0x38] sm:$0xff]
        %v626 = vld [vmem:[%s617 + $0x40] sm:$0xff]
        %v627 = vld [vmem:[%s617 + $0x48] sm:$0xff]
        %v628 = vld [vmem:[%s617 + $0x50] sm:$0xff]
        %v629 = vld [vmem:[%s617 + $0x58] sm:$0xff]
        %v630 = vld [vmem:[%s617 + $0x60] sm:$0xff]
        %v631 = vld [vmem:[%s617 + $0x68] sm:$0xff]
        %v632 = vld [vmem:[%s617 + $0x70] sm:$0xff]
        %v633 = vld [vmem:[%s617 + $0x78] sm:$0xff]
        %v634 = vpack.c.bf16 %v619, %v618
        %v635 = vpack.c.bf16 %v621, %v620
        %v636 = vpack.c.bf16 %v623, %v622
        %v637 = vpack.c.bf16 %v625, %v624
        %v638 = vpack.c.bf16 %v627, %v626
        %v639 = vpack.c.bf16 %v629, %v628
        %v640 = vpack.c.bf16 %v631, %v630
        %v641 = vpack.c.bf16 %v633, %v632
        %s642 = smul.u32 %s416, 3
        %s643 = smul.addr %s642, 8
        %s644 = scalar_lea.vmem %s10, %s643
        %v645 = vld [vmem:[%s644] sm:$0xff]
        %v646 = vld [vmem:[%s644 + $0x8] sm:$0xff]
        %v647 = vld [vmem:[%s644 + $0x10] sm:$0xff]
        %s648 = smul.u32 %s416, 48
        %s649 = smul.addr %s648, 4
        %s650 = scalar_lea.vmem %s5, %s649
        %v651 = vld [vmem:[%s650] sm:$0xff]
        %v652 = vld [vmem:[%s650 + $0x8] sm:$0xf]
        %v653 = vld [vmem:[%s650 + $0xc] sm:$0xff]
        %v654 = vld [vmem:[%s650 + $0x14] sm:$0xf]
        %v655 = vld [vmem:[%s650 + $0x18] sm:$0xff]
        %v656 = vld [vmem:[%s650 + $0x20] sm:$0xf]
        %v657 = vld [vmem:[%s650 + $0x24] sm:$0xff]
        %v658 = vld [vmem:[%s650 + $0x2c] sm:$0xf]
        %v659 = vld [vmem:[%s650 + $0x30] sm:$0xff]
        %v660 = vld [vmem:[%s650 + $0x38] sm:$0xf]
        %v661 = vld [vmem:[%s650 + $0x3c] sm:$0xff]
        %v662 = vld [vmem:[%s650 + $0x44] sm:$0xf]
        %v663 = vld [vmem:[%s650 + $0x48] sm:$0xff]
        %v664 = vld [vmem:[%s650 + $0x50] sm:$0xf]
        %v665 = vld [vmem:[%s650 + $0x54] sm:$0xff]
        %v666 = vld [vmem:[%s650 + $0x5c] sm:$0xf]
        %v667 = vld [vmem:[%s650 + $0x60] sm:$0xff]
        %v668 = vld [vmem:[%s650 + $0x68] sm:$0xf]
        %v669 = vld [vmem:[%s650 + $0x6c] sm:$0xff]
        %v670 = vld [vmem:[%s650 + $0x74] sm:$0xf]
        %v671 = vld [vmem:[%s650 + $0x78] sm:$0xff]
        %v672 = vld [vmem:[%s650 + $0x80] sm:$0xf]
        %v673 = vld [vmem:[%s650 + $0x84] sm:$0xff]
        %v674 = vld [vmem:[%s650 + $0x8c] sm:$0xf]
        %v675 = vld [vmem:[%s650 + $0x90] sm:$0xff]
        %v676 = vld [vmem:[%s650 + $0x98] sm:$0xf]
        %v677 = vld [vmem:[%s650 + $0x9c] sm:$0xff]
        %v678 = vld [vmem:[%s650 + $0xa4] sm:$0xf]
        %v679 = vld [vmem:[%s650 + $0xa8] sm:$0xff]
        %v680 = vld [vmem:[%s650 + $0xb0] sm:$0xf]
        %v681 = vld [vmem:[%s650 + $0xb4] sm:$0xff]
        %v682 = vld [vmem:[%s650 + $0xbc] sm:$0xf]
        %v683 = vlaneseq
        %v684 = vshrl.u32 %v683, 7
        %v685 = vsub.s32 0, %v684
        %v686 = vrot.slane %v645, %v685
        %v687 = vlaneseq
        %v688 = vshrl.u32 %v687, 7
        %v689 = vsub.s32 0, %v688
        %v690 = vrot.slane %v646, %v689
        %v691 = vlaneseq
        %v692 = vshrl.u32 %v691, 7
        %v693 = vsub.s32 0, %v692
        %v694 = vrot.slane %v647, %v693
        %v727 = vunpack.c.l.b16 %v651
        %v728 = vunpack.c.h.b16 %v651
        %v729 = vunpack.c.l.b16 %v652
        %v730 = vunpack.c.l.b16 %v653
        %v731 = vunpack.c.h.b16 %v653
        %v732 = vunpack.c.l.b16 %v654
        %v733 = vunpack.c.l.b16 %v655
        %v734 = vunpack.c.h.b16 %v655
        %v735 = vunpack.c.l.b16 %v656
        %v736 = vunpack.c.l.b16 %v657
        %v737 = vunpack.c.h.b16 %v657
        %v738 = vunpack.c.l.b16 %v658
        %v739 = vunpack.c.l.b16 %v659
        %v740 = vunpack.c.h.b16 %v659
        %v741 = vunpack.c.l.b16 %v660
        %v742 = vunpack.c.l.b16 %v661
        %v743 = vunpack.c.h.b16 %v661
        %v744 = vunpack.c.l.b16 %v662
        %v745 = vunpack.c.l.b16 %v663
        %v746 = vunpack.c.h.b16 %v663
        %v747 = vunpack.c.l.b16 %v664
        %v748 = vunpack.c.l.b16 %v665
        %v749 = vunpack.c.h.b16 %v665
        %v750 = vunpack.c.l.b16 %v666
        %v751 = vunpack.c.l.b16 %v667
        %v752 = vunpack.c.h.b16 %v667
        %v753 = vunpack.c.l.b16 %v668
        %v754 = vunpack.c.l.b16 %v669
        %v755 = vunpack.c.h.b16 %v669
        %v756 = vunpack.c.l.b16 %v670
        %v757 = vunpack.c.l.b16 %v671
        %v758 = vunpack.c.h.b16 %v671
        %v759 = vunpack.c.l.b16 %v672
        %v760 = vunpack.c.l.b16 %v673
        %v761 = vunpack.c.h.b16 %v673
        %v762 = vunpack.c.l.b16 %v674
        %v763 = vunpack.c.l.b16 %v675
        %v764 = vunpack.c.h.b16 %v675
        %v765 = vunpack.c.l.b16 %v676
        %v766 = vunpack.c.l.b16 %v677
        %v767 = vunpack.c.h.b16 %v677
        %v768 = vunpack.c.l.b16 %v678
        %v769 = vunpack.c.l.b16 %v679
        %v770 = vunpack.c.h.b16 %v679
        %v771 = vunpack.c.l.b16 %v680
        %v772 = vunpack.c.l.b16 %v681
        %v773 = vunpack.c.h.b16 %v681
        %v774 = vunpack.c.l.b16 %v682
        %v775 = vpack.c.b16 %v730, %v727
        %v776 = vpack.c.b16 %v731, %v728
        %v777 = vpack.c.b16 %v732, %v729
        %v778 = vpack.c.b16 %v736, %v733
        %v779 = vpack.c.b16 %v737, %v734
        %v780 = vpack.c.b16 %v738, %v735
        %v781 = vpack.c.b16 %v742, %v739
        %v782 = vpack.c.b16 %v743, %v740
        %v783 = vpack.c.b16 %v744, %v741
        %v784 = vpack.c.b16 %v748, %v745
        %v785 = vpack.c.b16 %v749, %v746
        %v786 = vpack.c.b16 %v750, %v747
        %v787 = vpack.c.b16 %v754, %v751
        %v788 = vpack.c.b16 %v755, %v752
        %v789 = vpack.c.b16 %v756, %v753
        %v790 = vpack.c.b16 %v760, %v757
        %v791 = vpack.c.b16 %v761, %v758
        %v792 = vpack.c.b16 %v762, %v759
        %v793 = vpack.c.b16 %v766, %v763
        %v794 = vpack.c.b16 %v767, %v764
        %v795 = vpack.c.b16 %v768, %v765
        %v796 = vpack.c.b16 %v772, %v769
        %v797 = vpack.c.b16 %v773, %v770
        %v798 = vpack.c.b16 %v774, %v771
        %823 = vmatprep.subr.bf16.mxu0 %v776
        %824 = vmatpush1.bf16.msra.mxu0 %v775
        %825 = vmatprep.subr.bf16.mxu0 %v779
        %826 = vmatpush1.bf16.msra.mxu0 %v778
        %827 = vmatprep.subr.bf16.mxu0 %v782
        %828 = vmatpush1.bf16.msra.mxu0 %v781
        %829 = vmatprep.subr.bf16.mxu0 %v785
        %830 = vmatpush1.bf16.msra.mxu0 %v784
        %831 = vmatprep.subr.bf16.mxu0 %v788
        %832 = vmatpush1.bf16.msra.mxu0 %v787
        %833 = vmatprep.subr.bf16.mxu0 %v791
        %834 = vmatpush1.bf16.msra.mxu0 %v790
        %835 = vmatprep.subr.bf16.mxu0 %v794
        %836 = vmatpush1.bf16.msra.mxu0 %v793
        %837 = vmatprep.subr.bf16.mxu0 %v797
        %838 = vmatpush1.bf16.msra.mxu0 %v796
        %839 = vmatprep.subr.bf16.mxu0 0
        %840 = vmatpush1.bf16.msra.mxu0 0
        %841 = vmatprep.subr.bf16.mxu0 0
        %842 = vmatpush1.bf16.msra.mxu0 0
        %843 = vmatprep.subr.bf16.mxu0 0
        %844 = vmatpush1.bf16.msra.mxu0 0
        %845 = vmatprep.subr.bf16.mxu0 0
        %846 = vmatpush1.bf16.msra.mxu0 0
        %847 = vmatprep.subr.bf16.mxu0 0
        %848 = vmatpush1.bf16.msra.mxu0 0
        %849 = vmatprep.subr.bf16.mxu0 0
        %850 = vmatpush1.bf16.msra.mxu0 0
        %851 = vmatprep.subr.bf16.mxu0 0
        %852 = vmatpush1.bf16.msra.mxu0 0
        %853 = vmatprep.subr.bf16.mxu0 0
        %854 = vmatpush1.bf16.msra.mxu0 0
        %855 = vmatprep.mubr.bf16.mxu0 0
        %856 = vmatmul.mubr.bf16.gmra.mrb[0].mxu0 %v634
        %v857 = vpop.f32.mrb[0].mxu0
        %v858 = vadd.f32 %v686, %v857
        %v859 = vpop.f32.mrb[0].mxu0
        %v860 = vadd.f32 %v690, %v859
        %v861 = vpop.f32.mrb[0].mxu0
        %v862 = vadd.f32 %v686, %v861
        %v863 = vpop.f32.mrb[0].mxu0
        %v864 = vadd.f32 %v690, %v863
        %865 = vmatprep.mubr.bf16.mxu0 0
        %866 = vmatmul.mubr.bf16.gmra.mrb[0].mxu0 %v635
        %v867 = vpop.f32.mrb[0].mxu0
        %v868 = vadd.f32 %v686, %v867
        %v869 = vpop.f32.mrb[0].mxu0
        %v870 = vadd.f32 %v690, %v869
        %v871 = vpop.f32.mrb[0].mxu0
        %v872 = vadd.f32 %v686, %v871
        %v873 = vpop.f32.mrb[0].mxu0
        %v874 = vadd.f32 %v690, %v873
        %875 = vmatprep.mubr.bf16.mxu0 0
        %876 = vmatmul.mubr.bf16.gmra.mrb[0].mxu0 %v636
        %v877 = vpop.f32.mrb[0].mxu0
        %v878 = vadd.f32 %v686, %v877
        %v879 = vpop.f32.mrb[0].mxu0
        %v880 = vadd.f32 %v690, %v879
        %v881 = vpop.f32.mrb[0].mxu0
        %v882 = vadd.f32 %v686, %v881
        %v883 = vpop.f32.mrb[0].mxu0
        %v884 = vadd.f32 %v690, %v883
        %885 = vmatprep.mubr.bf16.mxu0 0
        %886 = vmatmul.mubr.bf16.gmra.mrb[0].mxu0 %v637
        %v887 = vpop.f32.mrb[0].mxu0
        %v888 = vadd.f32 %v686, %v887
        %v889 = vpop.f32.mrb[0].mxu0
        %v890 = vadd.f32 %v690, %v889
        %v891 = vpop.f32.mrb[0].mxu0
        %v892 = vadd.f32 %v686, %v891
        %v893 = vpop.f32.mrb[0].mxu0
        %v894 = vadd.f32 %v690, %v893
        %895 = vmatprep.mubr.bf16.mxu0 0
        %896 = vmatmul.mubr.bf16.gmra.mrb[0].mxu0 %v638
        %v897 = vpop.f32.mrb[0].mxu0
        %v898 = vadd.f32 %v686, %v897
        %v899 = vpop.f32.mrb[0].mxu0
        %v900 = vadd.f32 %v690, %v899
        %v901 = vpop.f32.mrb[0].mxu0
        %v902 = vadd.f32 %v686, %v901
        %v903 = vpop.f32.mrb[0].mxu0
        %v904 = vadd.f32 %v690, %v903
        %905 = vmatprep.mubr.bf16.mxu0 0
        %906 = vmatmul.mubr.bf16.gmra.mrb[0].mxu0 %v639
        %v907 = vpop.f32.mrb[0].mxu0
        %v908 = vadd.f32 %v686, %v907
        %v909 = vpop.f32.mrb[0].mxu0
        %v910 = vadd.f32 %v690, %v909
        %v911 = vpop.f32.mrb[0].mxu0
        %v912 = vadd.f32 %v686, %v911
        %v913 = vpop.f32.mrb[0].mxu0
        %v914 = vadd.f32 %v690, %v913
        %915 = vmatprep.mubr.bf16.mxu0 0
        %916 = vmatmul.mubr.bf16.gmra.mrb[0].mxu0 %v640
        %v917 = vpop.f32.mrb[0].mxu0
        %v918 = vadd.f32 %v686, %v917
        %v919 = vpop.f32.mrb[0].mxu0
        %v920 = vadd.f32 %v690, %v919
        %v921 = vpop.f32.mrb[0].mxu0
        %v922 = vadd.f32 %v686, %v921
        %v923 = vpop.f32.mrb[0].mxu0
        %v924 = vadd.f32 %v690, %v923
        %925 = vmatprep.mubr.bf16.mxu0 0
        %926 = vmatmul.mubr.bf16.gmra.mrb[0].mxu0 %v641
        %v927 = vpop.f32.mrb[0].mxu0
        %v928 = vadd.f32 %v686, %v927
        %v929 = vpop.f32.mrb[0].mxu0
        %v930 = vadd.f32 %v690, %v929
        %v931 = vpop.f32.mrb[0].mxu0
        %v932 = vadd.f32 %v686, %v931
        %v933 = vpop.f32.mrb[0].mxu0
        %v934 = vadd.f32 %v690, %v933
        %935 = vdwg.mxu0
        %936 = vmatprep.subr.bf16.mxu0 0
        %937 = vmatpush1.bf16.msra.mxu0 %v777
        %938 = vmatprep.subr.bf16.mxu0 0
        %939 = vmatpush1.bf16.msra.mxu0 %v780
        %940 = vmatprep.subr.bf16.mxu0 0
        %941 = vmatpush1.bf16.msra.mxu0 %v783
        %942 = vmatprep.subr.bf16.mxu0 0
        %943 = vmatpush1.bf16.msra.mxu0 %v786
        %944 = vmatprep.subr.bf16.mxu0 0
        %945 = vmatpush1.bf16.msra.mxu0 %v789
        %946 = vmatprep.subr.bf16.mxu0 0
        %947 = vmatpush1.bf16.msra.mxu0 %v792
        %948 = vmatprep.subr.bf16.mxu0 0
        %949 = vmatpush1.bf16.msra.mxu0 %v795
        %950 = vmatprep.subr.bf16.mxu0 0
        %951 = vmatpush1.bf16.msra.mxu0 %v798
        %952 = vmatprep.subr.bf16.mxu0 0
        %953 = vmatpush1.bf16.msra.mxu0 0
        %954 = vmatprep.subr.bf16.mxu0 0
        %955 = vmatpush1.bf16.msra.mxu0 0
        %956 = vmatprep.subr.bf16.mxu0 0
        %957 = vmatpush1.bf16.msra.mxu0 0
        %958 = vmatprep.subr.bf16.mxu0 0
        %959 = vmatpush1.bf16.msra.mxu0 0
        %960 = vmatprep.subr.bf16.mxu0 0
        %961 = vmatpush1.bf16.msra.mxu0 0
        %962 = vmatprep.subr.bf16.mxu0 0
        %963 = vmatpush1.bf16.msra.mxu0 0
        %964 = vmatprep.subr.bf16.mxu0 0
        %965 = vmatpush1.bf16.msra.mxu0 0
        %966 = vmatprep.subr.bf16.mxu0 0
        %967 = vmatpush1.bf16.msra.mxu0 0
        %968 = vmatprep.mubr.bf16.mxu0 0
        %969 = vmatmul.mubr.bf16.gmra.mrb[0].mxu0 %v634
        %v970 = vpop.f32.mrb[0].mxu0
        %v971 = vadd.f32 %v694, %v970
        %v972 = vpop.f32.mrb[0].mxu0
        %v973 = vpop.f32.mrb[0].mxu0
        %v974 = vadd.f32 %v694, %v973
        %v975 = vpop.f32.mrb[0].mxu0
        %976 = vmatprep.mubr.bf16.mxu0 0
        %977 = vmatmul.mubr.bf16.gmra.mrb[0].mxu0 %v635
        %v978 = vpop.f32.mrb[0].mxu0
        %v979 = vadd.f32 %v694, %v978
        %v980 = vpop.f32.mrb[0].mxu0
        %v981 = vpop.f32.mrb[0].mxu0
        %v982 = vadd.f32 %v694, %v981
        %v983 = vpop.f32.mrb[0].mxu0
        %984 = vmatprep.mubr.bf16.mxu0 0
        %985 = vmatmul.mubr.bf16.gmra.mrb[0].mxu0 %v636
        %v986 = vpop.f32.mrb[0].mxu0
        %v987 = vadd.f32 %v694, %v986
        %v988 = vpop.f32.mrb[0].mxu0
        %v989 = vpop.f32.mrb[0].mxu0
        %v990 = vadd.f32 %v694, %v989
        %v991 = vpop.f32.mrb[0].mxu0
        %992 = vmatprep.mubr.bf16.mxu0 0
        %993 = vmatmul.mubr.bf16.gmra.mrb[0].mxu0 %v637
        %v994 = vpop.f32.mrb[0].mxu0
        %v995 = vadd.f32 %v694, %v994
        %v996 = vpop.f32.mrb[0].mxu0
        %v997 = vpop.f32.mrb[0].mxu0
        %v998 = vadd.f32 %v694, %v997
        %v999 = vpop.f32.mrb[0].mxu0
        %1000 = vmatprep.mubr.bf16.mxu0 0
        %1001 = vmatmul.mubr.bf16.gmra.mrb[0].mxu0 %v638
        %v1002 = vpop.f32.mrb[0].mxu0
        %v1003 = vadd.f32 %v694, %v1002
        %v1004 = vpop.f32.mrb[0].mxu0
        %v1005 = vpop.f32.mrb[0].mxu0
        %v1006 = vadd.f32 %v694, %v1005
        %v1007 = vpop.f32.mrb[0].mxu0
        %1008 = vmatprep.mubr.bf16.mxu0 0
        %1009 = vmatmul.mubr.bf16.gmra.mrb[0].mxu0 %v639
        %v1010 = vpop.f32.mrb[0].mxu0
        %v1011 = vadd.f32 %v694, %v1010
        %v1012 = vpop.f32.mrb[0].mxu0
        %v1013 = vpop.f32.mrb[0].mxu0
        %v1014 = vadd.f32 %v694, %v1013
        %v1015 = vpop.f32.mrb[0].mxu0
        %1016 = vmatprep.mubr.bf16.mxu0 0
        %1017 = vmatmul.mubr.bf16.gmra.mrb[0].mxu0 %v640
        %v1018 = vpop.f32.mrb[0].mxu0
        %v1019 = vadd.f32 %v694, %v1018
        %v1020 = vpop.f32.mrb[0].mxu0
        %v1021 = vpop.f32.mrb[0].mxu0
        %v1022 = vadd.f32 %v694, %v1021
        %v1023 = vpop.f32.mrb[0].mxu0
        %1024 = vmatprep.mubr.bf16.mxu0 0
        %1025 = vmatmul.mubr.bf16.gmra.mrb[0].mxu0 %v641
        %v1026 = vpop.f32.mrb[0].mxu0
        %v1027 = vadd.f32 %v694, %v1026
        %v1028 = vpop.f32.mrb[0].mxu0
        %v1029 = vpop.f32.mrb[0].mxu0
        %v1030 = vadd.f32 %v694, %v1029
        %v1031 = vpop.f32.mrb[0].mxu0
        %1032 = vdwg.mxu0
        %v1033 = vmul.f32 %v858, 0.125
        %v1034 = vmul.f32 %v862, 0.125
        %v1035 = vmul.f32 %v868, 0.125
        %v1036 = vmul.f32 %v872, 0.125
        %v1037 = vmul.f32 %v878, 0.125
        %v1038 = vmul.f32 %v882, 0.125
        %v1039 = vmul.f32 %v888, 0.125
        %v1040 = vmul.f32 %v892, 0.125
        %v1041 = vmul.f32 %v898, 0.125
        %v1042 = vmul.f32 %v902, 0.125
        %v1043 = vmul.f32 %v908, 0.125
        %v1044 = vmul.f32 %v912, 0.125
        %v1045 = vmul.f32 %v918, 0.125
        %v1046 = vmul.f32 %v922, 0.125
        %v1047 = vmul.f32 %v928, 0.125
        %v1048 = vmul.f32 %v932, 0.125
        %v1049 = vpack.c.bf16 %v1034, %v1033
        %v1050 = vpack.c.bf16 %v1036, %v1035
        %v1051 = vpack.c.bf16 %v1038, %v1037
        %v1052 = vpack.c.bf16 %v1040, %v1039
        %v1053 = vpack.c.bf16 %v1042, %v1041
        %v1054 = vpack.c.bf16 %v1044, %v1043
        %v1055 = vpack.c.bf16 %v1046, %v1045
        %v1056 = vpack.c.bf16 %v1048, %v1047
        %v1057 = vpack.c.bf16 %v864, %v860
        %v1058 = vpack.c.bf16 %v874, %v870
        %v1059 = vpack.c.bf16 %v884, %v880
        %v1060 = vpack.c.bf16 %v894, %v890
        %v1061 = vpack.c.bf16 %v904, %v900
        %v1062 = vpack.c.bf16 %v914, %v910
        %v1063 = vpack.c.bf16 %v924, %v920
        %v1064 = vpack.c.bf16 %v934, %v930
        %v1065 = vpack.c.bf16 %v974, %v971
        %v1066 = vpack.c.bf16 %v982, %v979
        %v1067 = vpack.c.bf16 %v990, %v987
        %v1068 = vpack.c.bf16 %v998, %v995
        %v1069 = vpack.c.bf16 %v1006, %v1003
        %v1070 = vpack.c.bf16 %v1014, %v1011
        %v1071 = vpack.c.bf16 %v1022, %v1019
        %v1072 = vpack.c.bf16 %v1030, %v1027
        %1081 = vrot.lane.b32.xlu0 %v1049, 64
        %v1082 = vpop.permute.xlu0 %1081
        %1083 = vrot.lane.b32.xlu0 %v1050, 64
        %v1084 = vpop.permute.xlu0 %1083
        %1085 = vrot.lane.b32.xlu0 %v1051, 64
        %v1086 = vpop.permute.xlu0 %1085
        %1087 = vrot.lane.b32.xlu0 %v1052, 64
        %v1088 = vpop.permute.xlu0 %1087
        %1089 = vrot.lane.b32.xlu0 %v1053, 64
        %v1090 = vpop.permute.xlu0 %1089
        %1091 = vrot.lane.b32.xlu0 %v1054, 64
        %v1092 = vpop.permute.xlu0 %1091
        %1093 = vrot.lane.b32.xlu0 %v1055, 64
        %v1094 = vpop.permute.xlu0 %1093
        %1095 = vrot.lane.b32.xlu0 %v1056, 64
        %v1096 = vpop.permute.xlu0 %1095
        %1105 = vrot.lane.b32.xlu0 %v1057, 64
        %v1106 = vpop.permute.xlu0 %1105
        %1107 = vrot.lane.b32.xlu0 %v1058, 64
        %v1108 = vpop.permute.xlu0 %1107
        %1109 = vrot.lane.b32.xlu0 %v1059, 64
        %v1110 = vpop.permute.xlu0 %1109
        %1111 = vrot.lane.b32.xlu0 %v1060, 64
        %v1112 = vpop.permute.xlu0 %1111
        %1113 = vrot.lane.b32.xlu0 %v1061, 64
        %v1114 = vpop.permute.xlu0 %1113
        %1115 = vrot.lane.b32.xlu0 %v1062, 64
        %v1116 = vpop.permute.xlu0 %1115
        %1117 = vrot.lane.b32.xlu0 %v1063, 64
        %v1118 = vpop.permute.xlu0 %1117
        %1119 = vrot.lane.b32.xlu0 %v1064, 64
        %v1120 = vpop.permute.xlu0 %1119
        %1129 = vrot.lane.b32.xlu0 %v1065, 64
        %v1130 = vpop.permute.xlu0 %1129
        %1131 = vrot.lane.b32.xlu0 %v1066, 64
        %v1132 = vpop.permute.xlu0 %1131
        %1133 = vrot.lane.b32.xlu0 %v1067, 64
        %v1134 = vpop.permute.xlu0 %1133
        %1135 = vrot.lane.b32.xlu0 %v1068, 64
        %v1136 = vpop.permute.xlu0 %1135
        %1137 = vrot.lane.b32.xlu0 %v1069, 64
        %v1138 = vpop.permute.xlu0 %1137
        %1139 = vrot.lane.b32.xlu0 %v1070, 64
        %v1140 = vpop.permute.xlu0 %1139
        %1141 = vrot.lane.b32.xlu0 %v1071, 64
        %v1142 = vpop.permute.xlu0 %1141
        %1143 = vrot.lane.b32.xlu0 %v1072, 64
        %v1144 = vpop.permute.xlu0 %1143
        %s1153 = smul.u32 %s416, 64
        %s1154 = smul.addr %s1153, 4
        %s1155 = scalar_lea.vmem %s7, %s1154
        %v1156 = vld [vmem:[%s1155] sm:$0xf]
        %v1157 = vld [vmem:[%s1155 + $0x4] sm:$0xf]
        %v1158 = vld [vmem:[%s1155 + $0x8] sm:$0xf]
        %v1159 = vld [vmem:[%s1155 + $0xc] sm:$0xf]
        %v1160 = vld [vmem:[%s1155 + $0x10] sm:$0xf]
        %v1161 = vld [vmem:[%s1155 + $0x14] sm:$0xf]
        %v1162 = vld [vmem:[%s1155 + $0x18] sm:$0xf]
        %v1163 = vld [vmem:[%s1155 + $0x1c] sm:$0xf]
        %v1164 = vld [vmem:[%s1155 + $0x20] sm:$0xf]
        %v1165 = vld [vmem:[%s1155 + $0x24] sm:$0xf]
        %v1166 = vld [vmem:[%s1155 + $0x28] sm:$0xf]
        %v1167 = vld [vmem:[%s1155 + $0x2c] sm:$0xf]
        %v1168 = vld [vmem:[%s1155 + $0x30] sm:$0xf]
        %v1169 = vld [vmem:[%s1155 + $0x34] sm:$0xf]
        %v1170 = vld [vmem:[%s1155 + $0x38] sm:$0xf]
        %v1171 = vld [vmem:[%s1155 + $0x3c] sm:$0xf]
        %v1172 = vld [vmem:[%s1155 + $0x40] sm:$0xf]
        %v1173 = vld [vmem:[%s1155 + $0x44] sm:$0xf]
        %v1174 = vld [vmem:[%s1155 + $0x48] sm:$0xf]
        %v1175 = vld [vmem:[%s1155 + $0x4c] sm:$0xf]
        %v1176 = vld [vmem:[%s1155 + $0x50] sm:$0xf]
        %v1177 = vld [vmem:[%s1155 + $0x54] sm:$0xf]
        %v1178 = vld [vmem:[%s1155 + $0x58] sm:$0xf]
        %v1179 = vld [vmem:[%s1155 + $0x5c] sm:$0xf]
        %v1180 = vld [vmem:[%s1155 + $0x60] sm:$0xf]
        %v1181 = vld [vmem:[%s1155 + $0x64] sm:$0xf]
        %v1182 = vld [vmem:[%s1155 + $0x68] sm:$0xf]
        %v1183 = vld [vmem:[%s1155 + $0x6c] sm:$0xf]
        %v1184 = vld [vmem:[%s1155 + $0x70] sm:$0xf]
        %v1185 = vld [vmem:[%s1155 + $0x74] sm:$0xf]
        %v1186 = vld [vmem:[%s1155 + $0x78] sm:$0xf]
        %v1187 = vld [vmem:[%s1155 + $0x7c] sm:$0xf]
        %v1188 = vld [vmem:[%s1155 + $0x80] sm:$0xf]
        %v1189 = vld [vmem:[%s1155 + $0x84] sm:$0xf]
        %v1190 = vld [vmem:[%s1155 + $0x88] sm:$0xf]
        %v1191 = vld [vmem:[%s1155 + $0x8c] sm:$0xf]
        %v1192 = vld [vmem:[%s1155 + $0x90] sm:$0xf]
        %v1193 = vld [vmem:[%s1155 + $0x94] sm:$0xf]
        %v1194 = vld [vmem:[%s1155 + $0x98] sm:$0xf]
        %v1195 = vld [vmem:[%s1155 + $0x9c] sm:$0xf]
        %v1196 = vld [vmem:[%s1155 + $0xa0] sm:$0xf]
        %v1197 = vld [vmem:[%s1155 + $0xa4] sm:$0xf]
        %v1198 = vld [vmem:[%s1155 + $0xa8] sm:$0xf]
        %v1199 = vld [vmem:[%s1155 + $0xac] sm:$0xf]
        %v1200 = vld [vmem:[%s1155 + $0xb0] sm:$0xf]
        %v1201 = vld [vmem:[%s1155 + $0xb4] sm:$0xf]
        %v1202 = vld [vmem:[%s1155 + $0xb8] sm:$0xf]
        %v1203 = vld [vmem:[%s1155 + $0xbc] sm:$0xf]
        %v1204 = vld [vmem:[%s1155 + $0xc0] sm:$0xf]
        %v1205 = vld [vmem:[%s1155 + $0xc4] sm:$0xf]
        %v1206 = vld [vmem:[%s1155 + $0xc8] sm:$0xf]
        %v1207 = vld [vmem:[%s1155 + $0xcc] sm:$0xf]
        %v1208 = vld [vmem:[%s1155 + $0xd0] sm:$0xf]
        %v1209 = vld [vmem:[%s1155 + $0xd4] sm:$0xf]
        %v1210 = vld [vmem:[%s1155 + $0xd8] sm:$0xf]
        %v1211 = vld [vmem:[%s1155 + $0xdc] sm:$0xf]
        %v1212 = vld [vmem:[%s1155 + $0xe0] sm:$0xf]
        %v1213 = vld [vmem:[%s1155 + $0xe4] sm:$0xf]
        %v1214 = vld [vmem:[%s1155 + $0xe8] sm:$0xf]
        %v1215 = vld [vmem:[%s1155 + $0xec] sm:$0xf]
        %v1216 = vld [vmem:[%s1155 + $0xf0] sm:$0xf]
        %v1217 = vld [vmem:[%s1155 + $0xf4] sm:$0xf]
        %v1218 = vld [vmem:[%s1155 + $0xf8] sm:$0xf]
        %v1219 = vld [vmem:[%s1155 + $0xfc] sm:$0xf]
        %v1252 = vunpack.c.l.b16 %v1156
        %v1253 = vunpack.c.l.b16 %v1157
        %v1254 = vunpack.c.l.b16 %v1158
        %v1255 = vunpack.c.l.b16 %v1159
        %v1256 = vunpack.c.l.b16 %v1160
        %v1257 = vunpack.c.l.b16 %v1161
        %v1258 = vunpack.c.l.b16 %v1162
        %v1259 = vunpack.c.l.b16 %v1163
        %v1260 = vunpack.c.l.b16 %v1164
        %v1261 = vunpack.c.l.b16 %v1165
        %v1262 = vunpack.c.l.b16 %v1166
        %v1263 = vunpack.c.l.b16 %v1167
        %v1264 = vunpack.c.l.b16 %v1168
        %v1265 = vunpack.c.l.b16 %v1169
        %v1266 = vunpack.c.l.b16 %v1170
        %v1267 = vunpack.c.l.b16 %v1171
        %v1268 = vunpack.c.l.b16 %v1172
        %v1269 = vunpack.c.l.b16 %v1173
        %v1270 = vunpack.c.l.b16 %v1174
        %v1271 = vunpack.c.l.b16 %v1175
        %v1272 = vunpack.c.l.b16 %v1176
        %v1273 = vunpack.c.l.b16 %v1177
        %v1274 = vunpack.c.l.b16 %v1178
        %v1275 = vunpack.c.l.b16 %v1179
        %v1276 = vunpack.c.l.b16 %v1180
        %v1277 = vunpack.c.l.b16 %v1181
        %v1278 = vunpack.c.l.b16 %v1182
        %v1279 = vunpack.c.l.b16 %v1183
        %v1280 = vunpack.c.l.b16 %v1184
        %v1281 = vunpack.c.l.b16 %v1185
        %v1282 = vunpack.c.l.b16 %v1186
        %v1283 = vunpack.c.l.b16 %v1187
        %v1284 = vpack.c.b16 %v1253, %v1252
        %v1285 = vpack.c.b16 %v1255, %v1254
        %v1286 = vpack.c.b16 %v1257, %v1256
        %v1287 = vpack.c.b16 %v1259, %v1258
        %v1288 = vpack.c.b16 %v1261, %v1260
        %v1289 = vpack.c.b16 %v1263, %v1262
        %v1290 = vpack.c.b16 %v1265, %v1264
        %v1291 = vpack.c.b16 %v1267, %v1266
        %v1292 = vpack.c.b16 %v1269, %v1268
        %v1293 = vpack.c.b16 %v1271, %v1270
        %v1294 = vpack.c.b16 %v1273, %v1272
        %v1295 = vpack.c.b16 %v1275, %v1274
        %v1296 = vpack.c.b16 %v1277, %v1276
        %v1297 = vpack.c.b16 %v1279, %v1278
        %v1298 = vpack.c.b16 %v1281, %v1280
        %v1299 = vpack.c.b16 %v1283, %v1282
        %vm1300 = vcmask 523264
        %v1302 = vsel %vm1300, %v1049, 0
        %v1305 = vsel %vm1300, %v1050, 0
        %v1308 = vsel %vm1300, %v1051, 0
        %v1311 = vsel %vm1300, %v1052, 0
        %v1314 = vsel %vm1300, %v1053, 0
        %v1317 = vsel %vm1300, %v1054, 0
        %v1320 = vsel %vm1300, %v1055, 0
        %v1323 = vsel %vm1300, %v1056, 0
        %v1326 = vsel %vm1300, %v1284, 0
        %v1329 = vsel %vm1300, %v1285, 0
        %v1332 = vsel %vm1300, %v1286, 0
        %v1335 = vsel %vm1300, %v1287, 0
        %v1338 = vsel %vm1300, %v1288, 0
        %v1341 = vsel %vm1300, %v1289, 0
        %v1344 = vsel %vm1300, %v1290, 0
        %v1347 = vsel %vm1300, %v1291, 0
        %v1350 = vsel %vm1300, %v1292, 0
        %v1353 = vsel %vm1300, %v1293, 0
        %v1356 = vsel %vm1300, %v1294, 0
        %v1359 = vsel %vm1300, %v1295, 0
        %v1362 = vsel %vm1300, %v1296, 0
        %v1365 = vsel %vm1300, %v1297, 0
        %v1368 = vsel %vm1300, %v1298, 0
        %v1371 = vsel %vm1300, %v1299, 0
        %1373 = vmatprep.subr.bf16.mxu0 0
        %1374 = vmatpush1.bf16.xpose.msra.mxu0 %v1326
        %1375 = vmatprep.subr.bf16.mxu0 0
        %1376 = vmatpush1.bf16.xpose.msra.mxu0 %v1329
        %1377 = vmatprep.subr.bf16.mxu0 0
        %1378 = vmatpush1.bf16.xpose.msra.mxu0 %v1332
        %1379 = vmatprep.subr.bf16.mxu0 0
        %1380 = vmatpush1.bf16.xpose.msra.mxu0 %v1335
        %1381 = vmatprep.subr.bf16.mxu0 0
        %1382 = vmatpush1.bf16.xpose.msra.mxu0 %v1338
        %1383 = vmatprep.subr.bf16.mxu0 0
        %1384 = vmatpush1.bf16.xpose.msra.mxu0 %v1341
        %1385 = vmatprep.subr.bf16.mxu0 0
        %1386 = vmatpush1.bf16.xpose.msra.mxu0 %v1344
        %1387 = vmatprep.subr.bf16.mxu0 0
        %1388 = vmatpush1.bf16.xpose.msra.mxu0 %v1347
        %1389 = vmatprep.subr.bf16.mxu0 0
        %1390 = vmatpush1.bf16.xpose.msra.mxu0 %v1350
        %1391 = vmatprep.subr.bf16.mxu0 0
        %1392 = vmatpush1.bf16.xpose.msra.mxu0 %v1353
        %1393 = vmatprep.subr.bf16.mxu0 0
        %1394 = vmatpush1.bf16.xpose.msra.mxu0 %v1356
        %1395 = vmatprep.subr.bf16.mxu0 0
        %1396 = vmatpush1.bf16.xpose.msra.mxu0 %v1359
        %1397 = vmatprep.subr.bf16.mxu0 0
        %1398 = vmatpush1.bf16.xpose.msra.mxu0 %v1362
        %1399 = vmatprep.subr.bf16.mxu0 0
        %1400 = vmatpush1.bf16.xpose.msra.mxu0 %v1365
        %1401 = vmatprep.subr.bf16.mxu0 0
        %1402 = vmatpush1.bf16.xpose.msra.mxu0 %v1368
        %1403 = vmatprep.subr.bf16.mxu0 0
        %1404 = vmatpush1.bf16.xpose.msra.mxu0 %v1371
        %1405 = vmatprep.mubr.bf16.mxu0 0
        %1406 = vmatmul.mubr.bf16.gmra.mrb[0].mxu0 %v1302
        %v1407 = vpop.f32.mrb[0].mxu0
        %v1408 = vadd.f32 0.0, %v1407
        %v1409 = vpop.f32.mrb[0].mxu0
        %v1410 = vadd.f32 0.0, %v1409
        %v1411 = vpop.f32.mrb[0].mxu0
        %v1412 = vadd.f32 0.0, %v1411
        %v1413 = vpop.f32.mrb[0].mxu0
        %v1414 = vadd.f32 0.0, %v1413
        %1415 = vmatprep.mubr.bf16.mxu0 0
        %1416 = vmatmul.mubr.bf16.gmra.mrb[0].mxu0 %v1305
        %v1417 = vpop.f32.mrb[0].mxu0
        %v1418 = vadd.f32 0.0, %v1417
        %v1419 = vpop.f32.mrb[0].mxu0
        %v1420 = vadd.f32 0.0, %v1419
        %v1421 = vpop.f32.mrb[0].mxu0
        %v1422 = vadd.f32 0.0, %v1421
        %v1423 = vpop.f32.mrb[0].mxu0
        %v1424 = vadd.f32 0.0, %v1423
        %1425 = vmatprep.mubr.bf16.mxu0 0
        %1426 = vmatmul.mubr.bf16.gmra.mrb[0].mxu0 %v1308
        %v1427 = vpop.f32.mrb[0].mxu0
        %v1428 = vadd.f32 0.0, %v1427
        %v1429 = vpop.f32.mrb[0].mxu0
        %v1430 = vadd.f32 0.0, %v1429
        %v1431 = vpop.f32.mrb[0].mxu0
        %v1432 = vadd.f32 0.0, %v1431
        %v1433 = vpop.f32.mrb[0].mxu0
        %v1434 = vadd.f32 0.0, %v1433
        %1435 = vmatprep.mubr.bf16.mxu0 0
        %1436 = vmatmul.mubr.bf16.gmra.mrb[0].mxu0 %v1311
        %v1437 = vpop.f32.mrb[0].mxu0
        %v1438 = vadd.f32 0.0, %v1437
        %v1439 = vpop.f32.mrb[0].mxu0
        %v1440 = vadd.f32 0.0, %v1439
        %v1441 = vpop.f32.mrb[0].mxu0
        %v1442 = vadd.f32 0.0, %v1441
        %v1443 = vpop.f32.mrb[0].mxu0
        %v1444 = vadd.f32 0.0, %v1443
        %1445 = vmatprep.mubr.bf16.mxu0 0
        %1446 = vmatmul.mubr.bf16.gmra.mrb[0].mxu0 %v1314
        %v1447 = vpop.f32.mrb[0].mxu0
        %v1448 = vadd.f32 0.0, %v1447
        %v1449 = vpop.f32.mrb[0].mxu0
        %v1450 = vadd.f32 0.0, %v1449
        %v1451 = vpop.f32.mrb[0].mxu0
        %v1452 = vadd.f32 0.0, %v1451
        %v1453 = vpop.f32.mrb[0].mxu0
        %v1454 = vadd.f32 0.0, %v1453
        %1455 = vmatprep.mubr.bf16.mxu0 0
        %1456 = vmatmul.mubr.bf16.gmra.mrb[0].mxu0 %v1317
        %v1457 = vpop.f32.mrb[0].mxu0
        %v1458 = vadd.f32 0.0, %v1457
        %v1459 = vpop.f32.mrb[0].mxu0
        %v1460 = vadd.f32 0.0, %v1459
        %v1461 = vpop.f32.mrb[0].mxu0
        %v1462 = vadd.f32 0.0, %v1461
        %v1463 = vpop.f32.mrb[0].mxu0
        %v1464 = vadd.f32 0.0, %v1463
        %1465 = vmatprep.mubr.bf16.mxu0 0
        %1466 = vmatmul.mubr.bf16.gmra.mrb[0].mxu0 %v1320
        %v1467 = vpop.f32.mrb[0].mxu0
        %v1468 = vadd.f32 0.0, %v1467
        %v1469 = vpop.f32.mrb[0].mxu0
        %v1470 = vadd.f32 0.0, %v1469
        %v1471 = vpop.f32.mrb[0].mxu0
        %v1472 = vadd.f32 0.0, %v1471
        %v1473 = vpop.f32.mrb[0].mxu0
        %v1474 = vadd.f32 0.0, %v1473
        %1475 = vmatprep.mubr.bf16.mxu0 0
        %1476 = vmatmul.mubr.bf16.gmra.mrb[0].mxu0 %v1323
        %v1477 = vpop.f32.mrb[0].mxu0
        %v1478 = vadd.f32 0.0, %v1477
        %v1479 = vpop.f32.mrb[0].mxu0
        %v1480 = vadd.f32 0.0, %v1479
        %v1481 = vpop.f32.mrb[0].mxu0
        %v1482 = vadd.f32 0.0, %v1481
        %v1483 = vpop.f32.mrb[0].mxu0
        %v1484 = vadd.f32 0.0, %v1483
        %1485 = vdwg.mxu0
        %v1518 = vunpack.c.l.b16 %v1188
        %v1519 = vunpack.c.l.b16 %v1189
        %v1520 = vunpack.c.l.b16 %v1190
        %v1521 = vunpack.c.l.b16 %v1191
        %v1522 = vunpack.c.l.b16 %v1192
        %v1523 = vunpack.c.l.b16 %v1193
        %v1524 = vunpack.c.l.b16 %v1194
        %v1525 = vunpack.c.l.b16 %v1195
        %v1526 = vunpack.c.l.b16 %v1196
        %v1527 = vunpack.c.l.b16 %v1197
        %v1528 = vunpack.c.l.b16 %v1198
        %v1529 = vunpack.c.l.b16 %v1199
        %v1530 = vunpack.c.l.b16 %v1200
        %v1531 = vunpack.c.l.b16 %v1201
        %v1532 = vunpack.c.l.b16 %v1202
        %v1533 = vunpack.c.l.b16 %v1203
        %v1534 = vunpack.c.l.b16 %v1204
        %v1535 = vunpack.c.l.b16 %v1205
        %v1536 = vunpack.c.l.b16 %v1206
        %v1537 = vunpack.c.l.b16 %v1207
        %v1538 = vunpack.c.l.b16 %v1208
        %v1539 = vunpack.c.l.b16 %v1209
        %v1540 = vunpack.c.l.b16 %v1210
        %v1541 = vunpack.c.l.b16 %v1211
        %v1542 = vunpack.c.l.b16 %v1212
        %v1543 = vunpack.c.l.b16 %v1213
        %v1544 = vunpack.c.l.b16 %v1214
        %v1545 = vunpack.c.l.b16 %v1215
        %v1546 = vunpack.c.l.b16 %v1216
        %v1547 = vunpack.c.l.b16 %v1217
        %v1548 = vunpack.c.l.b16 %v1218
        %v1549 = vunpack.c.l.b16 %v1219
        %v1550 = vpack.c.b16 %v1519, %v1518
        %v1551 = vpack.c.b16 %v1521, %v1520
        %v1552 = vpack.c.b16 %v1523, %v1522
        %v1553 = vpack.c.b16 %v1525, %v1524
        %v1554 = vpack.c.b16 %v1527, %v1526
        %v1555 = vpack.c.b16 %v1529, %v1528
        %v1556 = vpack.c.b16 %v1531, %v1530
        %v1557 = vpack.c.b16 %v1533, %v1532
        %v1558 = vpack.c.b16 %v1535, %v1534
        %v1559 = vpack.c.b16 %v1537, %v1536
        %v1560 = vpack.c.b16 %v1539, %v1538
        %v1561 = vpack.c.b16 %v1541, %v1540
        %v1562 = vpack.c.b16 %v1543, %v1542
        %v1563 = vpack.c.b16 %v1545, %v1544
        %v1564 = vpack.c.b16 %v1547, %v1546
        %v1565 = vpack.c.b16 %v1549, %v1548
        %v1567 = vsel %vm1300, %v1082, 0
        %v1570 = vsel %vm1300, %v1084, 0
        %v1573 = vsel %vm1300, %v1086, 0
        %v1576 = vsel %vm1300, %v1088, 0
        %v1579 = vsel %vm1300, %v1090, 0
        %v1582 = vsel %vm1300, %v1092, 0
        %v1585 = vsel %vm1300, %v1094, 0
        %v1588 = vsel %vm1300, %v1096, 0
        %v1591 = vsel %vm1300, %v1550, 0
        %v1594 = vsel %vm1300, %v1551, 0
        %v1597 = vsel %vm1300, %v1552, 0
        %v1600 = vsel %vm1300, %v1553, 0
        %v1603 = vsel %vm1300, %v1554, 0
        %v1606 = vsel %vm1300, %v1555, 0
        %v1609 = vsel %vm1300, %v1556, 0
        %v1612 = vsel %vm1300, %v1557, 0
        %v1615 = vsel %vm1300, %v1558, 0
        %v1618 = vsel %vm1300, %v1559, 0
        %v1621 = vsel %vm1300, %v1560, 0
        %v1624 = vsel %vm1300, %v1561, 0
        %v1627 = vsel %vm1300, %v1562, 0
        %v1630 = vsel %vm1300, %v1563, 0
        %v1633 = vsel %vm1300, %v1564, 0
        %v1636 = vsel %vm1300, %v1565, 0
        %1638 = vmatprep.subr.bf16.mxu0 0
        %1639 = vmatpush1.bf16.xpose.msra.mxu0 %v1591
        %1640 = vmatprep.subr.bf16.mxu0 0
        %1641 = vmatpush1.bf16.xpose.msra.mxu0 %v1594
        %1642 = vmatprep.subr.bf16.mxu0 0
        %1643 = vmatpush1.bf16.xpose.msra.mxu0 %v1597
        %1644 = vmatprep.subr.bf16.mxu0 0
        %1645 = vmatpush1.bf16.xpose.msra.mxu0 %v1600
        %1646 = vmatprep.subr.bf16.mxu0 0
        %1647 = vmatpush1.bf16.xpose.msra.mxu0 %v1603
        %1648 = vmatprep.subr.bf16.mxu0 0
        %1649 = vmatpush1.bf16.xpose.msra.mxu0 %v1606
        %1650 = vmatprep.subr.bf16.mxu0 0
        %1651 = vmatpush1.bf16.xpose.msra.mxu0 %v1609
        %1652 = vmatprep.subr.bf16.mxu0 0
        %1653 = vmatpush1.bf16.xpose.msra.mxu0 %v1612
        %1654 = vmatprep.subr.bf16.mxu0 0
        %1655 = vmatpush1.bf16.xpose.msra.mxu0 %v1615
        %1656 = vmatprep.subr.bf16.mxu0 0
        %1657 = vmatpush1.bf16.xpose.msra.mxu0 %v1618
        %1658 = vmatprep.subr.bf16.mxu0 0
        %1659 = vmatpush1.bf16.xpose.msra.mxu0 %v1621
        %1660 = vmatprep.subr.bf16.mxu0 0
        %1661 = vmatpush1.bf16.xpose.msra.mxu0 %v1624
        %1662 = vmatprep.subr.bf16.mxu0 0
        %1663 = vmatpush1.bf16.xpose.msra.mxu0 %v1627
        %1664 = vmatprep.subr.bf16.mxu0 0
        %1665 = vmatpush1.bf16.xpose.msra.mxu0 %v1630
        %1666 = vmatprep.subr.bf16.mxu0 0
        %1667 = vmatpush1.bf16.xpose.msra.mxu0 %v1633
        %1668 = vmatprep.subr.bf16.mxu0 0
        %1669 = vmatpush1.bf16.xpose.msra.mxu0 %v1636
        %1670 = vmatprep.mubr.bf16.mxu0 0
        %1671 = vmatmul.mubr.bf16.gmra.mrb[0].mxu0 %v1567
        %v1672 = vpop.f32.mrb[0].mxu0
        %v1673 = vadd.f32 0.0, %v1672
        %v1674 = vpop.f32.mrb[0].mxu0
        %v1675 = vadd.f32 0.0, %v1674
        %v1676 = vpop.f32.mrb[0].mxu0
        %v1677 = vadd.f32 0.0, %v1676
        %v1678 = vpop.f32.mrb[0].mxu0
        %v1679 = vadd.f32 0.0, %v1678
        %1680 = vmatprep.mubr.bf16.mxu0 0
        %1681 = vmatmul.mubr.bf16.gmra.mrb[0].mxu0 %v1570
        %v1682 = vpop.f32.mrb[0].mxu0
        %v1683 = vadd.f32 0.0, %v1682
        %v1684 = vpop.f32.mrb[0].mxu0
        %v1685 = vadd.f32 0.0, %v1684
        %v1686 = vpop.f32.mrb[0].mxu0
        %v1687 = vadd.f32 0.0, %v1686
        %v1688 = vpop.f32.mrb[0].mxu0
        %v1689 = vadd.f32 0.0, %v1688
        %1690 = vmatprep.mubr.bf16.mxu0 0
        %1691 = vmatmul.mubr.bf16.gmra.mrb[0].mxu0 %v1573
        %v1692 = vpop.f32.mrb[0].mxu0
        %v1693 = vadd.f32 0.0, %v1692
        %v1694 = vpop.f32.mrb[0].mxu0
        %v1695 = vadd.f32 0.0, %v1694
        %v1696 = vpop.f32.mrb[0].mxu0
        %v1697 = vadd.f32 0.0, %v1696
        %v1698 = vpop.f32.mrb[0].mxu0
        %v1699 = vadd.f32 0.0, %v1698
        %1700 = vmatprep.mubr.bf16.mxu0 0
        %1701 = vmatmul.mubr.bf16.gmra.mrb[0].mxu0 %v1576
        %v1702 = vpop.f32.mrb[0].mxu0
        %v1703 = vadd.f32 0.0, %v1702
        %v1704 = vpop.f32.mrb[0].mxu0
        %v1705 = vadd.f32 0.0, %v1704
        %v1706 = vpop.f32.mrb[0].mxu0
        %v1707 = vadd.f32 0.0, %v1706
        %v1708 = vpop.f32.mrb[0].mxu0
        %v1709 = vadd.f32 0.0, %v1708
        %1710 = vmatprep.mubr.bf16.mxu0 0
        %1711 = vmatmul.mubr.bf16.gmra.mrb[0].mxu0 %v1579
        %v1712 = vpop.f32.mrb[0].mxu0
        %v1713 = vadd.f32 0.0, %v1712
        %v1714 = vpop.f32.mrb[0].mxu0
        %v1715 = vadd.f32 0.0, %v1714
        %v1716 = vpop.f32.mrb[0].mxu0
        %v1717 = vadd.f32 0.0, %v1716
        %v1718 = vpop.f32.mrb[0].mxu0
        %v1719 = vadd.f32 0.0, %v1718
        %1720 = vmatprep.mubr.bf16.mxu0 0
        %1721 = vmatmul.mubr.bf16.gmra.mrb[0].mxu0 %v1582
        %v1722 = vpop.f32.mrb[0].mxu0
        %v1723 = vadd.f32 0.0, %v1722
        %v1724 = vpop.f32.mrb[0].mxu0
        %v1725 = vadd.f32 0.0, %v1724
        %v1726 = vpop.f32.mrb[0].mxu0
        %v1727 = vadd.f32 0.0, %v1726
        %v1728 = vpop.f32.mrb[0].mxu0
        %v1729 = vadd.f32 0.0, %v1728
        %1730 = vmatprep.mubr.bf16.mxu0 0
        %1731 = vmatmul.mubr.bf16.gmra.mrb[0].mxu0 %v1585
        %v1732 = vpop.f32.mrb[0].mxu0
        %v1733 = vadd.f32 0.0, %v1732
        %v1734 = vpop.f32.mrb[0].mxu0
        %v1735 = vadd.f32 0.0, %v1734
        %v1736 = vpop.f32.mrb[0].mxu0
        %v1737 = vadd.f32 0.0, %v1736
        %v1738 = vpop.f32.mrb[0].mxu0
        %v1739 = vadd.f32 0.0, %v1738
        %1740 = vmatprep.mubr.bf16.mxu0 0
        %1741 = vmatmul.mubr.bf16.gmra.mrb[0].mxu0 %v1588
        %v1742 = vpop.f32.mrb[0].mxu0
        %v1743 = vadd.f32 0.0, %v1742
        %v1744 = vpop.f32.mrb[0].mxu0
        %v1745 = vadd.f32 0.0, %v1744
        %v1746 = vpop.f32.mrb[0].mxu0
        %v1747 = vadd.f32 0.0, %v1746
        %v1748 = vpop.f32.mrb[0].mxu0
        %v1749 = vadd.f32 0.0, %v1748
        %1750 = vdwg.mxu0
        %1752 = vrot.lane.b32.xlu0 %v1408, 256
        %v1753 = vpop.permute.xlu0 %1752
        %1755 = vrot.lane.b32.xlu0 %v1410, 256
        %v1756 = vpop.permute.xlu0 %1755
        %v1757 = vlaneseq
        %v1758 = vshrl.u32 %v1757, 7
        %v1759 = vlaneseq
        %v1760 = vand.u32 %v1759, 127
        %vm1761 = vcmp.lt.s32.totalorder %v1760, %v1758
        %v1762 = vsel %vm1761, %v1753, %v1756
        %v1763 = vsel %vm1761, %v1756, %v1753
        %s1765 = sor.u32 256, 8
        %1766 = vrot.lane.b32.xlu0 %v1412, %s1765
        %v1767 = vpop.permute.xlu0 %1766
        %s1769 = sor.u32 256, 8
        %1770 = vrot.lane.b32.xlu0 %v1414, %s1769
        %v1771 = vpop.permute.xlu0 %1770
        %v1772 = vadd.s32 %v1758, 8
        %vm1773 = vcmp.lt.s32.totalorder %v1760, %v1772
        %v1774 = vsel %vm1773, %v1767, %v1771
        %v1775 = vsel %vm1773, %v1771, %v1767
        %s1777 = sor.u32 256, 16
        %1778 = vrot.lane.b32.xlu0 %v1418, %s1777
        %v1779 = vpop.permute.xlu0 %1778
        %s1781 = sor.u32 256, 16
        %1782 = vrot.lane.b32.xlu0 %v1420, %s1781
        %v1783 = vpop.permute.xlu0 %1782
        %v1784 = vadd.s32 %v1758, 16
        %vm1785 = vcmp.lt.s32.totalorder %v1760, %v1784
        %v1786 = vsel %vm1785, %v1779, %v1783
        %v1787 = vsel %vm1785, %v1783, %v1779
        %s1789 = sor.u32 256, 24
        %1790 = vrot.lane.b32.xlu0 %v1422, %s1789
        %v1791 = vpop.permute.xlu0 %1790
        %s1793 = sor.u32 256, 24
        %1794 = vrot.lane.b32.xlu0 %v1424, %s1793
        %v1795 = vpop.permute.xlu0 %1794
        %v1796 = vadd.s32 %v1758, 24
        %vm1797 = vcmp.lt.s32.totalorder %v1760, %v1796
        %v1798 = vsel %vm1797, %v1791, %v1795
        %v1799 = vsel %vm1797, %v1795, %v1791
        %s1801 = sor.u32 256, 32
        %1802 = vrot.lane.b32.xlu0 %v1428, %s1801
        %v1803 = vpop.permute.xlu0 %1802
        %s1805 = sor.u32 256, 32
        %1806 = vrot.lane.b32.xlu0 %v1430, %s1805
        %v1807 = vpop.permute.xlu0 %1806
        %v1808 = vadd.s32 %v1758, 32
        %vm1809 = vcmp.lt.s32.totalorder %v1760, %v1808
        %v1810 = vsel %vm1809, %v1803, %v1807
        %v1811 = vsel %vm1809, %v1807, %v1803
        %s1813 = sor.u32 256, 40
        %1814 = vrot.lane.b32.xlu0 %v1432, %s1813
        %v1815 = vpop.permute.xlu0 %1814
        %s1817 = sor.u32 256, 40
        %1818 = vrot.lane.b32.xlu0 %v1434, %s1817
        %v1819 = vpop.permute.xlu0 %1818
        %v1820 = vadd.s32 %v1758, 40
        %vm1821 = vcmp.lt.s32.totalorder %v1760, %v1820
        %v1822 = vsel %vm1821, %v1815, %v1819
        %v1823 = vsel %vm1821, %v1819, %v1815
        %s1825 = sor.u32 256, 48
        %1826 = vrot.lane.b32.xlu0 %v1438, %s1825
        %v1827 = vpop.permute.xlu0 %1826
        %s1829 = sor.u32 256, 48
        %1830 = vrot.lane.b32.xlu0 %v1440, %s1829
        %v1831 = vpop.permute.xlu0 %1830
        %v1832 = vadd.s32 %v1758, 48
        %vm1833 = vcmp.lt.s32.totalorder %v1760, %v1832
        %v1834 = vsel %vm1833, %v1827, %v1831
        %v1835 = vsel %vm1833, %v1831, %v1827
        %s1837 = sor.u32 256, 56
        %1838 = vrot.lane.b32.xlu0 %v1442, %s1837
        %v1839 = vpop.permute.xlu0 %1838
        %s1841 = sor.u32 256, 56
        %1842 = vrot.lane.b32.xlu0 %v1444, %s1841
        %v1843 = vpop.permute.xlu0 %1842
        %v1844 = vadd.s32 %v1758, 56
        %vm1845 = vcmp.lt.s32.totalorder %v1760, %v1844
        %v1846 = vsel %vm1845, %v1839, %v1843
        %v1847 = vsel %vm1845, %v1843, %v1839
        %s1849 = sor.u32 256, 64
        %1850 = vrot.lane.b32.xlu0 %v1448, %s1849
        %v1851 = vpop.permute.xlu0 %1850
        %s1853 = sor.u32 256, 64
        %1854 = vrot.lane.b32.xlu0 %v1450, %s1853
        %v1855 = vpop.permute.xlu0 %1854
        %v1856 = vadd.s32 %v1758, 64
        %vm1857 = vcmp.lt.s32.totalorder %v1760, %v1856
        %v1858 = vsel %vm1857, %v1851, %v1855
        %v1859 = vsel %vm1857, %v1855, %v1851
        %s1861 = sor.u32 256, 72
        %1862 = vrot.lane.b32.xlu0 %v1452, %s1861
        %v1863 = vpop.permute.xlu0 %1862
        %s1865 = sor.u32 256, 72
        %1866 = vrot.lane.b32.xlu0 %v1454, %s1865
        %v1867 = vpop.permute.xlu0 %1866
        %v1868 = vadd.s32 %v1758, 72
        %vm1869 = vcmp.lt.s32.totalorder %v1760, %v1868
        %v1870 = vsel %vm1869, %v1863, %v1867
        %v1871 = vsel %vm1869, %v1867, %v1863
        %s1873 = sor.u32 256, 80
        %1874 = vrot.lane.b32.xlu0 %v1458, %s1873
        %v1875 = vpop.permute.xlu0 %1874
        %s1877 = sor.u32 256, 80
        %1878 = vrot.lane.b32.xlu0 %v1460, %s1877
        %v1879 = vpop.permute.xlu0 %1878
        %v1880 = vadd.s32 %v1758, 80
        %vm1881 = vcmp.lt.s32.totalorder %v1760, %v1880
        %v1882 = vsel %vm1881, %v1875, %v1879
        %v1883 = vsel %vm1881, %v1879, %v1875
        %s1885 = sor.u32 256, 88
        %1886 = vrot.lane.b32.xlu0 %v1462, %s1885
        %v1887 = vpop.permute.xlu0 %1886
        %s1889 = sor.u32 256, 88
        %1890 = vrot.lane.b32.xlu0 %v1464, %s1889
        %v1891 = vpop.permute.xlu0 %1890
        %v1892 = vadd.s32 %v1758, 88
        %vm1893 = vcmp.lt.s32.totalorder %v1760, %v1892
        %v1894 = vsel %vm1893, %v1887, %v1891
        %v1895 = vsel %vm1893, %v1891, %v1887
        %s1897 = sor.u32 256, 96
        %1898 = vrot.lane.b32.xlu0 %v1468, %s1897
        %v1899 = vpop.permute.xlu0 %1898
        %s1901 = sor.u32 256, 96
        %1902 = vrot.lane.b32.xlu0 %v1470, %s1901
        %v1903 = vpop.permute.xlu0 %1902
        %v1904 = vadd.s32 %v1758, 96
        %vm1905 = vcmp.lt.s32.totalorder %v1760, %v1904
        %v1906 = vsel %vm1905, %v1899, %v1903
        %v1907 = vsel %vm1905, %v1903, %v1899
        %s1909 = sor.u32 256, 104
        %1910 = vrot.lane.b32.xlu0 %v1472, %s1909
        %v1911 = vpop.permute.xlu0 %1910
        %s1913 = sor.u32 256, 104
        %1914 = vrot.lane.b32.xlu0 %v1474, %s1913
        %v1915 = vpop.permute.xlu0 %1914
        %v1916 = vadd.s32 %v1758, 104
        %vm1917 = vcmp.lt.s32.totalorder %v1760, %v1916
        %v1918 = vsel %vm1917, %v1911, %v1915
        %v1919 = vsel %vm1917, %v1915, %v1911
        %s1921 = sor.u32 256, 112
        %1922 = vrot.lane.b32.xlu0 %v1478, %s1921
        %v1923 = vpop.permute.xlu0 %1922
        %s1925 = sor.u32 256, 112
        %1926 = vrot.lane.b32.xlu0 %v1480, %s1925
        %v1927 = vpop.permute.xlu0 %1926
        %v1928 = vadd.s32 %v1758, 112
        %vm1929 = vcmp.lt.s32.totalorder %v1760, %v1928
        %v1930 = vsel %vm1929, %v1923, %v1927
        %v1931 = vsel %vm1929, %v1927, %v1923
        %s1933 = sor.u32 256, 120
        %1934 = vrot.lane.b32.xlu0 %v1482, %s1933
        %v1935 = vpop.permute.xlu0 %1934
        %s1937 = sor.u32 256, 120
        %1938 = vrot.lane.b32.xlu0 %v1484, %s1937
        %v1939 = vpop.permute.xlu0 %1938
        %v1940 = vadd.s32 %v1758, 120
        %vm1941 = vcmp.lt.s32.totalorder %v1760, %v1940
        %v1942 = vsel %vm1941, %v1935, %v1939
        %v1943 = vsel %vm1941, %v1939, %v1935
        %1945 = vrot.lane.b32.xlu0 %v1673, 256
        %v1946 = vpop.permute.xlu0 %1945
        %1948 = vrot.lane.b32.xlu0 %v1675, 256
        %v1949 = vpop.permute.xlu0 %1948
        %v1950 = vsel %vm1761, %v1946, %v1949
        %v1951 = vsel %vm1761, %v1949, %v1946
        %s1953 = sor.u32 256, 8
        %1954 = vrot.lane.b32.xlu0 %v1677, %s1953
        %v1955 = vpop.permute.xlu0 %1954
        %s1957 = sor.u32 256, 8
        %1958 = vrot.lane.b32.xlu0 %v1679, %s1957
        %v1959 = vpop.permute.xlu0 %1958
        %v1960 = vsel %vm1773, %v1955, %v1959
        %v1961 = vsel %vm1773, %v1959, %v1955
        %s1963 = sor.u32 256, 16
        %1964 = vrot.lane.b32.xlu0 %v1683, %s1963
        %v1965 = vpop.permute.xlu0 %1964
        %s1967 = sor.u32 256, 16
        %1968 = vrot.lane.b32.xlu0 %v1685, %s1967
        %v1969 = vpop.permute.xlu0 %1968
        %v1970 = vsel %vm1785, %v1965, %v1969
        %v1971 = vsel %vm1785, %v1969, %v1965
        %s1973 = sor.u32 256, 24
        %1974 = vrot.lane.b32.xlu0 %v1687, %s1973
        %v1975 = vpop.permute.xlu0 %1974
        %s1977 = sor.u32 256, 24
        %1978 = vrot.lane.b32.xlu0 %v1689, %s1977
        %v1979 = vpop.permute.xlu0 %1978
        %v1980 = vsel %vm1797, %v1975, %v1979
        %v1981 = vsel %vm1797, %v1979, %v1975
        %s1983 = sor.u32 256, 32
        %1984 = vrot.lane.b32.xlu0 %v1693, %s1983
        %v1985 = vpop.permute.xlu0 %1984
        %s1987 = sor.u32 256, 32
        %1988 = vrot.lane.b32.xlu0 %v1695, %s1987
        %v1989 = vpop.permute.xlu0 %1988
        %v1990 = vsel %vm1809, %v1985, %v1989
        %v1991 = vsel %vm1809, %v1989, %v1985
        %s1993 = sor.u32 256, 40
        %1994 = vrot.lane.b32.xlu0 %v1697, %s1993
        %v1995 = vpop.permute.xlu0 %1994
        %s1997 = sor.u32 256, 40
        %1998 = vrot.lane.b32.xlu0 %v1699, %s1997
        %v1999 = vpop.permute.xlu0 %1998
        %v2000 = vsel %vm1821, %v1995, %v1999
        %v2001 = vsel %vm1821, %v1999, %v1995
        %s2003 = sor.u32 256, 48
        %2004 = vrot.lane.b32.xlu0 %v1703, %s2003
        %v2005 = vpop.permute.xlu0 %2004
        %s2007 = sor.u32 256, 48
        %2008 = vrot.lane.b32.xlu0 %v1705, %s2007
        %v2009 = vpop.permute.xlu0 %2008
        %v2010 = vsel %vm1833, %v2005, %v2009
        %v2011 = vsel %vm1833, %v2009, %v2005
        %s2013 = sor.u32 256, 56
        %2014 = vrot.lane.b32.xlu0 %v1707, %s2013
        %v2015 = vpop.permute.xlu0 %2014
        %s2017 = sor.u32 256, 56
        %2018 = vrot.lane.b32.xlu0 %v1709, %s2017
        %v2019 = vpop.permute.xlu0 %2018
        %v2020 = vsel %vm1845, %v2015, %v2019
        %v2021 = vsel %vm1845, %v2019, %v2015
        %s2023 = sor.u32 256, 64
        %2024 = vrot.lane.b32.xlu0 %v1713, %s2023
        %v2025 = vpop.permute.xlu0 %2024
        %s2027 = sor.u32 256, 64
        %2028 = vrot.lane.b32.xlu0 %v1715, %s2027
        %v2029 = vpop.permute.xlu0 %2028
        %v2030 = vsel %vm1857, %v2025, %v2029
        %v2031 = vsel %vm1857, %v2029, %v2025
        %s2033 = sor.u32 256, 72
        %2034 = vrot.lane.b32.xlu0 %v1717, %s2033
        %v2035 = vpop.permute.xlu0 %2034
        %s2037 = sor.u32 256, 72
        %2038 = vrot.lane.b32.xlu0 %v1719, %s2037
        %v2039 = vpop.permute.xlu0 %2038
        %v2040 = vsel %vm1869, %v2035, %v2039
        %v2041 = vsel %vm1869, %v2039, %v2035
        %s2043 = sor.u32 256, 80
        %2044 = vrot.lane.b32.xlu0 %v1723, %s2043
        %v2045 = vpop.permute.xlu0 %2044
        %s2047 = sor.u32 256, 80
        %2048 = vrot.lane.b32.xlu0 %v1725, %s2047
        %v2049 = vpop.permute.xlu0 %2048
        %v2050 = vsel %vm1881, %v2045, %v2049
        %v2051 = vsel %vm1881, %v2049, %v2045
        %s2053 = sor.u32 256, 88
        %2054 = vrot.lane.b32.xlu0 %v1727, %s2053
        %v2055 = vpop.permute.xlu0 %2054
        %s2057 = sor.u32 256, 88
        %2058 = vrot.lane.b32.xlu0 %v1729, %s2057
        %v2059 = vpop.permute.xlu0 %2058
        %v2060 = vsel %vm1893, %v2055, %v2059
        %v2061 = vsel %vm1893, %v2059, %v2055
        %s2063 = sor.u32 256, 96
        %2064 = vrot.lane.b32.xlu0 %v1733, %s2063
        %v2065 = vpop.permute.xlu0 %2064
        %s2067 = sor.u32 256, 96
        %2068 = vrot.lane.b32.xlu0 %v1735, %s2067
        %v2069 = vpop.permute.xlu0 %2068
        %v2070 = vsel %vm1905, %v2065, %v2069
        %v2071 = vsel %vm1905, %v2069, %v2065
        %s2073 = sor.u32 256, 104
        %2074 = vrot.lane.b32.xlu0 %v1737, %s2073
        %v2075 = vpop.permute.xlu0 %2074
        %s2077 = sor.u32 256, 104
        %2078 = vrot.lane.b32.xlu0 %v1739, %s2077
        %v2079 = vpop.permute.xlu0 %2078
        %v2080 = vsel %vm1917, %v2075, %v2079
        %v2081 = vsel %vm1917, %v2079, %v2075
        %s2083 = sor.u32 256, 112
        %2084 = vrot.lane.b32.xlu0 %v1743, %s2083
        %v2085 = vpop.permute.xlu0 %2084
        %s2087 = sor.u32 256, 112
        %2088 = vrot.lane.b32.xlu0 %v1745, %s2087
        %v2089 = vpop.permute.xlu0 %2088
        %v2090 = vsel %vm1929, %v2085, %v2089
        %v2091 = vsel %vm1929, %v2089, %v2085
        %s2093 = sor.u32 256, 120
        %2094 = vrot.lane.b32.xlu0 %v1747, %s2093
        %v2095 = vpop.permute.xlu0 %2094
        %s2097 = sor.u32 256, 120
        %2098 = vrot.lane.b32.xlu0 %v1749, %s2097
        %v2099 = vpop.permute.xlu0 %2098
        %v2100 = vsel %vm1941, %v2095, %v2099
        %v2101 = vsel %vm1941, %v2099, %v2095
        %2134 = vrot.lane.b32.xlu0 %v1763, 1
        %v2135 = vpop.permute.xlu0 %2134
        %2136 = vrot.lane.b32.xlu0 %v1762, 1
        %v2137 = vpop.permute.xlu0 %2136
        %2138 = vrot.lane.b32.xlu0 %v1775, 1
        %v2139 = vpop.permute.xlu0 %2138
        %2140 = vrot.lane.b32.xlu0 %v1774, 1
        %v2141 = vpop.permute.xlu0 %2140
        %2142 = vrot.lane.b32.xlu0 %v1787, 1
        %v2143 = vpop.permute.xlu0 %2142
        %2144 = vrot.lane.b32.xlu0 %v1786, 1
        %v2145 = vpop.permute.xlu0 %2144
        %2146 = vrot.lane.b32.xlu0 %v1799, 1
        %v2147 = vpop.permute.xlu0 %2146
        %2148 = vrot.lane.b32.xlu0 %v1798, 1
        %v2149 = vpop.permute.xlu0 %2148
        %2150 = vrot.lane.b32.xlu0 %v1811, 1
        %v2151 = vpop.permute.xlu0 %2150
        %2152 = vrot.lane.b32.xlu0 %v1810, 1
        %v2153 = vpop.permute.xlu0 %2152
        %2154 = vrot.lane.b32.xlu0 %v1823, 1
        %v2155 = vpop.permute.xlu0 %2154
        %2156 = vrot.lane.b32.xlu0 %v1822, 1
        %v2157 = vpop.permute.xlu0 %2156
        %2158 = vrot.lane.b32.xlu0 %v1835, 1
        %v2159 = vpop.permute.xlu0 %2158
        %2160 = vrot.lane.b32.xlu0 %v1834, 1
        %v2161 = vpop.permute.xlu0 %2160
        %2162 = vrot.lane.b32.xlu0 %v1847, 1
        %v2163 = vpop.permute.xlu0 %2162
        %2164 = vrot.lane.b32.xlu0 %v1846, 1
        %v2165 = vpop.permute.xlu0 %2164
        %2166 = vrot.lane.b32.xlu0 %v1859, 1
        %v2167 = vpop.permute.xlu0 %2166
        %2168 = vrot.lane.b32.xlu0 %v1858, 1
        %v2169 = vpop.permute.xlu0 %2168
        %2170 = vrot.lane.b32.xlu0 %v1871, 1
        %v2171 = vpop.permute.xlu0 %2170
        %2172 = vrot.lane.b32.xlu0 %v1870, 1
        %v2173 = vpop.permute.xlu0 %2172
        %2174 = vrot.lane.b32.xlu0 %v1883, 1
        %v2175 = vpop.permute.xlu0 %2174
        %2176 = vrot.lane.b32.xlu0 %v1882, 1
        %v2177 = vpop.permute.xlu0 %2176
        %2178 = vrot.lane.b32.xlu0 %v1895, 1
        %v2179 = vpop.permute.xlu0 %2178
        %2180 = vrot.lane.b32.xlu0 %v1894, 1
        %v2181 = vpop.permute.xlu0 %2180
        %2182 = vrot.lane.b32.xlu0 %v1907, 1
        %v2183 = vpop.permute.xlu0 %2182
        %2184 = vrot.lane.b32.xlu0 %v1906, 1
        %v2185 = vpop.permute.xlu0 %2184
        %2186 = vrot.lane.b32.xlu0 %v1919, 1
        %v2187 = vpop.permute.xlu0 %2186
        %2188 = vrot.lane.b32.xlu0 %v1918, 1
        %v2189 = vpop.permute.xlu0 %2188
        %2190 = vrot.lane.b32.xlu0 %v1931, 1
        %v2191 = vpop.permute.xlu0 %2190
        %2192 = vrot.lane.b32.xlu0 %v1930, 1
        %v2193 = vpop.permute.xlu0 %2192
        %2194 = vrot.lane.b32.xlu0 %v1943, 1
        %v2195 = vpop.permute.xlu0 %2194
        %2196 = vrot.lane.b32.xlu0 %v1942, 1
        %v2197 = vpop.permute.xlu0 %2196
        %vm2198 = vcmask 7168
        %v2199 = vsel %vm2198, %v2135, %v2137
        %v2200 = vsel %vm2198, %v2139, %v2141
        %v2201 = vsel %vm2198, %v2143, %v2145
        %v2202 = vsel %vm2198, %v2147, %v2149
        %v2203 = vsel %vm2198, %v2151, %v2153
        %v2204 = vsel %vm2198, %v2155, %v2157
        %v2205 = vsel %vm2198, %v2159, %v2161
        %v2206 = vsel %vm2198, %v2163, %v2165
        %v2207 = vsel %vm2198, %v2167, %v2169
        %v2208 = vsel %vm2198, %v2171, %v2173
        %v2209 = vsel %vm2198, %v2175, %v2177
        %v2210 = vsel %vm2198, %v2179, %v2181
        %v2211 = vsel %vm2198, %v2183, %v2185
        %v2212 = vsel %vm2198, %v2187, %v2189
        %v2213 = vsel %vm2198, %v2191, %v2193
        %v2214 = vsel %vm2198, %v2195, %v2197
        %v2232 = vsel %vm1300, %v1057, 0
        %v2235 = vsel %vm1300, %v1058, 0
        %v2238 = vsel %vm1300, %v1059, 0
        %v2241 = vsel %vm1300, %v1060, 0
        %v2244 = vsel %vm1300, %v1061, 0
        %v2247 = vsel %vm1300, %v1062, 0
        %v2250 = vsel %vm1300, %v1063, 0
        %v2253 = vsel %vm1300, %v1064, 0
        %2255 = vmatprep.subr.bf16.mxu0 0
        %2256 = vmatpush1.bf16.xpose.msra.mxu0 %v2232
        %2257 = vmatprep.subr.bf16.mxu0 0
        %2258 = vmatpush1.bf16.xpose.msra.mxu0 %v2235
        %2259 = vmatprep.subr.bf16.mxu0 0
        %2260 = vmatpush1.bf16.xpose.msra.mxu0 %v2238
        %2261 = vmatprep.subr.bf16.mxu0 0
        %2262 = vmatpush1.bf16.xpose.msra.mxu0 %v2241
        %2263 = vmatprep.subr.bf16.mxu0 0
        %2264 = vmatpush1.bf16.xpose.msra.mxu0 %v2244
        %2265 = vmatprep.subr.bf16.mxu0 0
        %2266 = vmatpush1.bf16.xpose.msra.mxu0 %v2247
        %2267 = vmatprep.subr.bf16.mxu0 0
        %2268 = vmatpush1.bf16.xpose.msra.mxu0 %v2250
        %2269 = vmatprep.subr.bf16.mxu0 0
        %2270 = vmatpush1.bf16.xpose.msra.mxu0 %v2253
        %2271 = vmatprep.subr.bf16.mxu0 0
        %2272 = vmatpush1.bf16.xpose.msra.mxu0 0
        %2273 = vmatprep.subr.bf16.mxu0 0
        %2274 = vmatpush1.bf16.xpose.msra.mxu0 0
        %2275 = vmatprep.subr.bf16.mxu0 0
        %2276 = vmatpush1.bf16.xpose.msra.mxu0 0
        %2277 = vmatprep.subr.bf16.mxu0 0
        %2278 = vmatpush1.bf16.xpose.msra.mxu0 0
        %2279 = vmatprep.subr.bf16.mxu0 0
        %2280 = vmatpush1.bf16.xpose.msra.mxu0 0
        %2281 = vmatprep.subr.bf16.mxu0 0
        %2282 = vmatpush1.bf16.xpose.msra.mxu0 0
        %2283 = vmatprep.subr.bf16.mxu0 0
        %2284 = vmatpush1.bf16.xpose.msra.mxu0 0
        %2285 = vmatprep.subr.bf16.mxu0 0
        %2286 = vmatpush1.bf16.xpose.msra.mxu0 0
        %2287 = vmatprep.mubr.bf16.mxu0 0
        %2288 = vmatmul.mubr.bf16.gmra.mrb[0].mxu0 %v1302
        %v2289 = vpop.f32.mrb[0].mxu0
        %v2290 = vadd.f32 %v2199, %v2289
        %v2291 = vpop.f32.mrb[0].mxu0
        %v2292 = vpop.f32.mrb[0].mxu0
        %v2293 = vadd.f32 %v2200, %v2292
        %v2294 = vpop.f32.mrb[0].mxu0
        %2295 = vmatprep.mubr.bf16.mxu0 0
        %2296 = vmatmul.mubr.bf16.gmra.mrb[0].mxu0 %v1305
        %v2297 = vpop.f32.mrb[0].mxu0
        %v2298 = vadd.f32 %v2201, %v2297
        %v2299 = vpop.f32.mrb[0].mxu0
        %v2300 = vpop.f32.mrb[0].mxu0
        %v2301 = vadd.f32 %v2202, %v2300
        %v2302 = vpop.f32.mrb[0].mxu0
        %2303 = vmatprep.mubr.bf16.mxu0 0
        %2304 = vmatmul.mubr.bf16.gmra.mrb[0].mxu0 %v1308
        %v2305 = vpop.f32.mrb[0].mxu0
        %v2306 = vadd.f32 %v2203, %v2305
        %v2307 = vpop.f32.mrb[0].mxu0
        %v2308 = vpop.f32.mrb[0].mxu0
        %v2309 = vadd.f32 %v2204, %v2308
        %v2310 = vpop.f32.mrb[0].mxu0
        %2311 = vmatprep.mubr.bf16.mxu0 0
        %2312 = vmatmul.mubr.bf16.gmra.mrb[0].mxu0 %v1311
        %v2313 = vpop.f32.mrb[0].mxu0
        %v2314 = vadd.f32 %v2205, %v2313
        %v2315 = vpop.f32.mrb[0].mxu0
        %v2316 = vpop.f32.mrb[0].mxu0
        %v2317 = vadd.f32 %v2206, %v2316
        %v2318 = vpop.f32.mrb[0].mxu0
        %2319 = vmatprep.mubr.bf16.mxu0 0
        %2320 = vmatmul.mubr.bf16.gmra.mrb[0].mxu0 %v1314
        %v2321 = vpop.f32.mrb[0].mxu0
        %v2322 = vadd.f32 %v2207, %v2321
        %v2323 = vpop.f32.mrb[0].mxu0
        %v2324 = vpop.f32.mrb[0].mxu0
        %v2325 = vadd.f32 %v2208, %v2324
        %v2326 = vpop.f32.mrb[0].mxu0
        %2327 = vmatprep.mubr.bf16.mxu0 0
        %2328 = vmatmul.mubr.bf16.gmra.mrb[0].mxu0 %v1317
        %v2329 = vpop.f32.mrb[0].mxu0
        %v2330 = vadd.f32 %v2209, %v2329
        %v2331 = vpop.f32.mrb[0].mxu0
        %v2332 = vpop.f32.mrb[0].mxu0
        %v2333 = vadd.f32 %v2210, %v2332
        %v2334 = vpop.f32.mrb[0].mxu0
        %2335 = vmatprep.mubr.bf16.mxu0 0
        %2336 = vmatmul.mubr.bf16.gmra.mrb[0].mxu0 %v1320
        %v2337 = vpop.f32.mrb[0].mxu0
        %v2338 = vadd.f32 %v2211, %v2337
        %v2339 = vpop.f32.mrb[0].mxu0
        %v2340 = vpop.f32.mrb[0].mxu0
        %v2341 = vadd.f32 %v2212, %v2340
        %v2342 = vpop.f32.mrb[0].mxu0
        %2343 = vmatprep.mubr.bf16.mxu0 0
        %2344 = vmatmul.mubr.bf16.gmra.mrb[0].mxu0 %v1323
        %v2345 = vpop.f32.mrb[0].mxu0
        %v2346 = vadd.f32 %v2213, %v2345
        %v2347 = vpop.f32.mrb[0].mxu0
        %v2348 = vpop.f32.mrb[0].mxu0
        %v2349 = vadd.f32 %v2214, %v2348
        %v2350 = vpop.f32.mrb[0].mxu0
        %2351 = vdwg.mxu0
        %2384 = vrot.lane.b32.xlu0 %v1951, 1
        %v2385 = vpop.permute.xlu0 %2384
        %2386 = vrot.lane.b32.xlu0 %v1950, 1
        %v2387 = vpop.permute.xlu0 %2386
        %2388 = vrot.lane.b32.xlu0 %v1961, 1
        %v2389 = vpop.permute.xlu0 %2388
        %2390 = vrot.lane.b32.xlu0 %v1960, 1
        %v2391 = vpop.permute.xlu0 %2390
        %2392 = vrot.lane.b32.xlu0 %v1971, 1
        %v2393 = vpop.permute.xlu0 %2392
        %2394 = vrot.lane.b32.xlu0 %v1970, 1
        %v2395 = vpop.permute.xlu0 %2394
        %2396 = vrot.lane.b32.xlu0 %v1981, 1
        %v2397 = vpop.permute.xlu0 %2396
        %2398 = vrot.lane.b32.xlu0 %v1980, 1
        %v2399 = vpop.permute.xlu0 %2398
        %2400 = vrot.lane.b32.xlu0 %v1991, 1
        %v2401 = vpop.permute.xlu0 %2400
        %2402 = vrot.lane.b32.xlu0 %v1990, 1
        %v2403 = vpop.permute.xlu0 %2402
        %2404 = vrot.lane.b32.xlu0 %v2001, 1
        %v2405 = vpop.permute.xlu0 %2404
        %2406 = vrot.lane.b32.xlu0 %v2000, 1
        %v2407 = vpop.permute.xlu0 %2406
        %2408 = vrot.lane.b32.xlu0 %v2011, 1
        %v2409 = vpop.permute.xlu0 %2408
        %2410 = vrot.lane.b32.xlu0 %v2010, 1
        %v2411 = vpop.permute.xlu0 %2410
        %2412 = vrot.lane.b32.xlu0 %v2021, 1
        %v2413 = vpop.permute.xlu0 %2412
        %2414 = vrot.lane.b32.xlu0 %v2020, 1
        %v2415 = vpop.permute.xlu0 %2414
        %2416 = vrot.lane.b32.xlu0 %v2031, 1
        %v2417 = vpop.permute.xlu0 %2416
        %2418 = vrot.lane.b32.xlu0 %v2030, 1
        %v2419 = vpop.permute.xlu0 %2418
        %2420 = vrot.lane.b32.xlu0 %v2041, 1
        %v2421 = vpop.permute.xlu0 %2420
        %2422 = vrot.lane.b32.xlu0 %v2040, 1
        %v2423 = vpop.permute.xlu0 %2422
        %2424 = vrot.lane.b32.xlu0 %v2051, 1
        %v2425 = vpop.permute.xlu0 %2424
        %2426 = vrot.lane.b32.xlu0 %v2050, 1
        %v2427 = vpop.permute.xlu0 %2426
        %2428 = vrot.lane.b32.xlu0 %v2061, 1
        %v2429 = vpop.permute.xlu0 %2428
        %2430 = vrot.lane.b32.xlu0 %v2060, 1
        %v2431 = vpop.permute.xlu0 %2430
        %2432 = vrot.lane.b32.xlu0 %v2071, 1
        %v2433 = vpop.permute.xlu0 %2432
        %2434 = vrot.lane.b32.xlu0 %v2070, 1
        %v2435 = vpop.permute.xlu0 %2434
        %2436 = vrot.lane.b32.xlu0 %v2081, 1
        %v2437 = vpop.permute.xlu0 %2436
        %2438 = vrot.lane.b32.xlu0 %v2080, 1
        %v2439 = vpop.permute.xlu0 %2438
        %2440 = vrot.lane.b32.xlu0 %v2091, 1
        %v2441 = vpop.permute.xlu0 %2440
        %2442 = vrot.lane.b32.xlu0 %v2090, 1
        %v2443 = vpop.permute.xlu0 %2442
        %2444 = vrot.lane.b32.xlu0 %v2101, 1
        %v2445 = vpop.permute.xlu0 %2444
        %2446 = vrot.lane.b32.xlu0 %v2100, 1
        %v2447 = vpop.permute.xlu0 %2446
        %v2448 = vsel %vm2198, %v2385, %v2387
        %v2449 = vsel %vm2198, %v2389, %v2391
        %v2450 = vsel %vm2198, %v2393, %v2395
        %v2451 = vsel %vm2198, %v2397, %v2399
        %v2452 = vsel %vm2198, %v2401, %v2403
        %v2453 = vsel %vm2198, %v2405, %v2407
        %v2454 = vsel %vm2198, %v2409, %v2411
        %v2455 = vsel %vm2198, %v2413, %v2415
        %v2456 = vsel %vm2198, %v2417, %v2419
        %v2457 = vsel %vm2198, %v2421, %v2423
        %v2458 = vsel %vm2198, %v2425, %v2427
        %v2459 = vsel %vm2198, %v2429, %v2431
        %v2460 = vsel %vm2198, %v2433, %v2435
        %v2461 = vsel %vm2198, %v2437, %v2439
        %v2462 = vsel %vm2198, %v2441, %v2443
        %v2463 = vsel %vm2198, %v2445, %v2447
        %v2481 = vsel %vm1300, %v1106, 0
        %v2484 = vsel %vm1300, %v1108, 0
        %v2487 = vsel %vm1300, %v1110, 0
        %v2490 = vsel %vm1300, %v1112, 0
        %v2493 = vsel %vm1300, %v1114, 0
        %v2496 = vsel %vm1300, %v1116, 0
        %v2499 = vsel %vm1300, %v1118, 0
        %v2502 = vsel %vm1300, %v1120, 0
        %2504 = vmatprep.subr.bf16.mxu0 0
        %2505 = vmatpush1.bf16.xpose.msra.mxu0 %v2481
        %2506 = vmatprep.subr.bf16.mxu0 0
        %2507 = vmatpush1.bf16.xpose.msra.mxu0 %v2484
        %2508 = vmatprep.subr.bf16.mxu0 0
        %2509 = vmatpush1.bf16.xpose.msra.mxu0 %v2487
        %2510 = vmatprep.subr.bf16.mxu0 0
        %2511 = vmatpush1.bf16.xpose.msra.mxu0 %v2490
        %2512 = vmatprep.subr.bf16.mxu0 0
        %2513 = vmatpush1.bf16.xpose.msra.mxu0 %v2493
        %2514 = vmatprep.subr.bf16.mxu0 0
        %2515 = vmatpush1.bf16.xpose.msra.mxu0 %v2496
        %2516 = vmatprep.subr.bf16.mxu0 0
        %2517 = vmatpush1.bf16.xpose.msra.mxu0 %v2499
        %2518 = vmatprep.subr.bf16.mxu0 0
        %2519 = vmatpush1.bf16.xpose.msra.mxu0 %v2502
        %2520 = vmatprep.subr.bf16.mxu0 0
        %2521 = vmatpush1.bf16.xpose.msra.mxu0 0
        %2522 = vmatprep.subr.bf16.mxu0 0
        %2523 = vmatpush1.bf16.xpose.msra.mxu0 0
        %2524 = vmatprep.subr.bf16.mxu0 0
        %2525 = vmatpush1.bf16.xpose.msra.mxu0 0
        %2526 = vmatprep.subr.bf16.mxu0 0
        %2527 = vmatpush1.bf16.xpose.msra.mxu0 0
        %2528 = vmatprep.subr.bf16.mxu0 0
        %2529 = vmatpush1.bf16.xpose.msra.mxu0 0
        %2530 = vmatprep.subr.bf16.mxu0 0
        %2531 = vmatpush1.bf16.xpose.msra.mxu0 0
        %2532 = vmatprep.subr.bf16.mxu0 0
        %2533 = vmatpush1.bf16.xpose.msra.mxu0 0
        %2534 = vmatprep.subr.bf16.mxu0 0
        %2535 = vmatpush1.bf16.xpose.msra.mxu0 0
        %2536 = vmatprep.mubr.bf16.mxu0 0
        %2537 = vmatmul.mubr.bf16.gmra.mrb[0].mxu0 %v1567
        %v2538 = vpop.f32.mrb[0].mxu0
        %v2539 = vadd.f32 %v2448, %v2538
        %v2540 = vpop.f32.mrb[0].mxu0
        %v2541 = vpop.f32.mrb[0].mxu0
        %v2542 = vadd.f32 %v2449, %v2541
        %v2543 = vpop.f32.mrb[0].mxu0
        %2544 = vmatprep.mubr.bf16.mxu0 0
        %2545 = vmatmul.mubr.bf16.gmra.mrb[0].mxu0 %v1570
        %v2546 = vpop.f32.mrb[0].mxu0
        %v2547 = vadd.f32 %v2450, %v2546
        %v2548 = vpop.f32.mrb[0].mxu0
        %v2549 = vpop.f32.mrb[0].mxu0
        %v2550 = vadd.f32 %v2451, %v2549
        %v2551 = vpop.f32.mrb[0].mxu0
        %2552 = vmatprep.mubr.bf16.mxu0 0
        %2553 = vmatmul.mubr.bf16.gmra.mrb[0].mxu0 %v1573
        %v2554 = vpop.f32.mrb[0].mxu0
        %v2555 = vadd.f32 %v2452, %v2554
        %v2556 = vpop.f32.mrb[0].mxu0
        %v2557 = vpop.f32.mrb[0].mxu0
        %v2558 = vadd.f32 %v2453, %v2557
        %v2559 = vpop.f32.mrb[0].mxu0
        %2560 = vmatprep.mubr.bf16.mxu0 0
        %2561 = vmatmul.mubr.bf16.gmra.mrb[0].mxu0 %v1576
        %v2562 = vpop.f32.mrb[0].mxu0
        %v2563 = vadd.f32 %v2454, %v2562
        %v2564 = vpop.f32.mrb[0].mxu0
        %v2565 = vpop.f32.mrb[0].mxu0
        %v2566 = vadd.f32 %v2455, %v2565
        %v2567 = vpop.f32.mrb[0].mxu0
        %2568 = vmatprep.mubr.bf16.mxu0 0
        %2569 = vmatmul.mubr.bf16.gmra.mrb[0].mxu0 %v1579
        %v2570 = vpop.f32.mrb[0].mxu0
        %v2571 = vadd.f32 %v2456, %v2570
        %v2572 = vpop.f32.mrb[0].mxu0
        %v2573 = vpop.f32.mrb[0].mxu0
        %v2574 = vadd.f32 %v2457, %v2573
        %v2575 = vpop.f32.mrb[0].mxu0
        %2576 = vmatprep.mubr.bf16.mxu0 0
        %2577 = vmatmul.mubr.bf16.gmra.mrb[0].mxu0 %v1582
        %v2578 = vpop.f32.mrb[0].mxu0
        %v2579 = vadd.f32 %v2458, %v2578
        %v2580 = vpop.f32.mrb[0].mxu0
        %v2581 = vpop.f32.mrb[0].mxu0
        %v2582 = vadd.f32 %v2459, %v2581
        %v2583 = vpop.f32.mrb[0].mxu0
        %2584 = vmatprep.mubr.bf16.mxu0 0
        %2585 = vmatmul.mubr.bf16.gmra.mrb[0].mxu0 %v1585
        %v2586 = vpop.f32.mrb[0].mxu0
        %v2587 = vadd.f32 %v2460, %v2586
        %v2588 = vpop.f32.mrb[0].mxu0
        %v2589 = vpop.f32.mrb[0].mxu0
        %v2590 = vadd.f32 %v2461, %v2589
        %v2591 = vpop.f32.mrb[0].mxu0
        %2592 = vmatprep.mubr.bf16.mxu0 0
        %2593 = vmatmul.mubr.bf16.gmra.mrb[0].mxu0 %v1588
        %v2594 = vpop.f32.mrb[0].mxu0
        %v2595 = vadd.f32 %v2462, %v2594
        %v2596 = vpop.f32.mrb[0].mxu0
        %v2597 = vpop.f32.mrb[0].mxu0
        %v2598 = vadd.f32 %v2463, %v2597
        %v2599 = vpop.f32.mrb[0].mxu0
        %2600 = vdwg.mxu0
        %2601 = vmax.xlane.f32.xlu0 %v2290
        %v2602 = vpop.xlane.xlu0 %2601
        %2603 = vmax.xlane.f32.xlu0 %v2293
        %v2604 = vpop.xlane.xlu0 %2603
        %2605 = vmax.xlane.f32.xlu0 %v2298
        %v2606 = vpop.xlane.xlu0 %2605
        %2607 = vmax.xlane.f32.xlu0 %v2301
        %v2608 = vpop.xlane.xlu0 %2607
        %2609 = vmax.xlane.f32.xlu0 %v2306
        %v2610 = vpop.xlane.xlu0 %2609
        %2611 = vmax.xlane.f32.xlu0 %v2309
        %v2612 = vpop.xlane.xlu0 %2611
        %2613 = vmax.xlane.f32.xlu0 %v2314
        %v2614 = vpop.xlane.xlu0 %2613
        %2615 = vmax.xlane.f32.xlu0 %v2317
        %v2616 = vpop.xlane.xlu0 %2615
        %2617 = vmax.xlane.f32.xlu0 %v2322
        %v2618 = vpop.xlane.xlu0 %2617
        %2619 = vmax.xlane.f32.xlu0 %v2325
        %v2620 = vpop.xlane.xlu0 %2619
        %2621 = vmax.xlane.f32.xlu0 %v2330
        %v2622 = vpop.xlane.xlu0 %2621
        %2623 = vmax.xlane.f32.xlu0 %v2333
        %v2624 = vpop.xlane.xlu0 %2623
        %2625 = vmax.xlane.f32.xlu0 %v2338
        %v2626 = vpop.xlane.xlu0 %2625
        %2627 = vmax.xlane.f32.xlu0 %v2341
        %v2628 = vpop.xlane.xlu0 %2627
        %2629 = vmax.xlane.f32.xlu0 %v2346
        %v2630 = vpop.xlane.xlu0 %2629
        %2631 = vmax.xlane.f32.xlu0 %v2349
        %v2632 = vpop.xlane.xlu0 %2631
        %2633 = vmax.xlane.f32.xlu0 %v2539
        %v2634 = vpop.xlane.xlu0 %2633
        %2635 = vmax.xlane.f32.xlu0 %v2542
        %v2636 = vpop.xlane.xlu0 %2635
        %2637 = vmax.xlane.f32.xlu0 %v2547
        %v2638 = vpop.xlane.xlu0 %2637
        %2639 = vmax.xlane.f32.xlu0 %v2550
        %v2640 = vpop.xlane.xlu0 %2639
        %2641 = vmax.xlane.f32.xlu0 %v2555
        %v2642 = vpop.xlane.xlu0 %2641
        %2643 = vmax.xlane.f32.xlu0 %v2558
        %v2644 = vpop.xlane.xlu0 %2643
        %2645 = vmax.xlane.f32.xlu0 %v2563
        %v2646 = vpop.xlane.xlu0 %2645
        %2647 = vmax.xlane.f32.xlu0 %v2566
        %v2648 = vpop.xlane.xlu0 %2647
        %2649 = vmax.xlane.f32.xlu0 %v2571
        %v2650 = vpop.xlane.xlu0 %2649
        %2651 = vmax.xlane.f32.xlu0 %v2574
        %v2652 = vpop.xlane.xlu0 %2651
        %2653 = vmax.xlane.f32.xlu0 %v2579
        %v2654 = vpop.xlane.xlu0 %2653
        %2655 = vmax.xlane.f32.xlu0 %v2582
        %v2656 = vpop.xlane.xlu0 %2655
        %2657 = vmax.xlane.f32.xlu0 %v2587
        %v2658 = vpop.xlane.xlu0 %2657
        %2659 = vmax.xlane.f32.xlu0 %v2590
        %v2660 = vpop.xlane.xlu0 %2659
        %2661 = vmax.xlane.f32.xlu0 %v2595
        %v2662 = vpop.xlane.xlu0 %2661
        %2663 = vmax.xlane.f32.xlu0 %v2598
        %v2664 = vpop.xlane.xlu0 %2663
        %v2665 = vsub.f32 %v2290, %v2602
        %v2666 = vsub.f32 %v2293, %v2604
        %v2667 = vsub.f32 %v2298, %v2606
        %v2668 = vsub.f32 %v2301, %v2608
        %v2669 = vsub.f32 %v2306, %v2610
        %v2670 = vsub.f32 %v2309, %v2612
        %v2671 = vsub.f32 %v2314, %v2614
        %v2672 = vsub.f32 %v2317, %v2616
        %v2673 = vsub.f32 %v2322, %v2618
        %v2674 = vsub.f32 %v2325, %v2620
        %v2675 = vsub.f32 %v2330, %v2622
        %v2676 = vsub.f32 %v2333, %v2624
        %v2677 = vsub.f32 %v2338, %v2626
        %v2678 = vsub.f32 %v2341, %v2628
        %v2679 = vsub.f32 %v2346, %v2630
        %v2680 = vsub.f32 %v2349, %v2632
        %v2681 = vsub.f32 %v2539, %v2634
        %v2682 = vsub.f32 %v2542, %v2636
        %v2683 = vsub.f32 %v2547, %v2638
        %v2684 = vsub.f32 %v2550, %v2640
        %v2685 = vsub.f32 %v2555, %v2642
        %v2686 = vsub.f32 %v2558, %v2644
        %v2687 = vsub.f32 %v2563, %v2646
        %v2688 = vsub.f32 %v2566, %v2648
        %v2689 = vsub.f32 %v2571, %v2650
        %v2690 = vsub.f32 %v2574, %v2652
        %v2691 = vsub.f32 %v2579, %v2654
        %v2692 = vsub.f32 %v2582, %v2656
        %v2693 = vsub.f32 %v2587, %v2658
        %v2694 = vsub.f32 %v2590, %v2660
        %v2695 = vsub.f32 %v2595, %v2662
        %v2696 = vsub.f32 %v2598, %v2664
        %v2697 = vmul.f32 %v2665, 1.442695
        %v2698 = vpow.pop %v2697
        %v2699 = vmul.f32 %v2666, 1.442695
        %v2700 = vpow.pop %v2699
        %v2701 = vmul.f32 %v2667, 1.442695
        %v2702 = vpow.pop %v2701
        %v2703 = vmul.f32 %v2668, 1.442695
        %v2704 = vpow.pop %v2703
        %v2705 = vmul.f32 %v2669, 1.442695
        %v2706 = vpow.pop %v2705
        %v2707 = vmul.f32 %v2670, 1.442695
        %v2708 = vpow.pop %v2707
        %v2709 = vmul.f32 %v2671, 1.442695
        %v2710 = vpow.pop %v2709
        %v2711 = vmul.f32 %v2672, 1.442695
        %v2712 = vpow.pop %v2711
        %v2713 = vmul.f32 %v2673, 1.442695
        %v2714 = vpow.pop %v2713
        %v2715 = vmul.f32 %v2674, 1.442695
        %v2716 = vpow.pop %v2715
        %v2717 = vmul.f32 %v2675, 1.442695
        %v2718 = vpow.pop %v2717
        %v2719 = vmul.f32 %v2676, 1.442695
        %v2720 = vpow.pop %v2719
        %v2721 = vmul.f32 %v2677, 1.442695
        %v2722 = vpow.pop %v2721
        %v2723 = vmul.f32 %v2678, 1.442695
        %v2724 = vpow.pop %v2723
        %v2725 = vmul.f32 %v2679, 1.442695
        %v2726 = vpow.pop %v2725
        %v2727 = vmul.f32 %v2680, 1.442695
        %v2728 = vpow.pop %v2727
        %v2729 = vmul.f32 %v2681, 1.442695
        %v2730 = vpow.pop %v2729
        %v2731 = vmul.f32 %v2682, 1.442695
        %v2732 = vpow.pop %v2731
        %v2733 = vmul.f32 %v2683, 1.442695
        %v2734 = vpow.pop %v2733
        %v2735 = vmul.f32 %v2684, 1.442695
        %v2736 = vpow.pop %v2735
        %v2737 = vmul.f32 %v2685, 1.442695
        %v2738 = vpow.pop %v2737
        %v2739 = vmul.f32 %v2686, 1.442695
        %v2740 = vpow.pop %v2739
        %v2741 = vmul.f32 %v2687, 1.442695
        %v2742 = vpow.pop %v2741
        %v2743 = vmul.f32 %v2688, 1.442695
        %v2744 = vpow.pop %v2743
        %v2745 = vmul.f32 %v2689, 1.442695
        %v2746 = vpow.pop %v2745
        %v2747 = vmul.f32 %v2690, 1.442695
        %v2748 = vpow.pop %v2747
        %v2749 = vmul.f32 %v2691, 1.442695
        %v2750 = vpow.pop %v2749
        %v2751 = vmul.f32 %v2692, 1.442695
        %v2752 = vpow.pop %v2751
        %v2753 = vmul.f32 %v2693, 1.442695
        %v2754 = vpow.pop %v2753
        %v2755 = vmul.f32 %v2694, 1.442695
        %v2756 = vpow.pop %v2755
        %v2757 = vmul.f32 %v2695, 1.442695
        %v2758 = vpow.pop %v2757
        %v2759 = vmul.f32 %v2696, 1.442695
        %v2760 = vpow.pop %v2759
        %2761 = vadd.xlane.f32.xlu0 %v2698
        %v2762 = vpop.xlane.xlu0 %2761
        %2763 = vadd.xlane.f32.xlu0 %v2700
        %v2764 = vpop.xlane.xlu0 %2763
        %2765 = vadd.xlane.f32.xlu0 %v2702
        %v2766 = vpop.xlane.xlu0 %2765
        %2767 = vadd.xlane.f32.xlu0 %v2704
        %v2768 = vpop.xlane.xlu0 %2767
        %2769 = vadd.xlane.f32.xlu0 %v2706
        %v2770 = vpop.xlane.xlu0 %2769
        %2771 = vadd.xlane.f32.xlu0 %v2708
        %v2772 = vpop.xlane.xlu0 %2771
        %2773 = vadd.xlane.f32.xlu0 %v2710
        %v2774 = vpop.xlane.xlu0 %2773
        %2775 = vadd.xlane.f32.xlu0 %v2712
        %v2776 = vpop.xlane.xlu0 %2775
        %2777 = vadd.xlane.f32.xlu0 %v2714
        %v2778 = vpop.xlane.xlu0 %2777
        %2779 = vadd.xlane.f32.xlu0 %v2716
        %v2780 = vpop.xlane.xlu0 %2779
        %2781 = vadd.xlane.f32.xlu0 %v2718
        %v2782 = vpop.xlane.xlu0 %2781
        %2783 = vadd.xlane.f32.xlu0 %v2720
        %v2784 = vpop.xlane.xlu0 %2783
        %2785 = vadd.xlane.f32.xlu0 %v2722
        %v2786 = vpop.xlane.xlu0 %2785
        %2787 = vadd.xlane.f32.xlu0 %v2724
        %v2788 = vpop.xlane.xlu0 %2787
        %2789 = vadd.xlane.f32.xlu0 %v2726
        %v2790 = vpop.xlane.xlu0 %2789
        %2791 = vadd.xlane.f32.xlu0 %v2728
        %v2792 = vpop.xlane.xlu0 %2791
        %2793 = vadd.xlane.f32.xlu0 %v2730
        %v2794 = vpop.xlane.xlu0 %2793
        %2795 = vadd.xlane.f32.xlu0 %v2732
        %v2796 = vpop.xlane.xlu0 %2795
        %2797 = vadd.xlane.f32.xlu0 %v2734
        %v2798 = vpop.xlane.xlu0 %2797
        %2799 = vadd.xlane.f32.xlu0 %v2736
        %v2800 = vpop.xlane.xlu0 %2799
        %2801 = vadd.xlane.f32.xlu0 %v2738
        %v2802 = vpop.xlane.xlu0 %2801
        %2803 = vadd.xlane.f32.xlu0 %v2740
        %v2804 = vpop.xlane.xlu0 %2803
        %2805 = vadd.xlane.f32.xlu0 %v2742
        %v2806 = vpop.xlane.xlu0 %2805
        %2807 = vadd.xlane.f32.xlu0 %v2744
        %v2808 = vpop.xlane.xlu0 %2807
        %2809 = vadd.xlane.f32.xlu0 %v2746
        %v2810 = vpop.xlane.xlu0 %2809
        %2811 = vadd.xlane.f32.xlu0 %v2748
        %v2812 = vpop.xlane.xlu0 %2811
        %2813 = vadd.xlane.f32.xlu0 %v2750
        %v2814 = vpop.xlane.xlu0 %2813
        %2815 = vadd.xlane.f32.xlu0 %v2752
        %v2816 = vpop.xlane.xlu0 %2815
        %2817 = vadd.xlane.f32.xlu0 %v2754
        %v2818 = vpop.xlane.xlu0 %2817
        %2819 = vadd.xlane.f32.xlu0 %v2756
        %v2820 = vpop.xlane.xlu0 %2819
        %2821 = vadd.xlane.f32.xlu0 %v2758
        %v2822 = vpop.xlane.xlu0 %2821
        %2823 = vadd.xlane.f32.xlu0 %v2760
        %v2824 = vpop.xlane.xlu0 %2823
        %v2825 = vrcp.pop %v2762
        %v2826 = vrcp.pop %v2764
        %v2827 = vrcp.pop %v2766
        %v2828 = vrcp.pop %v2768
        %v2829 = vrcp.pop %v2770
        %v2830 = vrcp.pop %v2772
        %v2831 = vrcp.pop %v2774
        %v2832 = vrcp.pop %v2776
        %v2833 = vrcp.pop %v2778
        %v2834 = vrcp.pop %v2780
        %v2835 = vrcp.pop %v2782
        %v2836 = vrcp.pop %v2784
        %v2837 = vrcp.pop %v2786
        %v2838 = vrcp.pop %v2788
        %v2839 = vrcp.pop %v2790
        %v2840 = vrcp.pop %v2792
        %v2841 = vrcp.pop %v2794
        %v2842 = vrcp.pop %v2796
        %v2843 = vrcp.pop %v2798
        %v2844 = vrcp.pop %v2800
        %v2845 = vrcp.pop %v2802
        %v2846 = vrcp.pop %v2804
        %v2847 = vrcp.pop %v2806
        %v2848 = vrcp.pop %v2808
        %v2849 = vrcp.pop %v2810
        %v2850 = vrcp.pop %v2812
        %v2851 = vrcp.pop %v2814
        %v2852 = vrcp.pop %v2816
        %v2853 = vrcp.pop %v2818
        %v2854 = vrcp.pop %v2820
        %v2855 = vrcp.pop %v2822
        %v2856 = vrcp.pop %v2824
        %v2857 = vmul.f32 %v2698, %v2825
        %v2858 = vmul.f32 %v2700, %v2826
        %v2859 = vmul.f32 %v2702, %v2827
        %v2860 = vmul.f32 %v2704, %v2828
        %v2861 = vmul.f32 %v2706, %v2829
        %v2862 = vmul.f32 %v2708, %v2830
        %v2863 = vmul.f32 %v2710, %v2831
        %v2864 = vmul.f32 %v2712, %v2832
        %v2865 = vmul.f32 %v2714, %v2833
        %v2866 = vmul.f32 %v2716, %v2834
        %v2867 = vmul.f32 %v2718, %v2835
        %v2868 = vmul.f32 %v2720, %v2836
        %v2869 = vmul.f32 %v2722, %v2837
        %v2870 = vmul.f32 %v2724, %v2838
        %v2871 = vmul.f32 %v2726, %v2839
        %v2872 = vmul.f32 %v2728, %v2840
        %v2873 = vmul.f32 %v2730, %v2841
        %v2874 = vmul.f32 %v2732, %v2842
        %v2875 = vmul.f32 %v2734, %v2843
        %v2876 = vmul.f32 %v2736, %v2844
        %v2877 = vmul.f32 %v2738, %v2845
        %v2878 = vmul.f32 %v2740, %v2846
        %v2879 = vmul.f32 %v2742, %v2847
        %v2880 = vmul.f32 %v2744, %v2848
        %v2881 = vmul.f32 %v2746, %v2849
        %v2882 = vmul.f32 %v2748, %v2850
        %v2883 = vmul.f32 %v2750, %v2851
        %v2884 = vmul.f32 %v2752, %v2852
        %v2885 = vmul.f32 %v2754, %v2853
        %v2886 = vmul.f32 %v2756, %v2854
        %v2887 = vmul.f32 %v2758, %v2855
        %v2888 = vmul.f32 %v2760, %v2856
        %v2889 = vpack.c.bf16 %v2858, %v2857
        %v2890 = vpack.c.bf16 %v2860, %v2859
        %v2891 = vpack.c.bf16 %v2862, %v2861
        %v2892 = vpack.c.bf16 %v2864, %v2863
        %v2893 = vpack.c.bf16 %v2866, %v2865
        %v2894 = vpack.c.bf16 %v2868, %v2867
        %v2895 = vpack.c.bf16 %v2870, %v2869
        %v2896 = vpack.c.bf16 %v2872, %v2871
        %v2897 = vpack.c.bf16 %v2874, %v2873
        %v2898 = vpack.c.bf16 %v2876, %v2875
        %v2899 = vpack.c.bf16 %v2878, %v2877
        %v2900 = vpack.c.bf16 %v2880, %v2879
        %v2901 = vpack.c.bf16 %v2882, %v2881
        %v2902 = vpack.c.bf16 %v2884, %v2883
        %v2903 = vpack.c.bf16 %v2886, %v2885
        %v2904 = vpack.c.bf16 %v2888, %v2887
        %2905 = vmatprep.subr.bf16.mxu0 0
        %2906 = vmatpush1.bf16.msra.mxu0 %v1065
        %2907 = vmatprep.subr.bf16.mxu0 0
        %2908 = vmatpush1.bf16.msra.mxu0 %v1066
        %2909 = vmatprep.subr.bf16.mxu0 0
        %2910 = vmatpush1.bf16.msra.mxu0 %v1067
        %2911 = vmatprep.subr.bf16.mxu0 0
        %2912 = vmatpush1.bf16.msra.mxu0 %v1068
        %2913 = vmatprep.subr.bf16.mxu0 0
        %2914 = vmatpush1.bf16.msra.mxu0 %v1069
        %2915 = vmatprep.subr.bf16.mxu0 0
        %2916 = vmatpush1.bf16.msra.mxu0 %v1070
        %2917 = vmatprep.subr.bf16.mxu0 0
        %2918 = vmatpush1.bf16.msra.mxu0 %v1071
        %2919 = vmatprep.subr.bf16.mxu0 0
        %2920 = vmatpush1.bf16.msra.mxu0 %v1072
        %2921 = vmatprep.subr.bf16.mxu0 0
        %2922 = vmatpush1.bf16.msra.mxu0 0
        %2923 = vmatprep.subr.bf16.mxu0 0
        %2924 = vmatpush1.bf16.msra.mxu0 0
        %2925 = vmatprep.subr.bf16.mxu0 0
        %2926 = vmatpush1.bf16.msra.mxu0 0
        %2927 = vmatprep.subr.bf16.mxu0 0
        %2928 = vmatpush1.bf16.msra.mxu0 0
        %2929 = vmatprep.subr.bf16.mxu0 0
        %2930 = vmatpush1.bf16.msra.mxu0 0
        %2931 = vmatprep.subr.bf16.mxu0 0
        %2932 = vmatpush1.bf16.msra.mxu0 0
        %2933 = vmatprep.subr.bf16.mxu0 0
        %2934 = vmatpush1.bf16.msra.mxu0 0
        %2935 = vmatprep.subr.bf16.mxu0 0
        %2936 = vmatpush1.bf16.msra.mxu0 0
        %2937 = vmatprep.mubr.bf16.mxu0 0
        %2938 = vmatmul.mubr.bf16.gmra.mrb[0].mxu0 %v2889
        %v2939 = vpop.f32.mrb[0].mxu0
        %v2940 = vadd.f32 0.0, %v2939
        %v2941 = vpop.f32.mrb[0].mxu0
        %v2942 = vpop.f32.mrb[0].mxu0
        %v2943 = vadd.f32 0.0, %v2942
        %v2944 = vpop.f32.mrb[0].mxu0
        %2945 = vmatprep.mubr.bf16.mxu0 0
        %2946 = vmatmul.mubr.bf16.gmra.mrb[0].mxu0 %v2890
        %v2947 = vpop.f32.mrb[0].mxu0
        %v2948 = vadd.f32 0.0, %v2947
        %v2949 = vpop.f32.mrb[0].mxu0
        %v2950 = vpop.f32.mrb[0].mxu0
        %v2951 = vadd.f32 0.0, %v2950
        %v2952 = vpop.f32.mrb[0].mxu0
        %2953 = vmatprep.mubr.bf16.mxu0 0
        %2954 = vmatmul.mubr.bf16.gmra.mrb[0].mxu0 %v2891
        %v2955 = vpop.f32.mrb[0].mxu0
        %v2956 = vadd.f32 0.0, %v2955
        %v2957 = vpop.f32.mrb[0].mxu0
        %v2958 = vpop.f32.mrb[0].mxu0
        %v2959 = vadd.f32 0.0, %v2958
        %v2960 = vpop.f32.mrb[0].mxu0
        %2961 = vmatprep.mubr.bf16.mxu0 0
        %2962 = vmatmul.mubr.bf16.gmra.mrb[0].mxu0 %v2892
        %v2963 = vpop.f32.mrb[0].mxu0
        %v2964 = vadd.f32 0.0, %v2963
        %v2965 = vpop.f32.mrb[0].mxu0
        %v2966 = vpop.f32.mrb[0].mxu0
        %v2967 = vadd.f32 0.0, %v2966
        %v2968 = vpop.f32.mrb[0].mxu0
        %2969 = vmatprep.mubr.bf16.mxu0 0
        %2970 = vmatmul.mubr.bf16.gmra.mrb[0].mxu0 %v2893
        %v2971 = vpop.f32.mrb[0].mxu0
        %v2972 = vadd.f32 0.0, %v2971
        %v2973 = vpop.f32.mrb[0].mxu0
        %v2974 = vpop.f32.mrb[0].mxu0
        %v2975 = vadd.f32 0.0, %v2974
        %v2976 = vpop.f32.mrb[0].mxu0
        %2977 = vmatprep.mubr.bf16.mxu0 0
        %2978 = vmatmul.mubr.bf16.gmra.mrb[0].mxu0 %v2894
        %v2979 = vpop.f32.mrb[0].mxu0
        %v2980 = vadd.f32 0.0, %v2979
        %v2981 = vpop.f32.mrb[0].mxu0
        %v2982 = vpop.f32.mrb[0].mxu0
        %v2983 = vadd.f32 0.0, %v2982
        %v2984 = vpop.f32.mrb[0].mxu0
        %2985 = vmatprep.mubr.bf16.mxu0 0
        %2986 = vmatmul.mubr.bf16.gmra.mrb[0].mxu0 %v2895
        %v2987 = vpop.f32.mrb[0].mxu0
        %v2988 = vadd.f32 0.0, %v2987
        %v2989 = vpop.f32.mrb[0].mxu0
        %v2990 = vpop.f32.mrb[0].mxu0
        %v2991 = vadd.f32 0.0, %v2990
        %v2992 = vpop.f32.mrb[0].mxu0
        %2993 = vmatprep.mubr.bf16.mxu0 0
        %2994 = vmatmul.mubr.bf16.gmra.mrb[0].mxu0 %v2896
        %v2995 = vpop.f32.mrb[0].mxu0
        %v2996 = vadd.f32 0.0, %v2995
        %v2997 = vpop.f32.mrb[0].mxu0
        %v2998 = vpop.f32.mrb[0].mxu0
        %v2999 = vadd.f32 0.0, %v2998
        %v3000 = vpop.f32.mrb[0].mxu0
        %3001 = vdwg.mxu0
        %3002 = vmatprep.subr.bf16.mxu0 0
        %3003 = vmatpush1.bf16.msra.mxu0 %v1130
        %3004 = vmatprep.subr.bf16.mxu0 0
        %3005 = vmatpush1.bf16.msra.mxu0 %v1132
        %3006 = vmatprep.subr.bf16.mxu0 0
        %3007 = vmatpush1.bf16.msra.mxu0 %v1134
        %3008 = vmatprep.subr.bf16.mxu0 0
        %3009 = vmatpush1.bf16.msra.mxu0 %v1136
        %3010 = vmatprep.subr.bf16.mxu0 0
        %3011 = vmatpush1.bf16.msra.mxu0 %v1138
        %3012 = vmatprep.subr.bf16.mxu0 0
        %3013 = vmatpush1.bf16.msra.mxu0 %v1140
        %3014 = vmatprep.subr.bf16.mxu0 0
        %3015 = vmatpush1.bf16.msra.mxu0 %v1142
        %3016 = vmatprep.subr.bf16.mxu0 0
        %3017 = vmatpush1.bf16.msra.mxu0 %v1144
        %3018 = vmatprep.subr.bf16.mxu0 0
        %3019 = vmatpush1.bf16.msra.mxu0 0
        %3020 = vmatprep.subr.bf16.mxu0 0
        %3021 = vmatpush1.bf16.msra.mxu0 0
        %3022 = vmatprep.subr.bf16.mxu0 0
        %3023 = vmatpush1.bf16.msra.mxu0 0
        %3024 = vmatprep.subr.bf16.mxu0 0
        %3025 = vmatpush1.bf16.msra.mxu0 0
        %3026 = vmatprep.subr.bf16.mxu0 0
        %3027 = vmatpush1.bf16.msra.mxu0 0
        %3028 = vmatprep.subr.bf16.mxu0 0
        %3029 = vmatpush1.bf16.msra.mxu0 0
        %3030 = vmatprep.subr.bf16.mxu0 0
        %3031 = vmatpush1.bf16.msra.mxu0 0
        %3032 = vmatprep.subr.bf16.mxu0 0
        %3033 = vmatpush1.bf16.msra.mxu0 0
        %3034 = vmatprep.mubr.bf16.mxu0 0
        %3035 = vmatmul.mubr.bf16.gmra.mrb[0].mxu0 %v2897
        %v3036 = vpop.f32.mrb[0].mxu0
        %v3037 = vadd.f32 0.0, %v3036
        %v3038 = vpop.f32.mrb[0].mxu0
        %v3039 = vpop.f32.mrb[0].mxu0
        %v3040 = vadd.f32 0.0, %v3039
        %v3041 = vpop.f32.mrb[0].mxu0
        %3042 = vmatprep.mubr.bf16.mxu0 0
        %3043 = vmatmul.mubr.bf16.gmra.mrb[0].mxu0 %v2898
        %v3044 = vpop.f32.mrb[0].mxu0
        %v3045 = vadd.f32 0.0, %v3044
        %v3046 = vpop.f32.mrb[0].mxu0
        %v3047 = vpop.f32.mrb[0].mxu0
        %v3048 = vadd.f32 0.0, %v3047
        %v3049 = vpop.f32.mrb[0].mxu0
        %3050 = vmatprep.mubr.bf16.mxu0 0
        %3051 = vmatmul.mubr.bf16.gmra.mrb[0].mxu0 %v2899
        %v3052 = vpop.f32.mrb[0].mxu0
        %v3053 = vadd.f32 0.0, %v3052
        %v3054 = vpop.f32.mrb[0].mxu0
        %v3055 = vpop.f32.mrb[0].mxu0
        %v3056 = vadd.f32 0.0, %v3055
        %v3057 = vpop.f32.mrb[0].mxu0
        %3058 = vmatprep.mubr.bf16.mxu0 0
        %3059 = vmatmul.mubr.bf16.gmra.mrb[0].mxu0 %v2900
        %v3060 = vpop.f32.mrb[0].mxu0
        %v3061 = vadd.f32 0.0, %v3060
        %v3062 = vpop.f32.mrb[0].mxu0
        %v3063 = vpop.f32.mrb[0].mxu0
        %v3064 = vadd.f32 0.0, %v3063
        %v3065 = vpop.f32.mrb[0].mxu0
        %3066 = vmatprep.mubr.bf16.mxu0 0
        %3067 = vmatmul.mubr.bf16.gmra.mrb[0].mxu0 %v2901
        %v3068 = vpop.f32.mrb[0].mxu0
        %v3069 = vadd.f32 0.0, %v3068
        %v3070 = vpop.f32.mrb[0].mxu0
        %v3071 = vpop.f32.mrb[0].mxu0
        %v3072 = vadd.f32 0.0, %v3071
        %v3073 = vpop.f32.mrb[0].mxu0
        %3074 = vmatprep.mubr.bf16.mxu0 0
        %3075 = vmatmul.mubr.bf16.gmra.mrb[0].mxu0 %v2902
        %v3076 = vpop.f32.mrb[0].mxu0
        %v3077 = vadd.f32 0.0, %v3076
        %v3078 = vpop.f32.mrb[0].mxu0
        %v3079 = vpop.f32.mrb[0].mxu0
        %v3080 = vadd.f32 0.0, %v3079
        %v3081 = vpop.f32.mrb[0].mxu0
        %3082 = vmatprep.mubr.bf16.mxu0 0
        %3083 = vmatmul.mubr.bf16.gmra.mrb[0].mxu0 %v2903
        %v3084 = vpop.f32.mrb[0].mxu0
        %v3085 = vadd.f32 0.0, %v3084
        %v3086 = vpop.f32.mrb[0].mxu0
        %v3087 = vpop.f32.mrb[0].mxu0
        %v3088 = vadd.f32 0.0, %v3087
        %v3089 = vpop.f32.mrb[0].mxu0
        %3090 = vmatprep.mubr.bf16.mxu0 0
        %3091 = vmatmul.mubr.bf16.gmra.mrb[0].mxu0 %v2904
        %v3092 = vpop.f32.mrb[0].mxu0
        %v3093 = vadd.f32 0.0, %v3092
        %v3094 = vpop.f32.mrb[0].mxu0
        %v3095 = vpop.f32.mrb[0].mxu0
        %v3096 = vadd.f32 0.0, %v3095
        %v3097 = vpop.f32.mrb[0].mxu0
        %3098 = vdwg.mxu0
        %3115 = vrot.lane.b32.xlu0 %v3037, 64
        %v3116 = vpop.permute.xlu0 %3115
        %3117 = vrot.lane.b32.xlu0 %v3040, 64
        %v3118 = vpop.permute.xlu0 %3117
        %3119 = vrot.lane.b32.xlu0 %v3045, 64
        %v3120 = vpop.permute.xlu0 %3119
        %3121 = vrot.lane.b32.xlu0 %v3048, 64
        %v3122 = vpop.permute.xlu0 %3121
        %3123 = vrot.lane.b32.xlu0 %v3053, 64
        %v3124 = vpop.permute.xlu0 %3123
        %3125 = vrot.lane.b32.xlu0 %v3056, 64
        %v3126 = vpop.permute.xlu0 %3125
        %3127 = vrot.lane.b32.xlu0 %v3061, 64
        %v3128 = vpop.permute.xlu0 %3127
        %3129 = vrot.lane.b32.xlu0 %v3064, 64
        %v3130 = vpop.permute.xlu0 %3129
        %3131 = vrot.lane.b32.xlu0 %v3069, 64
        %v3132 = vpop.permute.xlu0 %3131
        %3133 = vrot.lane.b32.xlu0 %v3072, 64
        %v3134 = vpop.permute.xlu0 %3133
        %3135 = vrot.lane.b32.xlu0 %v3077, 64
        %v3136 = vpop.permute.xlu0 %3135
        %3137 = vrot.lane.b32.xlu0 %v3080, 64
        %v3138 = vpop.permute.xlu0 %3137
        %3139 = vrot.lane.b32.xlu0 %v3085, 64
        %v3140 = vpop.permute.xlu0 %3139
        %3141 = vrot.lane.b32.xlu0 %v3088, 64
        %v3142 = vpop.permute.xlu0 %3141
        %3143 = vrot.lane.b32.xlu0 %v3093, 64
        %v3144 = vpop.permute.xlu0 %3143
        %3145 = vrot.lane.b32.xlu0 %v3096, 64
        %v3146 = vpop.permute.xlu0 %3145
        %v3163 = vsel %vm1300, %v2940, %v3116
        %v3164 = vsel %vm1300, %v2943, %v3118
        %v3165 = vsel %vm1300, %v2948, %v3120
        %v3166 = vsel %vm1300, %v2951, %v3122
        %v3167 = vsel %vm1300, %v2956, %v3124
        %v3168 = vsel %vm1300, %v2959, %v3126
        %v3169 = vsel %vm1300, %v2964, %v3128
        %v3170 = vsel %vm1300, %v2967, %v3130
        %v3171 = vsel %vm1300, %v2972, %v3132
        %v3172 = vsel %vm1300, %v2975, %v3134
        %v3173 = vsel %vm1300, %v2980, %v3136
        %v3174 = vsel %vm1300, %v2983, %v3138
        %v3175 = vsel %vm1300, %v2988, %v3140
        %v3176 = vsel %vm1300, %v2991, %v3142
        %v3177 = vsel %vm1300, %v2996, %v3144
        %v3178 = vsel %vm1300, %v2999, %v3146
        %v3179 = vpack.c.bf16 %v3164, %v3163
        %v3180 = vpack.c.bf16 %v3166, %v3165
        %v3181 = vpack.c.bf16 %v3168, %v3167
        %v3182 = vpack.c.bf16 %v3170, %v3169
        %v3183 = vpack.c.bf16 %v3172, %v3171
        %v3184 = vpack.c.bf16 %v3174, %v3173
        %v3185 = vpack.c.bf16 %v3176, %v3175
        %v3186 = vpack.c.bf16 %v3178, %v3177
        %s3187 = smul.u32 %s416, 16
        %s3188 = smul.addr %s3187, 4
        %s3189 = scalar_lea.vmem %s6, %s3188
        %v3190 = vld [vmem:[%s3189] sm:$0xf]
        %v3191 = vld [vmem:[%s3189 + $0x4] sm:$0xf]
        %v3192 = vld [vmem:[%s3189 + $0x8] sm:$0xf]
        %v3193 = vld [vmem:[%s3189 + $0xc] sm:$0xf]
        %v3194 = vld [vmem:[%s3189 + $0x10] sm:$0xf]
        %v3195 = vld [vmem:[%s3189 + $0x14] sm:$0xf]
        %v3196 = vld [vmem:[%s3189 + $0x18] sm:$0xf]
        %v3197 = vld [vmem:[%s3189 + $0x1c] sm:$0xf]
        %v3198 = vld [vmem:[%s3189 + $0x20] sm:$0xf]
        %v3199 = vld [vmem:[%s3189 + $0x24] sm:$0xf]
        %v3200 = vld [vmem:[%s3189 + $0x28] sm:$0xf]
        %v3201 = vld [vmem:[%s3189 + $0x2c] sm:$0xf]
        %v3202 = vld [vmem:[%s3189 + $0x30] sm:$0xf]
        %v3203 = vld [vmem:[%s3189 + $0x34] sm:$0xf]
        %v3204 = vld [vmem:[%s3189 + $0x38] sm:$0xf]
        %v3205 = vld [vmem:[%s3189 + $0x3c] sm:$0xf]
        %v3206 = vlaneseq
        %v3207 = vshrl.u32 %v3206, 7
        %v3208 = vsub.s32 1, %v3207
        %v3209 = vrot.slane %v645, %v3208
        %v3226 = vunpack.c.l.b16 %v3190
        %v3227 = vunpack.c.l.b16 %v3191
        %v3228 = vunpack.c.l.b16 %v3192
        %v3229 = vunpack.c.l.b16 %v3193
        %v3230 = vunpack.c.l.b16 %v3194
        %v3231 = vunpack.c.l.b16 %v3195
        %v3232 = vunpack.c.l.b16 %v3196
        %v3233 = vunpack.c.l.b16 %v3197
        %v3234 = vunpack.c.l.b16 %v3198
        %v3235 = vunpack.c.l.b16 %v3199
        %v3236 = vunpack.c.l.b16 %v3200
        %v3237 = vunpack.c.l.b16 %v3201
        %v3238 = vunpack.c.l.b16 %v3202
        %v3239 = vunpack.c.l.b16 %v3203
        %v3240 = vunpack.c.l.b16 %v3204
        %v3241 = vunpack.c.l.b16 %v3205
        %v3242 = vpack.c.b16 %v3227, %v3226
        %v3243 = vpack.c.b16 %v3229, %v3228
        %v3244 = vpack.c.b16 %v3231, %v3230
        %v3245 = vpack.c.b16 %v3233, %v3232
        %v3246 = vpack.c.b16 %v3235, %v3234
        %v3247 = vpack.c.b16 %v3237, %v3236
        %v3248 = vpack.c.b16 %v3239, %v3238
        %v3249 = vpack.c.b16 %v3241, %v3240
        %3258 = vmatprep.subr.bf16.mxu0 0
        %3259 = vmatpush1.bf16.msra.mxu0 %v3242
        %3260 = vmatprep.subr.bf16.mxu0 0
        %3261 = vmatpush1.bf16.msra.mxu0 %v3243
        %3262 = vmatprep.subr.bf16.mxu0 0
        %3263 = vmatpush1.bf16.msra.mxu0 %v3244
        %3264 = vmatprep.subr.bf16.mxu0 0
        %3265 = vmatpush1.bf16.msra.mxu0 %v3245
        %3266 = vmatprep.subr.bf16.mxu0 0
        %3267 = vmatpush1.bf16.msra.mxu0 %v3246
        %3268 = vmatprep.subr.bf16.mxu0 0
        %3269 = vmatpush1.bf16.msra.mxu0 %v3247
        %3270 = vmatprep.subr.bf16.mxu0 0
        %3271 = vmatpush1.bf16.msra.mxu0 %v3248
        %3272 = vmatprep.subr.bf16.mxu0 0
        %3273 = vmatpush1.bf16.msra.mxu0 %v3249
        %3274 = vmatprep.subr.bf16.mxu0 0
        %3275 = vmatpush1.bf16.msra.mxu0 0
        %3276 = vmatprep.subr.bf16.mxu0 0
        %3277 = vmatpush1.bf16.msra.mxu0 0
        %3278 = vmatprep.subr.bf16.mxu0 0
        %3279 = vmatpush1.bf16.msra.mxu0 0
        %3280 = vmatprep.subr.bf16.mxu0 0
        %3281 = vmatpush1.bf16.msra.mxu0 0
        %3282 = vmatprep.subr.bf16.mxu0 0
        %3283 = vmatpush1.bf16.msra.mxu0 0
        %3284 = vmatprep.subr.bf16.mxu0 0
        %3285 = vmatpush1.bf16.msra.mxu0 0
        %3286 = vmatprep.subr.bf16.mxu0 0
        %3287 = vmatpush1.bf16.msra.mxu0 0
        %3288 = vmatprep.subr.bf16.mxu0 0
        %3289 = vmatpush1.bf16.msra.mxu0 0
        %3290 = vmatprep.mubr.bf16.mxu0 0
        %3291 = vmatmul.mubr.bf16.gmra.mrb[0].mxu0 %v3179
        %v3292 = vpop.f32.mrb[0].mxu0
        %v3293 = vadd.f32 %v3209, %v3292
        %v3294 = vpop.f32.mrb[0].mxu0
        %v3295 = vpop.f32.mrb[0].mxu0
        %v3296 = vadd.f32 %v3209, %v3295
        %v3297 = vpop.f32.mrb[0].mxu0
        %3298 = vmatprep.mubr.bf16.mxu0 0
        %3299 = vmatmul.mubr.bf16.gmra.mrb[0].mxu0 %v3180
        %v3300 = vpop.f32.mrb[0].mxu0
        %v3301 = vadd.f32 %v3209, %v3300
        %v3302 = vpop.f32.mrb[0].mxu0
        %v3303 = vpop.f32.mrb[0].mxu0
        %v3304 = vadd.f32 %v3209, %v3303
        %v3305 = vpop.f32.mrb[0].mxu0
        %3306 = vmatprep.mubr.bf16.mxu0 0
        %3307 = vmatmul.mubr.bf16.gmra.mrb[0].mxu0 %v3181
        %v3308 = vpop.f32.mrb[0].mxu0
        %v3309 = vadd.f32 %v3209, %v3308
        %v3310 = vpop.f32.mrb[0].mxu0
        %v3311 = vpop.f32.mrb[0].mxu0
        %v3312 = vadd.f32 %v3209, %v3311
        %v3313 = vpop.f32.mrb[0].mxu0
        %3314 = vmatprep.mubr.bf16.mxu0 0
        %3315 = vmatmul.mubr.bf16.gmra.mrb[0].mxu0 %v3182
        %v3316 = vpop.f32.mrb[0].mxu0
        %v3317 = vadd.f32 %v3209, %v3316
        %v3318 = vpop.f32.mrb[0].mxu0
        %v3319 = vpop.f32.mrb[0].mxu0
        %v3320 = vadd.f32 %v3209, %v3319
        %v3321 = vpop.f32.mrb[0].mxu0
        %3322 = vmatprep.mubr.bf16.mxu0 0
        %3323 = vmatmul.mubr.bf16.gmra.mrb[0].mxu0 %v3183
        %v3324 = vpop.f32.mrb[0].mxu0
        %v3325 = vadd.f32 %v3209, %v3324
        %v3326 = vpop.f32.mrb[0].mxu0
        %v3327 = vpop.f32.mrb[0].mxu0
        %v3328 = vadd.f32 %v3209, %v3327
        %v3329 = vpop.f32.mrb[0].mxu0
        %3330 = vmatprep.mubr.bf16.mxu0 0
        %3331 = vmatmul.mubr.bf16.gmra.mrb[0].mxu0 %v3184
        %v3332 = vpop.f32.mrb[0].mxu0
        %v3333 = vadd.f32 %v3209, %v3332
        %v3334 = vpop.f32.mrb[0].mxu0
        %v3335 = vpop.f32.mrb[0].mxu0
        %v3336 = vadd.f32 %v3209, %v3335
        %v3337 = vpop.f32.mrb[0].mxu0
        %3338 = vmatprep.mubr.bf16.mxu0 0
        %3339 = vmatmul.mubr.bf16.gmra.mrb[0].mxu0 %v3185
        %v3340 = vpop.f32.mrb[0].mxu0
        %v3341 = vadd.f32 %v3209, %v3340
        %v3342 = vpop.f32.mrb[0].mxu0
        %v3343 = vpop.f32.mrb[0].mxu0
        %v3344 = vadd.f32 %v3209, %v3343
        %v3345 = vpop.f32.mrb[0].mxu0
        %3346 = vmatprep.mubr.bf16.mxu0 0
        %3347 = vmatmul.mubr.bf16.gmra.mrb[0].mxu0 %v3186
        %v3348 = vpop.f32.mrb[0].mxu0
        %v3349 = vadd.f32 %v3209, %v3348
        %v3350 = vpop.f32.mrb[0].mxu0
        %v3351 = vpop.f32.mrb[0].mxu0
        %v3352 = vadd.f32 %v3209, %v3351
        %v3353 = vpop.f32.mrb[0].mxu0
        %3354 = vdwg.mxu0
        %v3355 = vadd.f32 %v618, %v3293
        %v3356 = vadd.f32 %v619, %v3296
        %v3357 = vadd.f32 %v620, %v3301
        %v3358 = vadd.f32 %v621, %v3304
        %v3359 = vadd.f32 %v622, %v3309
        %v3360 = vadd.f32 %v623, %v3312
        %v3361 = vadd.f32 %v624, %v3317
        %v3362 = vadd.f32 %v625, %v3320
        %v3363 = vadd.f32 %v626, %v3325
        %v3364 = vadd.f32 %v627, %v3328
        %v3365 = vadd.f32 %v628, %v3333
        %v3366 = vadd.f32 %v629, %v3336
        %v3367 = vadd.f32 %v630, %v3341
        %v3368 = vadd.f32 %v631, %v3344
        %v3369 = vadd.f32 %v632, %v3349
        %v3370 = vadd.f32 %v633, %v3352
        %3371 = vadd.xlane.f32.xlu0 %v3355
        %v3372 = vpop.xlane.xlu0 %3371
        %3373 = vadd.xlane.f32.xlu0 %v3356
        %v3374 = vpop.xlane.xlu0 %3373
        %3375 = vadd.xlane.f32.xlu0 %v3357
        %v3376 = vpop.xlane.xlu0 %3375
        %3377 = vadd.xlane.f32.xlu0 %v3358
        %v3378 = vpop.xlane.xlu0 %3377
        %3379 = vadd.xlane.f32.xlu0 %v3359
        %v3380 = vpop.xlane.xlu0 %3379
        %3381 = vadd.xlane.f32.xlu0 %v3360
        %v3382 = vpop.xlane.xlu0 %3381
        %3383 = vadd.xlane.f32.xlu0 %v3361
        %v3384 = vpop.xlane.xlu0 %3383
        %3385 = vadd.xlane.f32.xlu0 %v3362
        %v3386 = vpop.xlane.xlu0 %3385
        %3387 = vadd.xlane.f32.xlu0 %v3363
        %v3388 = vpop.xlane.xlu0 %3387
        %3389 = vadd.xlane.f32.xlu0 %v3364
        %v3390 = vpop.xlane.xlu0 %3389
        %3391 = vadd.xlane.f32.xlu0 %v3365
        %v3392 = vpop.xlane.xlu0 %3391
        %3393 = vadd.xlane.f32.xlu0 %v3366
        %v3394 = vpop.xlane.xlu0 %3393
        %3395 = vadd.xlane.f32.xlu0 %v3367
        %v3396 = vpop.xlane.xlu0 %3395
        %3397 = vadd.xlane.f32.xlu0 %v3368
        %v3398 = vpop.xlane.xlu0 %3397
        %3399 = vadd.xlane.f32.xlu0 %v3369
        %v3400 = vpop.xlane.xlu0 %3399
        %3401 = vadd.xlane.f32.xlu0 %v3370
        %v3402 = vpop.xlane.xlu0 %3401
        %v3403 = vrcp.pop 128.0
        %v3404 = vmul.f32 %v3372, %v3403
        %v3405 = vmul.f32 %v3374, %v3403
        %v3406 = vmul.f32 %v3376, %v3403
        %v3407 = vmul.f32 %v3378, %v3403
        %v3408 = vmul.f32 %v3380, %v3403
        %v3409 = vmul.f32 %v3382, %v3403
        %v3410 = vmul.f32 %v3384, %v3403
        %v3411 = vmul.f32 %v3386, %v3403
        %v3412 = vmul.f32 %v3388, %v3403
        %v3413 = vmul.f32 %v3390, %v3403
        %v3414 = vmul.f32 %v3392, %v3403
        %v3415 = vmul.f32 %v3394, %v3403
        %v3416 = vmul.f32 %v3396, %v3403
        %v3417 = vmul.f32 %v3398, %v3403
        %v3418 = vmul.f32 %v3400, %v3403
        %v3419 = vmul.f32 %v3402, %v3403
        %v3420 = vsub.f32 %v3355, %v3404
        %v3421 = vsub.f32 %v3356, %v3405
        %v3422 = vsub.f32 %v3357, %v3406
        %v3423 = vsub.f32 %v3358, %v3407
        %v3424 = vsub.f32 %v3359, %v3408
        %v3425 = vsub.f32 %v3360, %v3409
        %v3426 = vsub.f32 %v3361, %v3410
        %v3427 = vsub.f32 %v3362, %v3411
        %v3428 = vsub.f32 %v3363, %v3412
        %v3429 = vsub.f32 %v3364, %v3413
        %v3430 = vsub.f32 %v3365, %v3414
        %v3431 = vsub.f32 %v3366, %v3415
        %v3432 = vsub.f32 %v3367, %v3416
        %v3433 = vsub.f32 %v3368, %v3417
        %v3434 = vsub.f32 %v3369, %v3418
        %v3435 = vsub.f32 %v3370, %v3419
        %v3436 = vmul.f32 %v3420, %v3420
        %v3437 = vmul.f32 %v3421, %v3421
        %v3438 = vmul.f32 %v3422, %v3422
        %v3439 = vmul.f32 %v3423, %v3423
        %v3440 = vmul.f32 %v3424, %v3424
        %v3441 = vmul.f32 %v3425, %v3425
        %v3442 = vmul.f32 %v3426, %v3426
        %v3443 = vmul.f32 %v3427, %v3427
        %v3444 = vmul.f32 %v3428, %v3428
        %v3445 = vmul.f32 %v3429, %v3429
        %v3446 = vmul.f32 %v3430, %v3430
        %v3447 = vmul.f32 %v3431, %v3431
        %v3448 = vmul.f32 %v3432, %v3432
        %v3449 = vmul.f32 %v3433, %v3433
        %v3450 = vmul.f32 %v3434, %v3434
        %v3451 = vmul.f32 %v3435, %v3435
        %3452 = vadd.xlane.f32.xlu0 %v3436
        %v3453 = vpop.xlane.xlu0 %3452
        %3454 = vadd.xlane.f32.xlu0 %v3437
        %v3455 = vpop.xlane.xlu0 %3454
        %3456 = vadd.xlane.f32.xlu0 %v3438
        %v3457 = vpop.xlane.xlu0 %3456
        %3458 = vadd.xlane.f32.xlu0 %v3439
        %v3459 = vpop.xlane.xlu0 %3458
        %3460 = vadd.xlane.f32.xlu0 %v3440
        %v3461 = vpop.xlane.xlu0 %3460
        %3462 = vadd.xlane.f32.xlu0 %v3441
        %v3463 = vpop.xlane.xlu0 %3462
        %3464 = vadd.xlane.f32.xlu0 %v3442
        %v3465 = vpop.xlane.xlu0 %3464
        %3466 = vadd.xlane.f32.xlu0 %v3443
        %v3467 = vpop.xlane.xlu0 %3466
        %3468 = vadd.xlane.f32.xlu0 %v3444
        %v3469 = vpop.xlane.xlu0 %3468
        %3470 = vadd.xlane.f32.xlu0 %v3445
        %v3471 = vpop.xlane.xlu0 %3470
        %3472 = vadd.xlane.f32.xlu0 %v3446
        %v3473 = vpop.xlane.xlu0 %3472
        %3474 = vadd.xlane.f32.xlu0 %v3447
        %v3475 = vpop.xlane.xlu0 %3474
        %3476 = vadd.xlane.f32.xlu0 %v3448
        %v3477 = vpop.xlane.xlu0 %3476
        %3478 = vadd.xlane.f32.xlu0 %v3449
        %v3479 = vpop.xlane.xlu0 %3478
        %3480 = vadd.xlane.f32.xlu0 %v3450
        %v3481 = vpop.xlane.xlu0 %3480
        %3482 = vadd.xlane.f32.xlu0 %v3451
        %v3483 = vpop.xlane.xlu0 %3482
        %v3484 = vmul.f32 %v3453, %v3403
        %v3485 = vmul.f32 %v3455, %v3403
        %v3486 = vmul.f32 %v3457, %v3403
        %v3487 = vmul.f32 %v3459, %v3403
        %v3488 = vmul.f32 %v3461, %v3403
        %v3489 = vmul.f32 %v3463, %v3403
        %v3490 = vmul.f32 %v3465, %v3403
        %v3491 = vmul.f32 %v3467, %v3403
        %v3492 = vmul.f32 %v3469, %v3403
        %v3493 = vmul.f32 %v3471, %v3403
        %v3494 = vmul.f32 %v3473, %v3403
        %v3495 = vmul.f32 %v3475, %v3403
        %v3496 = vmul.f32 %v3477, %v3403
        %v3497 = vmul.f32 %v3479, %v3403
        %v3498 = vmul.f32 %v3481, %v3403
        %v3499 = vmul.f32 %v3483, %v3403
        %v3500 = vadd.f32 %v3484, 1e-05
        %v3501 = vadd.f32 %v3485, 1e-05
        %v3502 = vadd.f32 %v3486, 1e-05
        %v3503 = vadd.f32 %v3487, 1e-05
        %v3504 = vadd.f32 %v3488, 1e-05
        %v3505 = vadd.f32 %v3489, 1e-05
        %v3506 = vadd.f32 %v3490, 1e-05
        %v3507 = vadd.f32 %v3491, 1e-05
        %v3508 = vadd.f32 %v3492, 1e-05
        %v3509 = vadd.f32 %v3493, 1e-05
        %v3510 = vadd.f32 %v3494, 1e-05
        %v3511 = vadd.f32 %v3495, 1e-05
        %v3512 = vadd.f32 %v3496, 1e-05
        %v3513 = vadd.f32 %v3497, 1e-05
        %v3514 = vadd.f32 %v3498, 1e-05
        %v3515 = vadd.f32 %v3499, 1e-05
        %v3516 = vrsqrt.pop %v3500
        %v3517 = vrsqrt.pop %v3501
        %v3518 = vrsqrt.pop %v3502
        %v3519 = vrsqrt.pop %v3503
        %v3520 = vrsqrt.pop %v3504
        %v3521 = vrsqrt.pop %v3505
        %v3522 = vrsqrt.pop %v3506
        %v3523 = vrsqrt.pop %v3507
        %v3524 = vrsqrt.pop %v3508
        %v3525 = vrsqrt.pop %v3509
        %v3526 = vrsqrt.pop %v3510
        %v3527 = vrsqrt.pop %v3511
        %v3528 = vrsqrt.pop %v3512
        %v3529 = vrsqrt.pop %v3513
        %v3530 = vrsqrt.pop %v3514
        %v3531 = vrsqrt.pop %v3515
        %v3532 = vmul.f32 %v3420, %v3516
        %v3533 = vmul.f32 %v3421, %v3517
        %v3534 = vmul.f32 %v3422, %v3518
        %v3535 = vmul.f32 %v3423, %v3519
        %v3536 = vmul.f32 %v3424, %v3520
        %v3537 = vmul.f32 %v3425, %v3521
        %v3538 = vmul.f32 %v3426, %v3522
        %v3539 = vmul.f32 %v3427, %v3523
        %v3540 = vmul.f32 %v3428, %v3524
        %v3541 = vmul.f32 %v3429, %v3525
        %v3542 = vmul.f32 %v3430, %v3526
        %v3543 = vmul.f32 %v3431, %v3527
        %v3544 = vmul.f32 %v3432, %v3528
        %v3545 = vmul.f32 %v3433, %v3529
        %v3546 = vmul.f32 %v3434, %v3530
        %v3547 = vmul.f32 %v3435, %v3531
        %v3548 = vlaneseq
        %v3549 = vshrl.u32 %v3548, 7
        %v3550 = vsub.s32 4, %v3549
        %v3551 = vrot.slane %v645, %v3550
        %v3552 = vmul.f32 %v3532, %v3551
        %v3553 = vmul.f32 %v3533, %v3551
        %v3554 = vmul.f32 %v3534, %v3551
        %v3555 = vmul.f32 %v3535, %v3551
        %v3556 = vmul.f32 %v3536, %v3551
        %v3557 = vmul.f32 %v3537, %v3551
        %v3558 = vmul.f32 %v3538, %v3551
        %v3559 = vmul.f32 %v3539, %v3551
        %v3560 = vmul.f32 %v3540, %v3551
        %v3561 = vmul.f32 %v3541, %v3551
        %v3562 = vmul.f32 %v3542, %v3551
        %v3563 = vmul.f32 %v3543, %v3551
        %v3564 = vmul.f32 %v3544, %v3551
        %v3565 = vmul.f32 %v3545, %v3551
        %v3566 = vmul.f32 %v3546, %v3551
        %v3567 = vmul.f32 %v3547, %v3551
        %v3568 = vlaneseq
        %v3569 = vshrl.u32 %v3568, 7
        %v3570 = vsub.s32 5, %v3569
        %v3571 = vrot.slane %v645, %v3570
        %v3572 = vadd.f32 %v3552, %v3571
        %v3573 = vadd.f32 %v3553, %v3571
        %v3574 = vadd.f32 %v3554, %v3571
        %v3575 = vadd.f32 %v3555, %v3571
        %v3576 = vadd.f32 %v3556, %v3571
        %v3577 = vadd.f32 %v3557, %v3571
        %v3578 = vadd.f32 %v3558, %v3571
        %v3579 = vadd.f32 %v3559, %v3571
        %v3580 = vadd.f32 %v3560, %v3571
        %v3581 = vadd.f32 %v3561, %v3571
        %v3582 = vadd.f32 %v3562, %v3571
        %v3583 = vadd.f32 %v3563, %v3571
        %v3584 = vadd.f32 %v3564, %v3571
        %v3585 = vadd.f32 %v3565, %v3571
        %v3586 = vadd.f32 %v3566, %v3571
        %v3587 = vadd.f32 %v3567, %v3571
        %v3588 = vpack.c.bf16 %v3573, %v3572
        %v3589 = vpack.c.bf16 %v3575, %v3574
        %v3590 = vpack.c.bf16 %v3577, %v3576
        %v3591 = vpack.c.bf16 %v3579, %v3578
        %v3592 = vpack.c.bf16 %v3581, %v3580
        %v3593 = vpack.c.bf16 %v3583, %v3582
        %v3594 = vpack.c.bf16 %v3585, %v3584
        %v3595 = vpack.c.bf16 %v3587, %v3586
        %s3596 = smul.u32 %s416, 32
        %s3597 = smul.addr %s3596, 4
        %s3598 = scalar_lea.vmem %s8, %s3597
        %v3599 = vld [vmem:[%s3598] sm:$0xff]
        %v3600 = vld [vmem:[%s3598 + $0x8] sm:$0xff]
        %v3601 = vld [vmem:[%s3598 + $0x10] sm:$0xff]
        %v3602 = vld [vmem:[%s3598 + $0x18] sm:$0xff]
        %v3603 = vld [vmem:[%s3598 + $0x20] sm:$0xff]
        %v3604 = vld [vmem:[%s3598 + $0x28] sm:$0xff]
        %v3605 = vld [vmem:[%s3598 + $0x30] sm:$0xff]
        %v3606 = vld [vmem:[%s3598 + $0x38] sm:$0xff]
        %v3607 = vld [vmem:[%s3598 + $0x40] sm:$0xff]
        %v3608 = vld [vmem:[%s3598 + $0x48] sm:$0xff]
        %v3609 = vld [vmem:[%s3598 + $0x50] sm:$0xff]
        %v3610 = vld [vmem:[%s3598 + $0x58] sm:$0xff]
        %v3611 = vld [vmem:[%s3598 + $0x60] sm:$0xff]
        %v3612 = vld [vmem:[%s3598 + $0x68] sm:$0xff]
        %v3613 = vld [vmem:[%s3598 + $0x70] sm:$0xff]
        %v3614 = vld [vmem:[%s3598 + $0x78] sm:$0xff]
        %v3615 = vlaneseq
        %v3616 = vshrl.u32 %v3615, 7
        %v3617 = vsub.s32 2, %v3616
        %v3618 = vrot.slane %v645, %v3617
        %v3619 = vlaneseq
        %v3620 = vshrl.u32 %v3619, 7
        %v3621 = vsub.s32 2, %v3620
        %v3622 = vrot.slane %v646, %v3621
        %v3639 = vunpack.c.l.b16 %v3599
        %v3640 = vunpack.c.h.b16 %v3599
        %v3641 = vunpack.c.l.b16 %v3600
        %v3642 = vunpack.c.h.b16 %v3600
        %v3643 = vunpack.c.l.b16 %v3601
        %v3644 = vunpack.c.h.b16 %v3601
        %v3645 = vunpack.c.l.b16 %v3602
        %v3646 = vunpack.c.h.b16 %v3602
        %v3647 = vunpack.c.l.b16 %v3603
        %v3648 = vunpack.c.h.b16 %v3603
        %v3649 = vunpack.c.l.b16 %v3604
        %v3650 = vunpack.c.h.b16 %v3604
        %v3651 = vunpack.c.l.b16 %v3605
        %v3652 = vunpack.c.h.b16 %v3605
        %v3653 = vunpack.c.l.b16 %v3606
        %v3654 = vunpack.c.h.b16 %v3606
        %v3655 = vunpack.c.l.b16 %v3607
        %v3656 = vunpack.c.h.b16 %v3607
        %v3657 = vunpack.c.l.b16 %v3608
        %v3658 = vunpack.c.h.b16 %v3608
        %v3659 = vunpack.c.l.b16 %v3609
        %v3660 = vunpack.c.h.b16 %v3609
        %v3661 = vunpack.c.l.b16 %v3610
        %v3662 = vunpack.c.h.b16 %v3610
        %v3663 = vunpack.c.l.b16 %v3611
        %v3664 = vunpack.c.h.b16 %v3611
        %v3665 = vunpack.c.l.b16 %v3612
        %v3666 = vunpack.c.h.b16 %v3612
        %v3667 = vunpack.c.l.b16 %v3613
        %v3668 = vunpack.c.h.b16 %v3613
        %v3669 = vunpack.c.l.b16 %v3614
        %v3670 = vunpack.c.h.b16 %v3614
        %v3671 = vpack.c.b16 %v3641, %v3639
        %v3672 = vpack.c.b16 %v3642, %v3640
        %v3673 = vpack.c.b16 %v3645, %v3643
        %v3674 = vpack.c.b16 %v3646, %v3644
        %v3675 = vpack.c.b16 %v3649, %v3647
        %v3676 = vpack.c.b16 %v3650, %v3648
        %v3677 = vpack.c.b16 %v3653, %v3651
        %v3678 = vpack.c.b16 %v3654, %v3652
        %v3679 = vpack.c.b16 %v3657, %v3655
        %v3680 = vpack.c.b16 %v3658, %v3656
        %v3681 = vpack.c.b16 %v3661, %v3659
        %v3682 = vpack.c.b16 %v3662, %v3660
        %v3683 = vpack.c.b16 %v3665, %v3663
        %v3684 = vpack.c.b16 %v3666, %v3664
        %v3685 = vpack.c.b16 %v3669, %v3667
        %v3686 = vpack.c.b16 %v3670, %v3668
        %3703 = vmatprep.subr.bf16.mxu0 %v3672
        %3704 = vmatpush1.bf16.msra.mxu0 %v3671
        %3705 = vmatprep.subr.bf16.mxu0 %v3674
        %3706 = vmatpush1.bf16.msra.mxu0 %v3673
        %3707 = vmatprep.subr.bf16.mxu0 %v3676
        %3708 = vmatpush1.bf16.msra.mxu0 %v3675
        %3709 = vmatprep.subr.bf16.mxu0 %v3678
        %3710 = vmatpush1.bf16.msra.mxu0 %v3677
        %3711 = vmatprep.subr.bf16.mxu0 %v3680
        %3712 = vmatpush1.bf16.msra.mxu0 %v3679
        %3713 = vmatprep.subr.bf16.mxu0 %v3682
        %3714 = vmatpush1.bf16.msra.mxu0 %v3681
        %3715 = vmatprep.subr.bf16.mxu0 %v3684
        %3716 = vmatpush1.bf16.msra.mxu0 %v3683
        %3717 = vmatprep.subr.bf16.mxu0 %v3686
        %3718 = vmatpush1.bf16.msra.mxu0 %v3685
        %3719 = vmatprep.subr.bf16.mxu0 0
        %3720 = vmatpush1.bf16.msra.mxu0 0
        %3721 = vmatprep.subr.bf16.mxu0 0
        %3722 = vmatpush1.bf16.msra.mxu0 0
        %3723 = vmatprep.subr.bf16.mxu0 0
        %3724 = vmatpush1.bf16.msra.mxu0 0
        %3725 = vmatprep.subr.bf16.mxu0 0
        %3726 = vmatpush1.bf16.msra.mxu0 0
        %3727 = vmatprep.subr.bf16.mxu0 0
        %3728 = vmatpush1.bf16.msra.mxu0 0
        %3729 = vmatprep.subr.bf16.mxu0 0
        %3730 = vmatpush1.bf16.msra.mxu0 0
        %3731 = vmatprep.subr.bf16.mxu0 0
        %3732 = vmatpush1.bf16.msra.mxu0 0
        %3733 = vmatprep.subr.bf16.mxu0 0
        %3734 = vmatpush1.bf16.msra.mxu0 0
        %3735 = vmatprep.mubr.bf16.mxu0 0
        %3736 = vmatmul.mubr.bf16.gmra.mrb[0].mxu0 %v3588
        %v3737 = vpop.f32.mrb[0].mxu0
        %v3738 = vadd.f32 %v3618, %v3737
        %v3739 = vpop.f32.mrb[0].mxu0
        %v3740 = vadd.f32 %v3622, %v3739
        %v3741 = vpop.f32.mrb[0].mxu0
        %v3742 = vadd.f32 %v3618, %v3741
        %v3743 = vpop.f32.mrb[0].mxu0
        %v3744 = vadd.f32 %v3622, %v3743
        %3745 = vmatprep.mubr.bf16.mxu0 0
        %3746 = vmatmul.mubr.bf16.gmra.mrb[0].mxu0 %v3589
        %v3747 = vpop.f32.mrb[0].mxu0
        %v3748 = vadd.f32 %v3618, %v3747
        %v3749 = vpop.f32.mrb[0].mxu0
        %v3750 = vadd.f32 %v3622, %v3749
        %v3751 = vpop.f32.mrb[0].mxu0
        %v3752 = vadd.f32 %v3618, %v3751
        %v3753 = vpop.f32.mrb[0].mxu0
        %v3754 = vadd.f32 %v3622, %v3753
        %3755 = vmatprep.mubr.bf16.mxu0 0
        %3756 = vmatmul.mubr.bf16.gmra.mrb[0].mxu0 %v3590
        %v3757 = vpop.f32.mrb[0].mxu0
        %v3758 = vadd.f32 %v3618, %v3757
        %v3759 = vpop.f32.mrb[0].mxu0
        %v3760 = vadd.f32 %v3622, %v3759
        %v3761 = vpop.f32.mrb[0].mxu0
        %v3762 = vadd.f32 %v3618, %v3761
        %v3763 = vpop.f32.mrb[0].mxu0
        %v3764 = vadd.f32 %v3622, %v3763
        %3765 = vmatprep.mubr.bf16.mxu0 0
        %3766 = vmatmul.mubr.bf16.gmra.mrb[0].mxu0 %v3591
        %v3767 = vpop.f32.mrb[0].mxu0
        %v3768 = vadd.f32 %v3618, %v3767
        %v3769 = vpop.f32.mrb[0].mxu0
        %v3770 = vadd.f32 %v3622, %v3769
        %v3771 = vpop.f32.mrb[0].mxu0
        %v3772 = vadd.f32 %v3618, %v3771
        %v3773 = vpop.f32.mrb[0].mxu0
        %v3774 = vadd.f32 %v3622, %v3773
        %3775 = vmatprep.mubr.bf16.mxu0 0
        %3776 = vmatmul.mubr.bf16.gmra.mrb[0].mxu0 %v3592
        %v3777 = vpop.f32.mrb[0].mxu0
        %v3778 = vadd.f32 %v3618, %v3777
        %v3779 = vpop.f32.mrb[0].mxu0
        %v3780 = vadd.f32 %v3622, %v3779
        %v3781 = vpop.f32.mrb[0].mxu0
        %v3782 = vadd.f32 %v3618, %v3781
        %v3783 = vpop.f32.mrb[0].mxu0
        %v3784 = vadd.f32 %v3622, %v3783
        %3785 = vmatprep.mubr.bf16.mxu0 0
        %3786 = vmatmul.mubr.bf16.gmra.mrb[0].mxu0 %v3593
        %v3787 = vpop.f32.mrb[0].mxu0
        %v3788 = vadd.f32 %v3618, %v3787
        %v3789 = vpop.f32.mrb[0].mxu0
        %v3790 = vadd.f32 %v3622, %v3789
        %v3791 = vpop.f32.mrb[0].mxu0
        %v3792 = vadd.f32 %v3618, %v3791
        %v3793 = vpop.f32.mrb[0].mxu0
        %v3794 = vadd.f32 %v3622, %v3793
        %3795 = vmatprep.mubr.bf16.mxu0 0
        %3796 = vmatmul.mubr.bf16.gmra.mrb[0].mxu0 %v3594
        %v3797 = vpop.f32.mrb[0].mxu0
        %v3798 = vadd.f32 %v3618, %v3797
        %v3799 = vpop.f32.mrb[0].mxu0
        %v3800 = vadd.f32 %v3622, %v3799
        %v3801 = vpop.f32.mrb[0].mxu0
        %v3802 = vadd.f32 %v3618, %v3801
        %v3803 = vpop.f32.mrb[0].mxu0
        %v3804 = vadd.f32 %v3622, %v3803
        %3805 = vmatprep.mubr.bf16.mxu0 0
        %3806 = vmatmul.mubr.bf16.gmra.mrb[0].mxu0 %v3595
        %v3807 = vpop.f32.mrb[0].mxu0
        %v3808 = vadd.f32 %v3618, %v3807
        %v3809 = vpop.f32.mrb[0].mxu0
        %v3810 = vadd.f32 %v3622, %v3809
        %v3811 = vpop.f32.mrb[0].mxu0
        %v3812 = vadd.f32 %v3618, %v3811
        %v3813 = vpop.f32.mrb[0].mxu0
        %v3814 = vadd.f32 %v3622, %v3813
        %3815 = vdwg.mxu0
        %v3816 = vmax.f32 %v3738, 0.0
        %v3817 = vmax.f32 %v3740, 0.0
        %v3818 = vmax.f32 %v3742, 0.0
        %v3819 = vmax.f32 %v3744, 0.0
        %v3820 = vmax.f32 %v3748, 0.0
        %v3821 = vmax.f32 %v3750, 0.0
        %v3822 = vmax.f32 %v3752, 0.0
        %v3823 = vmax.f32 %v3754, 0.0
        %v3824 = vmax.f32 %v3758, 0.0
        %v3825 = vmax.f32 %v3760, 0.0
        %v3826 = vmax.f32 %v3762, 0.0
        %v3827 = vmax.f32 %v3764, 0.0
        %v3828 = vmax.f32 %v3768, 0.0
        %v3829 = vmax.f32 %v3770, 0.0
        %v3830 = vmax.f32 %v3772, 0.0
        %v3831 = vmax.f32 %v3774, 0.0
        %v3832 = vmax.f32 %v3778, 0.0
        %v3833 = vmax.f32 %v3780, 0.0
        %v3834 = vmax.f32 %v3782, 0.0
        %v3835 = vmax.f32 %v3784, 0.0
        %v3836 = vmax.f32 %v3788, 0.0
        %v3837 = vmax.f32 %v3790, 0.0
        %v3838 = vmax.f32 %v3792, 0.0
        %v3839 = vmax.f32 %v3794, 0.0
        %v3840 = vmax.f32 %v3798, 0.0
        %v3841 = vmax.f32 %v3800, 0.0
        %v3842 = vmax.f32 %v3802, 0.0
        %v3843 = vmax.f32 %v3804, 0.0
        %v3844 = vmax.f32 %v3808, 0.0
        %v3845 = vmax.f32 %v3810, 0.0
        %v3846 = vmax.f32 %v3812, 0.0
        %v3847 = vmax.f32 %v3814, 0.0
        %v3848 = vpack.c.bf16 %v3818, %v3816
        %v3849 = vpack.c.bf16 %v3819, %v3817
        %v3850 = vpack.c.bf16 %v3822, %v3820
        %v3851 = vpack.c.bf16 %v3823, %v3821
        %v3852 = vpack.c.bf16 %v3826, %v3824
        %v3853 = vpack.c.bf16 %v3827, %v3825
        %v3854 = vpack.c.bf16 %v3830, %v3828
        %v3855 = vpack.c.bf16 %v3831, %v3829
        %v3856 = vpack.c.bf16 %v3834, %v3832
        %v3857 = vpack.c.bf16 %v3835, %v3833
        %v3858 = vpack.c.bf16 %v3838, %v3836
        %v3859 = vpack.c.bf16 %v3839, %v3837
        %v3860 = vpack.c.bf16 %v3842, %v3840
        %v3861 = vpack.c.bf16 %v3843, %v3841
        %v3862 = vpack.c.bf16 %v3846, %v3844
        %v3863 = vpack.c.bf16 %v3847, %v3845
        %s3864 = smul.u32 %s416, 25
        %s3865 = smul.addr %s3864, 4
        %s3866 = scalar_lea.vmem %s9, %s3865
        %v3867 = vld [vmem:[%s3866] sm:$0xf]
        %v3868 = vld [vmem:[%s3866 + $0x4] sm:$0xf]
        %v3869 = vld [vmem:[%s3866 + $0x8] sm:$0xf]
        %v3870 = vld [vmem:[%s3866 + $0xc] sm:$0xf]
        %v3871 = vld [vmem:[%s3866 + $0x10] sm:$0xf]
        %v3872 = vld [vmem:[%s3866 + $0x14] sm:$0xf]
        %v3873 = vld [vmem:[%s3866 + $0x18] sm:$0xf]
        %v3874 = vld [vmem:[%s3866 + $0x1c] sm:$0xf]
        %v3875 = vld [vmem:[%s3866 + $0x20] sm:$0xf]
        %v3876 = vld [vmem:[%s3866 + $0x24] sm:$0xf]
        %v3877 = vld [vmem:[%s3866 + $0x28] sm:$0xf]
        %v3878 = vld [vmem:[%s3866 + $0x2c] sm:$0xf]
        %v3879 = vld [vmem:[%s3866 + $0x30] sm:$0xf]
        %v3880 = vld [vmem:[%s3866 + $0x34] sm:$0xf]
        %v3881 = vld [vmem:[%s3866 + $0x38] sm:$0xf]
        %v3882 = vld [vmem:[%s3866 + $0x3c] sm:$0xf]
        %v3883 = vld [vmem:[%s3866 + $0x40] sm:$0xf]
        %v3884 = vld [vmem:[%s3866 + $0x44] sm:$0xf]
        %v3885 = vld [vmem:[%s3866 + $0x48] sm:$0xf]
        %v3886 = vld [vmem:[%s3866 + $0x4c] sm:$0xf]
        %v3887 = vld [vmem:[%s3866 + $0x50] sm:$0xf]
        %v3888 = vld [vmem:[%s3866 + $0x54] sm:$0xf]
        %v3889 = vld [vmem:[%s3866 + $0x58] sm:$0xf]
        %v3890 = vld [vmem:[%s3866 + $0x5c] sm:$0xf]
        %v3891 = vld [vmem:[%s3866 + $0x60] sm:$0xf]
        %v3892 = vlaneseq
        %v3893 = vshrl.u32 %v3892, 7
        %v3894 = vsub.s32 3, %v3893
        %v3895 = vrot.slane %v645, %v3894
        %v3921 = vunpack.c.l.b16 %v3867
        %v3922 = vunpack.c.l.b16 %v3868
        %v3923 = vunpack.c.l.b16 %v3869
        %v3924 = vunpack.c.l.b16 %v3870
        %v3925 = vunpack.c.l.b16 %v3871
        %v3926 = vunpack.c.l.b16 %v3872
        %v3927 = vunpack.c.l.b16 %v3873
        %v3928 = vunpack.c.l.b16 %v3874
        %v3929 = vunpack.c.l.b16 %v3875
        %v3930 = vunpack.c.l.b16 %v3876
        %v3931 = vunpack.c.l.b16 %v3877
        %v3932 = vunpack.c.l.b16 %v3878
        %v3933 = vunpack.c.l.b16 %v3879
        %v3934 = vunpack.c.l.b16 %v3880
        %v3935 = vunpack.c.l.b16 %v3881
        %v3936 = vunpack.c.l.b16 %v3882
        %v3937 = vunpack.c.l.b16 %v3883
        %v3938 = vunpack.c.l.b16 %v3884
        %v3939 = vunpack.c.l.b16 %v3885
        %v3940 = vunpack.c.l.b16 %v3886
        %v3941 = vunpack.c.l.b16 %v3887
        %v3942 = vunpack.c.l.b16 %v3888
        %v3943 = vunpack.c.l.b16 %v3889
        %v3944 = vunpack.c.l.b16 %v3890
        %v3945 = vunpack.c.l.b16 %v3891
        %v3946 = vpack.c.b16 %v3922, %v3921
        %v3947 = vpack.c.b16 %v3924, %v3923
        %v3948 = vpack.c.b16 %v3926, %v3925
        %v3949 = vpack.c.b16 %v3928, %v3927
        %v3950 = vpack.c.b16 %v3930, %v3929
        %v3951 = vpack.c.b16 %v3932, %v3931
        %v3952 = vpack.c.b16 %v3934, %v3933
        %v3953 = vpack.c.b16 %v3936, %v3935
        %v3954 = vpack.c.b16 %v3938, %v3937
        %v3955 = vpack.c.b16 %v3940, %v3939
        %v3956 = vpack.c.b16 %v3942, %v3941
        %v3957 = vpack.c.b16 %v3944, %v3943
        %v3958 = vpack.c.b16 %v3945, %v3945
        %vm3971 = vcmask 588800
        %v3973 = vsel %vm3971, %v3849, 0
        %v3976 = vsel %vm3971, %v3851, 0
        %v3979 = vsel %vm3971, %v3853, 0
        %v3982 = vsel %vm3971, %v3855, 0
        %v3985 = vsel %vm3971, %v3857, 0
        %v3988 = vsel %vm3971, %v3859, 0
        %v3991 = vsel %vm3971, %v3861, 0
        %v3994 = vsel %vm3971, %v3863, 0
        %vm3996 = vcmask 1043456
        %v3998 = vsel %vm3996, %v3958, 0
        %4000 = vmatprep.subr.bf16.mxu0 0
        %4001 = vmatpush1.bf16.msra.mxu0 %v3946
        %4002 = vmatprep.subr.bf16.mxu0 0
        %4003 = vmatpush1.bf16.msra.mxu0 %v3947
        %4004 = vmatprep.subr.bf16.mxu0 0
        %4005 = vmatpush1.bf16.msra.mxu0 %v3948
        %4006 = vmatprep.subr.bf16.mxu0 0
        %4007 = vmatpush1.bf16.msra.mxu0 %v3949
        %4008 = vmatprep.subr.bf16.mxu0 0
        %4009 = vmatpush1.bf16.msra.mxu0 %v3950
        %4010 = vmatprep.subr.bf16.mxu0 0
        %4011 = vmatpush1.bf16.msra.mxu0 %v3951
        %4012 = vmatprep.subr.bf16.mxu0 0
        %4013 = vmatpush1.bf16.msra.mxu0 %v3952
        %4014 = vmatprep.subr.bf16.mxu0 0
        %4015 = vmatpush1.bf16.msra.mxu0 %v3953
        %4016 = vmatprep.subr.bf16.mxu0 0
        %4017 = vmatpush1.bf16.msra.mxu0 %v3954
        %4018 = vmatprep.subr.bf16.mxu0 0
        %4019 = vmatpush1.bf16.msra.mxu0 %v3955
        %4020 = vmatprep.subr.bf16.mxu0 0
        %4021 = vmatpush1.bf16.msra.mxu0 %v3956
        %4022 = vmatprep.subr.bf16.mxu0 0
        %4023 = vmatpush1.bf16.msra.mxu0 %v3957
        %4024 = vmatprep.subr.bf16.mxu0 0
        %4025 = vmatpush1.bf16.msra.mxu0 %v3998
        %4026 = vmatprep.subr.bf16.mxu0 0
        %4027 = vmatpush1.bf16.msra.mxu0 0
        %4028 = vmatprep.subr.bf16.mxu0 0
        %4029 = vmatpush1.bf16.msra.mxu0 0
        %4030 = vmatprep.subr.bf16.mxu0 0
        %4031 = vmatpush1.bf16.msra.mxu0 0
        %4032 = vmatprep.mubr.bf16.mxu0 %v3973
        %4033 = vmatmul.mubr.bf16.gmra.mrb[0].mxu0 %v3848
        %v4034 = vpop.f32.mrb[0].mxu0
        %v4035 = vadd.f32 %v3895, %v4034
        %v4036 = vpop.f32.mrb[0].mxu0
        %v4037 = vpop.f32.mrb[0].mxu0
        %v4038 = vadd.f32 %v3895, %v4037
        %v4039 = vpop.f32.mrb[0].mxu0
        %4040 = vmatprep.mubr.bf16.mxu0 %v3976
        %4041 = vmatmul.mubr.bf16.gmra.mrb[0].mxu0 %v3850
        %v4042 = vpop.f32.mrb[0].mxu0
        %v4043 = vadd.f32 %v3895, %v4042
        %v4044 = vpop.f32.mrb[0].mxu0
        %v4045 = vpop.f32.mrb[0].mxu0
        %v4046 = vadd.f32 %v3895, %v4045
        %v4047 = vpop.f32.mrb[0].mxu0
        %4048 = vmatprep.mubr.bf16.mxu0 %v3979
        %4049 = vmatmul.mubr.bf16.gmra.mrb[0].mxu0 %v3852
        %v4050 = vpop.f32.mrb[0].mxu0
        %v4051 = vadd.f32 %v3895, %v4050
        %v4052 = vpop.f32.mrb[0].mxu0
        %v4053 = vpop.f32.mrb[0].mxu0
        %v4054 = vadd.f32 %v3895, %v4053
        %v4055 = vpop.f32.mrb[0].mxu0
        %4056 = vmatprep.mubr.bf16.mxu0 %v3982
        %4057 = vmatmul.mubr.bf16.gmra.mrb[0].mxu0 %v3854
        %v4058 = vpop.f32.mrb[0].mxu0
        %v4059 = vadd.f32 %v3895, %v4058
        %v4060 = vpop.f32.mrb[0].mxu0
        %v4061 = vpop.f32.mrb[0].mxu0
        %v4062 = vadd.f32 %v3895, %v4061
        %v4063 = vpop.f32.mrb[0].mxu0
        %4064 = vmatprep.mubr.bf16.mxu0 %v3985
        %4065 = vmatmul.mubr.bf16.gmra.mrb[0].mxu0 %v3856
        %v4066 = vpop.f32.mrb[0].mxu0
        %v4067 = vadd.f32 %v3895, %v4066
        %v4068 = vpop.f32.mrb[0].mxu0
        %v4069 = vpop.f32.mrb[0].mxu0
        %v4070 = vadd.f32 %v3895, %v4069
        %v4071 = vpop.f32.mrb[0].mxu0
        %4072 = vmatprep.mubr.bf16.mxu0 %v3988
        %4073 = vmatmul.mubr.bf16.gmra.mrb[0].mxu0 %v3858
        %v4074 = vpop.f32.mrb[0].mxu0
        %v4075 = vadd.f32 %v3895, %v4074
        %v4076 = vpop.f32.mrb[0].mxu0
        %v4077 = vpop.f32.mrb[0].mxu0
        %v4078 = vadd.f32 %v3895, %v4077
        %v4079 = vpop.f32.mrb[0].mxu0
        %4080 = vmatprep.mubr.bf16.mxu0 %v3991
        %4081 = vmatmul.mubr.bf16.gmra.mrb[0].mxu0 %v3860
        %v4082 = vpop.f32.mrb[0].mxu0
        %v4083 = vadd.f32 %v3895, %v4082
        %v4084 = vpop.f32.mrb[0].mxu0
        %v4085 = vpop.f32.mrb[0].mxu0
        %v4086 = vadd.f32 %v3895, %v4085
        %v4087 = vpop.f32.mrb[0].mxu0
        %4088 = vmatprep.mubr.bf16.mxu0 %v3994
        %4089 = vmatmul.mubr.bf16.gmra.mrb[0].mxu0 %v3862
        %v4090 = vpop.f32.mrb[0].mxu0
        %v4091 = vadd.f32 %v3895, %v4090
        %v4092 = vpop.f32.mrb[0].mxu0
        %v4093 = vpop.f32.mrb[0].mxu0
        %v4094 = vadd.f32 %v3895, %v4093
        %v4095 = vpop.f32.mrb[0].mxu0
        %4096 = vdwg.mxu0
        %v4097 = vadd.f32 %v3572, %v4035
        %v4098 = vadd.f32 %v3573, %v4038
        %v4099 = vadd.f32 %v3574, %v4043
        %v4100 = vadd.f32 %v3575, %v4046
        %v4101 = vadd.f32 %v3576, %v4051
        %v4102 = vadd.f32 %v3577, %v4054
        %v4103 = vadd.f32 %v3578, %v4059
        %v4104 = vadd.f32 %v3579, %v4062
        %v4105 = vadd.f32 %v3580, %v4067
        %v4106 = vadd.f32 %v3581, %v4070
        %v4107 = vadd.f32 %v3582, %v4075
        %v4108 = vadd.f32 %v3583, %v4078
        %v4109 = vadd.f32 %v3584, %v4083
        %v4110 = vadd.f32 %v3585, %v4086
        %v4111 = vadd.f32 %v3586, %v4091
        %v4112 = vadd.f32 %v3587, %v4094
        %4113 = vadd.xlane.f32.xlu0 %v4097
        %v4114 = vpop.xlane.xlu0 %4113
        %4115 = vadd.xlane.f32.xlu0 %v4098
        %v4116 = vpop.xlane.xlu0 %4115
        %4117 = vadd.xlane.f32.xlu0 %v4099
        %v4118 = vpop.xlane.xlu0 %4117
        %4119 = vadd.xlane.f32.xlu0 %v4100
        %v4120 = vpop.xlane.xlu0 %4119
        %4121 = vadd.xlane.f32.xlu0 %v4101
        %v4122 = vpop.xlane.xlu0 %4121
        %4123 = vadd.xlane.f32.xlu0 %v4102
        %v4124 = vpop.xlane.xlu0 %4123
        %4125 = vadd.xlane.f32.xlu0 %v4103
        %v4126 = vpop.xlane.xlu0 %4125
        %4127 = vadd.xlane.f32.xlu0 %v4104
        %v4128 = vpop.xlane.xlu0 %4127
        %4129 = vadd.xlane.f32.xlu0 %v4105
        %v4130 = vpop.xlane.xlu0 %4129
        %4131 = vadd.xlane.f32.xlu0 %v4106
        %v4132 = vpop.xlane.xlu0 %4131
        %4133 = vadd.xlane.f32.xlu0 %v4107
        %v4134 = vpop.xlane.xlu0 %4133
        %4135 = vadd.xlane.f32.xlu0 %v4108
        %v4136 = vpop.xlane.xlu0 %4135
        %4137 = vadd.xlane.f32.xlu0 %v4109
        %v4138 = vpop.xlane.xlu0 %4137
        %4139 = vadd.xlane.f32.xlu0 %v4110
        %v4140 = vpop.xlane.xlu0 %4139
        %4141 = vadd.xlane.f32.xlu0 %v4111
        %v4142 = vpop.xlane.xlu0 %4141
        %4143 = vadd.xlane.f32.xlu0 %v4112
        %v4144 = vpop.xlane.xlu0 %4143
        %v4145 = vmul.f32 %v4114, %v3403
        %v4146 = vmul.f32 %v4116, %v3403
        %v4147 = vmul.f32 %v4118, %v3403
        %v4148 = vmul.f32 %v4120, %v3403
        %v4149 = vmul.f32 %v4122, %v3403
        %v4150 = vmul.f32 %v4124, %v3403
        %v4151 = vmul.f32 %v4126, %v3403
        %v4152 = vmul.f32 %v4128, %v3403
        %v4153 = vmul.f32 %v4130, %v3403
        %v4154 = vmul.f32 %v4132, %v3403
        %v4155 = vmul.f32 %v4134, %v3403
        %v4156 = vmul.f32 %v4136, %v3403
        %v4157 = vmul.f32 %v4138, %v3403
        %v4158 = vmul.f32 %v4140, %v3403
        %v4159 = vmul.f32 %v4142, %v3403
        %v4160 = vmul.f32 %v4144, %v3403
        %v4161 = vsub.f32 %v4097, %v4145
        %v4162 = vsub.f32 %v4098, %v4146
        %v4163 = vsub.f32 %v4099, %v4147
        %v4164 = vsub.f32 %v4100, %v4148
        %v4165 = vsub.f32 %v4101, %v4149
        %v4166 = vsub.f32 %v4102, %v4150
        %v4167 = vsub.f32 %v4103, %v4151
        %v4168 = vsub.f32 %v4104, %v4152
        %v4169 = vsub.f32 %v4105, %v4153
        %v4170 = vsub.f32 %v4106, %v4154
        %v4171 = vsub.f32 %v4107, %v4155
        %v4172 = vsub.f32 %v4108, %v4156
        %v4173 = vsub.f32 %v4109, %v4157
        %v4174 = vsub.f32 %v4110, %v4158
        %v4175 = vsub.f32 %v4111, %v4159
        %v4176 = vsub.f32 %v4112, %v4160
        %v4177 = vmul.f32 %v4161, %v4161
        %v4178 = vmul.f32 %v4162, %v4162
        %v4179 = vmul.f32 %v4163, %v4163
        %v4180 = vmul.f32 %v4164, %v4164
        %v4181 = vmul.f32 %v4165, %v4165
        %v4182 = vmul.f32 %v4166, %v4166
        %v4183 = vmul.f32 %v4167, %v4167
        %v4184 = vmul.f32 %v4168, %v4168
        %v4185 = vmul.f32 %v4169, %v4169
        %v4186 = vmul.f32 %v4170, %v4170
        %v4187 = vmul.f32 %v4171, %v4171
        %v4188 = vmul.f32 %v4172, %v4172
        %v4189 = vmul.f32 %v4173, %v4173
        %v4190 = vmul.f32 %v4174, %v4174
        %v4191 = vmul.f32 %v4175, %v4175
        %v4192 = vmul.f32 %v4176, %v4176
        %4193 = vadd.xlane.f32.xlu0 %v4177
        %v4194 = vpop.xlane.xlu0 %4193
        %4195 = vadd.xlane.f32.xlu0 %v4178
        %v4196 = vpop.xlane.xlu0 %4195
        %4197 = vadd.xlane.f32.xlu0 %v4179
        %v4198 = vpop.xlane.xlu0 %4197
        %4199 = vadd.xlane.f32.xlu0 %v4180
        %v4200 = vpop.xlane.xlu0 %4199
        %4201 = vadd.xlane.f32.xlu0 %v4181
        %v4202 = vpop.xlane.xlu0 %4201
        %4203 = vadd.xlane.f32.xlu0 %v4182
        %v4204 = vpop.xlane.xlu0 %4203
        %4205 = vadd.xlane.f32.xlu0 %v4183
        %v4206 = vpop.xlane.xlu0 %4205
        %4207 = vadd.xlane.f32.xlu0 %v4184
        %v4208 = vpop.xlane.xlu0 %4207
        %4209 = vadd.xlane.f32.xlu0 %v4185
        %v4210 = vpop.xlane.xlu0 %4209
        %4211 = vadd.xlane.f32.xlu0 %v4186
        %v4212 = vpop.xlane.xlu0 %4211
        %4213 = vadd.xlane.f32.xlu0 %v4187
        %v4214 = vpop.xlane.xlu0 %4213
        %4215 = vadd.xlane.f32.xlu0 %v4188
        %v4216 = vpop.xlane.xlu0 %4215
        %4217 = vadd.xlane.f32.xlu0 %v4189
        %v4218 = vpop.xlane.xlu0 %4217
        %4219 = vadd.xlane.f32.xlu0 %v4190
        %v4220 = vpop.xlane.xlu0 %4219
        %4221 = vadd.xlane.f32.xlu0 %v4191
        %v4222 = vpop.xlane.xlu0 %4221
        %4223 = vadd.xlane.f32.xlu0 %v4192
        %v4224 = vpop.xlane.xlu0 %4223
        %v4225 = vmul.f32 %v4194, %v3403
        %v4226 = vmul.f32 %v4196, %v3403
        %v4227 = vmul.f32 %v4198, %v3403
        %v4228 = vmul.f32 %v4200, %v3403
        %v4229 = vmul.f32 %v4202, %v3403
        %v4230 = vmul.f32 %v4204, %v3403
        %v4231 = vmul.f32 %v4206, %v3403
        %v4232 = vmul.f32 %v4208, %v3403
        %v4233 = vmul.f32 %v4210, %v3403
        %v4234 = vmul.f32 %v4212, %v3403
        %v4235 = vmul.f32 %v4214, %v3403
        %v4236 = vmul.f32 %v4216, %v3403
        %v4237 = vmul.f32 %v4218, %v3403
        %v4238 = vmul.f32 %v4220, %v3403
        %v4239 = vmul.f32 %v4222, %v3403
        %v4240 = vmul.f32 %v4224, %v3403
        %v4241 = vadd.f32 %v4225, 1e-05
        %v4242 = vadd.f32 %v4226, 1e-05
        %v4243 = vadd.f32 %v4227, 1e-05
        %v4244 = vadd.f32 %v4228, 1e-05
        %v4245 = vadd.f32 %v4229, 1e-05
        %v4246 = vadd.f32 %v4230, 1e-05
        %v4247 = vadd.f32 %v4231, 1e-05
        %v4248 = vadd.f32 %v4232, 1e-05
        %v4249 = vadd.f32 %v4233, 1e-05
        %v4250 = vadd.f32 %v4234, 1e-05
        %v4251 = vadd.f32 %v4235, 1e-05
        %v4252 = vadd.f32 %v4236, 1e-05
        %v4253 = vadd.f32 %v4237, 1e-05
        %v4254 = vadd.f32 %v4238, 1e-05
        %v4255 = vadd.f32 %v4239, 1e-05
        %v4256 = vadd.f32 %v4240, 1e-05
        %v4257 = vrsqrt.pop %v4241
        %v4258 = vrsqrt.pop %v4242
        %v4259 = vrsqrt.pop %v4243
        %v4260 = vrsqrt.pop %v4244
        %v4261 = vrsqrt.pop %v4245
        %v4262 = vrsqrt.pop %v4246
        %v4263 = vrsqrt.pop %v4247
        %v4264 = vrsqrt.pop %v4248
        %v4265 = vrsqrt.pop %v4249
        %v4266 = vrsqrt.pop %v4250
        %v4267 = vrsqrt.pop %v4251
        %v4268 = vrsqrt.pop %v4252
        %v4269 = vrsqrt.pop %v4253
        %v4270 = vrsqrt.pop %v4254
        %v4271 = vrsqrt.pop %v4255
        %v4272 = vrsqrt.pop %v4256
        %v4273 = vmul.f32 %v4161, %v4257
        %v4274 = vmul.f32 %v4162, %v4258
        %v4275 = vmul.f32 %v4163, %v4259
        %v4276 = vmul.f32 %v4164, %v4260
        %v4277 = vmul.f32 %v4165, %v4261
        %v4278 = vmul.f32 %v4166, %v4262
        %v4279 = vmul.f32 %v4167, %v4263
        %v4280 = vmul.f32 %v4168, %v4264
        %v4281 = vmul.f32 %v4169, %v4265
        %v4282 = vmul.f32 %v4170, %v4266
        %v4283 = vmul.f32 %v4171, %v4267
        %v4284 = vmul.f32 %v4172, %v4268
        %v4285 = vmul.f32 %v4173, %v4269
        %v4286 = vmul.f32 %v4174, %v4270
        %v4287 = vmul.f32 %v4175, %v4271
        %v4288 = vmul.f32 %v4176, %v4272
        %v4289 = vlaneseq
        %v4290 = vshrl.u32 %v4289, 7
        %v4291 = vsub.s32 6, %v4290
        %v4292 = vrot.slane %v645, %v4291
        %v4293 = vmul.f32 %v4273, %v4292
        %v4294 = vmul.f32 %v4274, %v4292
        %v4295 = vmul.f32 %v4275, %v4292
        %v4296 = vmul.f32 %v4276, %v4292
        %v4297 = vmul.f32 %v4277, %v4292
        %v4298 = vmul.f32 %v4278, %v4292
        %v4299 = vmul.f32 %v4279, %v4292
        %v4300 = vmul.f32 %v4280, %v4292
        %v4301 = vmul.f32 %v4281, %v4292
        %v4302 = vmul.f32 %v4282, %v4292
        %v4303 = vmul.f32 %v4283, %v4292
        %v4304 = vmul.f32 %v4284, %v4292
        %v4305 = vmul.f32 %v4285, %v4292
        %v4306 = vmul.f32 %v4286, %v4292
        %v4307 = vmul.f32 %v4287, %v4292
        %v4308 = vmul.f32 %v4288, %v4292
        %v4309 = vlaneseq
        %v4310 = vshrl.u32 %v4309, 7
        %v4311 = vsub.s32 7, %v4310
        %v4312 = vrot.slane %v645, %v4311
        %v4313 = vadd.f32 %v4293, %v4312
        %v4314 = vadd.f32 %v4294, %v4312
        %v4315 = vadd.f32 %v4295, %v4312
        %v4316 = vadd.f32 %v4296, %v4312
        %v4317 = vadd.f32 %v4297, %v4312
        %v4318 = vadd.f32 %v4298, %v4312
        %v4319 = vadd.f32 %v4299, %v4312
        %v4320 = vadd.f32 %v4300, %v4312
        %v4321 = vadd.f32 %v4301, %v4312
        %v4322 = vadd.f32 %v4302, %v4312
        %v4323 = vadd.f32 %v4303, %v4312
        %v4324 = vadd.f32 %v4304, %v4312
        %v4325 = vadd.f32 %v4305, %v4312
        %v4326 = vadd.f32 %v4306, %v4312
        %v4327 = vadd.f32 %v4307, %v4312
        %v4328 = vadd.f32 %v4308, %v4312
        %4329 = vst [vmem:[%s617] sm:$0xff] %v4313
        %4330 = vst [vmem:[%s617 + $0x8] sm:$0xff] %v4314
        %4331 = vst [vmem:[%s617 + $0x10] sm:$0xff] %v4315
        %4332 = vst [vmem:[%s617 + $0x18] sm:$0xff] %v4316
        %4333 = vst [vmem:[%s617 + $0x20] sm:$0xff] %v4317
        %4334 = vst [vmem:[%s617 + $0x28] sm:$0xff] %v4318
        %4335 = vst [vmem:[%s617 + $0x30] sm:$0xff] %v4319
        %4336 = vst [vmem:[%s617 + $0x38] sm:$0xff] %v4320
        %4337 = vst [vmem:[%s617 + $0x40] sm:$0xff] %v4321
        %4338 = vst [vmem:[%s617 + $0x48] sm:$0xff] %v4322
        %4339 = vst [vmem:[%s617 + $0x50] sm:$0xff] %v4323
        %4340 = vst [vmem:[%s617 + $0x58] sm:$0xff] %v4324
        %4341 = vst [vmem:[%s617 + $0x60] sm:$0xff] %v4325
        %4342 = vst [vmem:[%s617 + $0x68] sm:$0xff] %v4326
        %4343 = vst [vmem:[%s617 + $0x70] sm:$0xff] %v4327
        %4344 = vst [vmem:[%s617 + $0x78] sm:$0xff] %v4328
        %p4345 = scmp.eq.s32.totalorder %s29, 8
        // Predicated region
        $region69: #{tpu_custom_call.1} parent=63 // pred_check
          %p4346 = pneg %p4345
        $region70: #{tpu_custom_call.1} parent=63 // pred_check_branch
          %4348 = sbr.rel (%p4346) target = $region72
        $region71: #{tpu_custom_call.1} parent=63 // pred_region
          %v4349 = vpack.c.bf16 %v4314, %v4313
          %v4350 = vpack.c.bf16 %v4316, %v4315
          %v4351 = vpack.c.bf16 %v4318, %v4317
          %v4352 = vpack.c.bf16 %v4320, %v4319
          %v4353 = vpack.c.bf16 %v4322, %v4321
          %v4354 = vpack.c.bf16 %v4324, %v4323
          %v4355 = vpack.c.bf16 %v4326, %v4325
          %v4356 = vpack.c.bf16 %v4328, %v4327
          %v4357 = vld [vmem:[%s3] sm:$0xf]
          %v4358 = vld [vmem:[%s3 + $0x4] sm:$0xf]
          %v4359 = vld [vmem:[%s3 + $0x8] sm:$0xf]
          %v4360 = vld [vmem:[%s3 + $0xc] sm:$0xf]
          %v4361 = vld [vmem:[%s3 + $0x10] sm:$0xf]
          %v4362 = vld [vmem:[%s3 + $0x14] sm:$0xf]
          %v4363 = vld [vmem:[%s3 + $0x18] sm:$0xf]
          %v4364 = vld [vmem:[%s3 + $0x1c] sm:$0xf]
          %v4365 = vld [vmem:[%s3 + $0x20] sm:$0xf]
          %v4366 = vld [vmem:[%s3 + $0x24] sm:$0xf]
          %v4367 = vld [vmem:[%s3 + $0x28] sm:$0xf]
          %v4368 = vld [vmem:[%s3 + $0x2c] sm:$0xf]
          %v4369 = vld [vmem:[%s3 + $0x30] sm:$0xf]
          %v4370 = vld [vmem:[%s3 + $0x34] sm:$0xf]
          %v4371 = vld [vmem:[%s3 + $0x38] sm:$0xf]
          %v4372 = vld [vmem:[%s3 + $0x3c] sm:$0xf]
          %v4373 = vld [vmem:[%s4] sm:$0x1]
          %v4375 = vlaneseq
          %v4376 = vshrl.u32 %v4375, 7
          %v4377 = vsub.s32 0, %v4376
          %v4378 = vrot.slane %v4373, %v4377
          %v4396 = vunpack.c.l.b16 %v4357
          %v4397 = vunpack.c.l.b16 %v4358
          %v4398 = vunpack.c.l.b16 %v4359
          %v4399 = vunpack.c.l.b16 %v4360
          %v4400 = vunpack.c.l.b16 %v4361
          %v4401 = vunpack.c.l.b16 %v4362
          %v4402 = vunpack.c.l.b16 %v4363
          %v4403 = vunpack.c.l.b16 %v4364
          %v4404 = vunpack.c.l.b16 %v4365
          %v4405 = vunpack.c.l.b16 %v4366
          %v4406 = vunpack.c.l.b16 %v4367
          %v4407 = vunpack.c.l.b16 %v4368
          %v4408 = vunpack.c.l.b16 %v4369
          %v4409 = vunpack.c.l.b16 %v4370
          %v4410 = vunpack.c.l.b16 %v4371
          %v4411 = vunpack.c.l.b16 %v4372
          %v4412 = vpack.c.b16 %v4397, %v4396
          %v4413 = vpack.c.b16 %v4399, %v4398
          %v4414 = vpack.c.b16 %v4401, %v4400
          %v4415 = vpack.c.b16 %v4403, %v4402
          %v4416 = vpack.c.b16 %v4405, %v4404
          %v4417 = vpack.c.b16 %v4407, %v4406
          %v4418 = vpack.c.b16 %v4409, %v4408
          %v4419 = vpack.c.b16 %v4411, %v4410
          %4428 = vmatprep.subr.bf16.mxu0 0
          %4429 = vmatpush1.bf16.msra.mxu0 %v4412
          %4430 = vmatprep.subr.bf16.mxu0 0
          %4431 = vmatpush1.bf16.msra.mxu0 %v4413
          %4432 = vmatprep.subr.bf16.mxu0 0
          %4433 = vmatpush1.bf16.msra.mxu0 %v4414
          %4434 = vmatprep.subr.bf16.mxu0 0
          %4435 = vmatpush1.bf16.msra.mxu0 %v4415
          %4436 = vmatprep.subr.bf16.mxu0 0
          %4437 = vmatpush1.bf16.msra.mxu0 %v4416
          %4438 = vmatprep.subr.bf16.mxu0 0
          %4439 = vmatpush1.bf16.msra.mxu0 %v4417
          %4440 = vmatprep.subr.bf16.mxu0 0
          %4441 = vmatpush1.bf16.msra.mxu0 %v4418
          %4442 = vmatprep.subr.bf16.mxu0 0
          %4443 = vmatpush1.bf16.msra.mxu0 %v4419
          %4444 = vmatprep.subr.bf16.mxu0 0
          %4445 = vmatpush1.bf16.msra.mxu0 0
          %4446 = vmatprep.subr.bf16.mxu0 0
          %4447 = vmatpush1.bf16.msra.mxu0 0
          %4448 = vmatprep.subr.bf16.mxu0 0
          %4449 = vmatpush1.bf16.msra.mxu0 0
          %4450 = vmatprep.subr.bf16.mxu0 0
          %4451 = vmatpush1.bf16.msra.mxu0 0
          %4452 = vmatprep.subr.bf16.mxu0 0
          %4453 = vmatpush1.bf16.msra.mxu0 0
          %4454 = vmatprep.subr.bf16.mxu0 0
          %4455 = vmatpush1.bf16.msra.mxu0 0
          %4456 = vmatprep.subr.bf16.mxu0 0
          %4457 = vmatpush1.bf16.msra.mxu0 0
          %4458 = vmatprep.subr.bf16.mxu0 0
          %4459 = vmatpush1.bf16.msra.mxu0 0
          %4460 = vmatprep.mubr.bf16.mxu0 0
          %4461 = vmatmul.mubr.bf16.gmra.mrb[0].mxu0 %v4349
          %v4462 = vpop.f32.mrb[0].mxu0
          %v4463 = vadd.f32 %v4378, %v4462
          %v4464 = vpop.f32.mrb[0].mxu0
          %v4465 = vpop.f32.mrb[0].mxu0
          %v4466 = vadd.f32 %v4378, %v4465
          %v4467 = vpop.f32.mrb[0].mxu0
          %4468 = vmatprep.mubr.bf16.mxu0 0
          %4469 = vmatmul.mubr.bf16.gmra.mrb[0].mxu0 %v4350
          %v4470 = vpop.f32.mrb[0].mxu0
          %v4471 = vadd.f32 %v4378, %v4470
          %v4472 = vpop.f32.mrb[0].mxu0
          %v4473 = vpop.f32.mrb[0].mxu0
          %v4474 = vadd.f32 %v4378, %v4473
          %v4475 = vpop.f32.mrb[0].mxu0
          %4476 = vmatprep.mubr.bf16.mxu0 0
          %4477 = vmatmul.mubr.bf16.gmra.mrb[0].mxu0 %v4351
          %v4478 = vpop.f32.mrb[0].mxu0
          %v4479 = vadd.f32 %v4378, %v4478
          %v4480 = vpop.f32.mrb[0].mxu0
          %v4481 = vpop.f32.mrb[0].mxu0
          %v4482 = vadd.f32 %v4378, %v4481
          %v4483 = vpop.f32.mrb[0].mxu0
          %4484 = vmatprep.mubr.bf16.mxu0 0
          %4485 = vmatmul.mubr.bf16.gmra.mrb[0].mxu0 %v4352
          %v4486 = vpop.f32.mrb[0].mxu0
          %v4487 = vadd.f32 %v4378, %v4486
          %v4488 = vpop.f32.mrb[0].mxu0
          %v4489 = vpop.f32.mrb[0].mxu0
          %v4490 = vadd.f32 %v4378, %v4489
          %v4491 = vpop.f32.mrb[0].mxu0
          %4492 = vmatprep.mubr.bf16.mxu0 0
          %4493 = vmatmul.mubr.bf16.gmra.mrb[0].mxu0 %v4353
          %v4494 = vpop.f32.mrb[0].mxu0
          %v4495 = vadd.f32 %v4378, %v4494
          %v4496 = vpop.f32.mrb[0].mxu0
          %v4497 = vpop.f32.mrb[0].mxu0
          %v4498 = vadd.f32 %v4378, %v4497
          %v4499 = vpop.f32.mrb[0].mxu0
          %4500 = vmatprep.mubr.bf16.mxu0 0
          %4501 = vmatmul.mubr.bf16.gmra.mrb[0].mxu0 %v4354
          %v4502 = vpop.f32.mrb[0].mxu0
          %v4503 = vadd.f32 %v4378, %v4502
          %v4504 = vpop.f32.mrb[0].mxu0
          %v4505 = vpop.f32.mrb[0].mxu0
          %v4506 = vadd.f32 %v4378, %v4505
          %v4507 = vpop.f32.mrb[0].mxu0
          %4508 = vmatprep.mubr.bf16.mxu0 0
          %4509 = vmatmul.mubr.bf16.gmra.mrb[0].mxu0 %v4355
          %v4510 = vpop.f32.mrb[0].mxu0
          %v4511 = vadd.f32 %v4378, %v4510
          %v4512 = vpop.f32.mrb[0].mxu0
          %v4513 = vpop.f32.mrb[0].mxu0
          %v4514 = vadd.f32 %v4378, %v4513
          %v4515 = vpop.f32.mrb[0].mxu0
          %4516 = vmatprep.mubr.bf16.mxu0 0
          %4517 = vmatmul.mubr.bf16.gmra.mrb[0].mxu0 %v4356
          %v4518 = vpop.f32.mrb[0].mxu0
          %v4519 = vadd.f32 %v4378, %v4518
          %v4520 = vpop.f32.mrb[0].mxu0
          %v4521 = vpop.f32.mrb[0].mxu0
          %v4522 = vadd.f32 %v4378, %v4521
          %v4523 = vpop.f32.mrb[0].mxu0
          %4524 = vdwg.mxu0
          %4525 = vst [vmem:[%s395] sm:$0xff] %v4463
          %4526 = vst [vmem:[%s395 + $0x8] sm:$0xff] %v4466
          %4527 = vst [vmem:[%s395 + $0x10] sm:$0xff] %v4471
          %4528 = vst [vmem:[%s395 + $0x18] sm:$0xff] %v4474
          %4529 = vst [vmem:[%s395 + $0x20] sm:$0xff] %v4479
          %4530 = vst [vmem:[%s395 + $0x28] sm:$0xff] %v4482
          %4531 = vst [vmem:[%s395 + $0x30] sm:$0xff] %v4487
          %4532 = vst [vmem:[%s395 + $0x38] sm:$0xff] %v4490
          %4533 = vst [vmem:[%s395 + $0x40] sm:$0xff] %v4495
          %4534 = vst [vmem:[%s395 + $0x48] sm:$0xff] %v4498
          %4535 = vst [vmem:[%s395 + $0x50] sm:$0xff] %v4503
          %4536 = vst [vmem:[%s395 + $0x58] sm:$0xff] %v4506
          %4537 = vst [vmem:[%s395 + $0x60] sm:$0xff] %v4511
          %4538 = vst [vmem:[%s395 + $0x68] sm:$0xff] %v4514
          %4539 = vst [vmem:[%s395 + $0x70] sm:$0xff] %v4519
          %4540 = vst [vmem:[%s395 + $0x78] sm:$0xff] %v4522
        $region72: #{tpu_custom_call.1} parent=63 // pred_fallthru
          _
        %s4541 = sand.u32 %s285, 1
        %s4542 = scalar_lea.sflag [#allocation4], %s4541
        %s4543 = sand.u32 %s285, 1
        %s4544 = smul.addr %s4543, 128
        %s4545 = scalar_lea.vmem [#allocation3], %s4544
        // Predicated region
        $region73: #{tpu_custom_call.1} parent=63 // pred_check
          %p4546 = pneg %p295
        $region74: #{tpu_custom_call.1} parent=63 // pred_check_branch
          %4548 = sbr.rel (%p4546) target = $region76
        $region75: #{tpu_custom_call.1} parent=63 // pred_region
          %p4549 = scmp.eq.s32.totalorder %s29, 8
          %s4550 = scalar_select %p4549, %s30, 0
          %s4552 = ssub.s32 2048, 2048
          %4553 = vsyncadd %s4542, %s4552
          %s4554 = smul.addr %s4550, 16
          %s4555 = smul.addr %s4554, 128
          %s4556 = scalar_lea.hbm %s11, %s4555
          %s4557 = sshll.u32 %s4545, 4
          %s4558 = int_to_ptr.vmem [resolvable:$true] %s4557
          %4563 = dma.vmem_to_hbm [thread:$0]  %s4558, 2048, %s4556, %s4542, 128, 128, 8
        $region76: #{tpu_custom_call.1} parent=63 // pred_fallthru
          _
      $region64: #{tpu_custom_call.1} parent=5 // pred_fallthru
        _
      %p4564 = scmp.le.s32.totalorder 2, %s20
      // Predicated region
      $region77: #{tpu_custom_call.1} parent=5 // pred_check
        %p4565 = pneg %p4564
      $region78: #{tpu_custom_call.1} parent=5 // pred_check_branch
        %4567 = sbr.rel (%p4565) target = $region80
      $region79: #{tpu_custom_call.1} parent=5 // pred_region
        %s4568 = ssub.s32 %s20, 2
        // Predicated region
        $region81: #{tpu_custom_call.1} parent=79 // pred_check
          %p4569 = pneg %p301
        $region82: #{tpu_custom_call.1} parent=79 // pred_check_branch
          %4571 = sbr.rel (%p4569) target = $region84
        $region83: #{tpu_custom_call.1} parent=79 // pred_region
          %s4572 = sand.u32 %s286, 1
          %s4573 = scalar_lea.sflag [#allocation4], %s4572
          %s4574 = sand.u32 %s286, 1
          %s4575 = smul.addr %s4574, 128
          %s4576 = scalar_lea.vmem [#allocation3], %s4575
          %4577 = dma.done %s4573, 2048
        $region84: #{tpu_custom_call.1} parent=79 // pred_fallthru
          _
      $region80: #{tpu_custom_call.1} parent=5 // pred_fallthru
        _
    $region6: #{tpu_custom_call.1} parent=1 // loop_footer
      %s24 = sadd.s32 1, %s20
    $region7: #{tpu_custom_call.1} parent=1 // loop_footer_branch
      %19 = sbr.rel target = $region3
    $region8: #{tpu_custom_call.1} parent=1 // loop_exit
      _
    %4578 = vsyncpa [#allocation4], 1
    %s4579 = scalar_lea.sflag [#allocation4], 1
    %4580 = vsyncpa %s4579, 1

</llo_original>
